<compile_context>
chip_gen: v7x
topology: tpu7x:2x2x1
jax: 0.10.0
libtpu: 0.0.40
codegen_flags: <defaults>
</compile_context>

<pallas_src>
import functools

import jax
import jax.numpy as jnp
from jax.experimental import pallas as pl
from jax.experimental.pallas import tpu as pltpu


def _round_up(x, m):
    return ((x + m - 1) // m) * m


def _feature_planes_kernel(coords_ref, kgrid_ref, planes_ref, out_ref, a_ref, *,
                           grid_w, num_pairs, p_pad):
    """One N-tile: build the block tent matrix A, then one merged MXU matmul.

    coords_ref: (TN, 2*num_pairs)   raw grid coords, columns (x_p, y_p) per pair
    kgrid_ref : (2, P_pad)          row 0 = plane column (x) index, row 1 = row
                                    (y) index, float32, -2 sentinel in the pad
    planes_ref: (num_pairs*P_pad, C_out_pad)  block-diagonal flattened planes
    out_ref   : (TN, C_out_pad)     lane-dense output block
    a_ref     : (TN, num_pairs*P_pad) VMEM scratch holding all tent weights
    """
    w = grid_w
    scale = 0.5 * (w - 1)

    # align_corners=True unnormalize + padding_mode='border' clamp, done once
    # for the whole (TN, 2*num_pairs) coordinate block.
    ixy = jnp.clip((coords_ref[...] + 1.0) * scale, 0.0, float(w - 1))

    kc = kgrid_ref[0:1, :]            # (1, P_pad) plane column (x) index
    kr = kgrid_ref[1:2, :]            # (1, P_pad) plane row    (y) index

    # Static unroll over coordinate pairs (num_pairs = C(indim, 2), small here).
    # Each pair fills its 128-aligned P_pad-wide slice of the A slab.
    # TODO(synk): for num_pairs >> 8 switch to lax.fori_loop writing at
    # pl.ds(pl.multiple_of(p * p_pad, 128), p_pad) to bound live ranges.
    for p in range(num_pairs):
        ix = ixy[:, 2 * p:2 * p + 1]          # (TN, 1)
        iy = ixy[:, 2 * p + 1:2 * p + 2]      # (TN, 1)
        # Tent weights == bilinear grid_sample weights for align_corners=True
        # + border clamp (including the x0 == x1 collapse at the border).
        hx = jnp.maximum(1.0 - jnp.abs(kc - ix), 0.0)   # (TN, P_pad)
        hy = jnp.maximum(1.0 - jnp.abs(kr - iy), 0.0)   # (TN, P_pad)
        a_ref[:, p * p_pad:(p + 1) * p_pad] = hx * hy

    # One lane-dense MXU matmul + one unmasked 128-wide store per tile
    # (replaces num_pairs fdim-wide matmuls and masked vst.msk stores).
    out_ref[...] = jnp.dot(a_ref[...], planes_ref[...],
                           preferred_element_type=jnp.float32
                           ).astype(out_ref.dtype)


class FeaturePlanesPallas:
    """JAX/Pallas port of FeaturePlanes (forward only)."""

    def __init__(self, fdim, fsize, indim, tvlsqrt, globalFeats=False,
                 key=jax.random.PRNGKey(0), tile_n=1024):
        self.fsize = fsize
        self.globalFeats = globalFeats
        self.fdim = fdim + 1 if globalFeats else fdim
        self.indim = indim
        self.tvlsqrt = tvlsqrt          # only used by getTVL (not in forward)
        self.tile_n = tile_n            # sweep 512-2048; VMEM-capped in __call__

        self.pairs = [(i, j) for i in range(indim - 1)
                      for j in range(i + 1, indim)]
        num_pairs = len(self.pairs)
        w = fsize + 1
        self.grid_w = w
        self.P = w * w
        self.P_pad = _round_up(self.P, 128)   # lane-/MXU-aligned per-pair K
        self.K = num_pairs * self.P_pad       # merged contraction dimension

        # Merged, lane-dense output layout:
        #   non-global: [pair0 fdim | pair1 fdim | ...]             (+ zero pad)
        #   global    : [pair0 fdim-1 | ... | pairN-1 fdim-1 | glob] (+ zero pad)
        if globalFeats:
            self.fdim_vis = self.fdim - 1
            self.glob_col = num_pairs * self.fdim_vis
            self.c_out_used = self.glob_col + 1
        else:
            self.fdim_vis = self.fdim
            self.glob_col = None
            self.c_out_used = num_pairs * self.fdim
        self.c_out_pad = _round_up(self.c_out_used, 128)

        # Deterministic parameter init: torch.randn(1, fdim, w, w) * 0.01,
        # flattened row-major over (y, x), channel-last, zero-padded to P_pad.
        keys = jax.random.split(key, num_pairs)
        planes = []
        for kk in keys:
            plane = jax.random.normal(kk, (self.fdim, w, w),
                                      dtype=jnp.float32) * 0.01
            flat = plane.reshape(self.fdim, self.P).T         # (P, fdim)
            flat = jnp.pad(flat, ((0, self.P_pad - self.P), (0, 0)))
            planes.append(flat)
        # Kept per-pair for the pure-JAX reference / inspection.
        self.planes_flat = jnp.stack(planes, axis=0)   # (num_pairs, P_pad, fdim)

        # Block-diagonal plane matrix feeding the single merged matmul.  In the
        # globalFeats case, every pair's last channel is stacked into one shared
        # column so the matmul also produces the summed global feature.
        bd = jnp.zeros((self.K, self.c_out_pad), dtype=jnp.float32)
        for p, flat in enumerate(planes):
            r0 = p * self.P_pad
            if globalFeats:
                bd = bd.at[r0:r0 + self.P_pad,
                           p * self.fdim_vis:(p + 1) * self.fdim_vis].set(
                               flat[:, :-1])
                bd = bd.at[r0:r0 + self.P_pad, self.glob_col].set(flat[:, -1])
            else:
                bd = bd.at[r0:r0 + self.P_pad,
                           p * self.fdim:(p + 1) * self.fdim].set(flat)
        self.planes_bd = bd                              # (K, c_out_pad)

        # Precomputed flattened-plane column/row indices (hoisted out of the
        # kernel); padded tail gets a -2 sentinel so its tent weight is 0.
        k = jnp.arange(self.P_pad)
        valid = k < self.P
        kc = jnp.where(valid, (k % w).astype(jnp.float32), -2.0)
        kr = jnp.where(valid, (k // w).astype(jnp.float32), -2.0)
        self.kgrid = jnp.stack([kc, kr], axis=0)         # (2, P_pad) float32

    def __call__(self, x):
        # x: (N, indim) float32, coordinates roughly in [-1, 1]
        n = x.shape[0]
        num_pairs = len(self.pairs)

        # Gather the (x, y) coordinate columns for every pair:
        # (N, 2*num_pairs) with columns [x_i0, x_j0, x_i1, x_j1, ...].
        cols = []
        for (i, j) in self.pairs:
            cols.append(x[:, i])
            cols.append(x[:, j])
        coords = jnp.stack(cols, axis=1).astype(jnp.float32)

        # Tile size: large enough to amortize the ~0.35 us per-grid-step
        # overhead, capped by (a) a conservative VMEM budget (safe on v7x's
        # smaller VMEM) and (b) "keep >= 2 grid steps" so the parallel axis
        # can shard across v7x's two TensorCores.
        vmem_budget = 24 * 1024 * 1024
        fixed_bytes = 4 * (self.planes_bd.size + self.kgrid.size)
        per_row_bytes = 4 * (self.K                      # A slab scratch
                             + 2 * self.c_out_pad        # double-buffered out
                             + 2 * 2 * num_pairs)        # double-buffered coords
        tn_vmem = max(8, ((vmem_budget - fixed_bytes) // per_row_bytes) // 8 * 8)
        tn = min(self.tile_n, tn_vmem, _round_up(pl.cdiv(n, 2), 8))
        n_pad = _round_up(n, tn)
        if n_pad != n:
            # Padded rows get valid (0, 0) coords; their (finite) samples are
            # sliced off below, so no masking is needed in the kernel.
            coords = jnp.pad(coords, ((0, n_pad - n), (0, 0)))

        kernel = functools.partial(_feature_planes_kernel, grid_w=self.grid_w,
                                   num_pairs=num_pairs, p_pad=self.P_pad)
        flops = 2 * n_pad * self.K * self.c_out_pad
        bytes_accessed = 4 * (coords.size + self.kgrid.size
                              + self.planes_bd.size + n_pad * self.c_out_pad)

        out = pl.pallas_call(
            kernel,
            out_shape=jax.ShapeDtypeStruct((n_pad, self.c_out_pad), jnp.float32),
            grid_spec=pltpu.PrefetchScalarGridSpec(
                num_scalar_prefetch=0,
                grid=(n_pad // tn,),
                in_specs=[
                    # per-tile coordinates
                    pl.BlockSpec((tn, 2 * num_pairs), lambda t: (t, 0)),
                    # constant blocks, resident across grid steps
                    pl.BlockSpec((2, self.P_pad), lambda t: (0, 0)),
                    pl.BlockSpec((self.K, self.c_out_pad), lambda t: (0, 0)),
                ],
                out_specs=pl.BlockSpec((tn, self.c_out_pad), lambda t: (t, 0)),
                scratch_shapes=[pltpu.VMEM((tn, self.K), jnp.float32)],
            ),
            compiler_params=pltpu.CompilerParams(
                dimension_semantics=("parallel",)),
            cost_estimate=pl.CostEstimate(flops=flops, transcendentals=0,
                                          bytes_accessed=bytes_accessed),
        )(coords, self.kgrid, self.planes_bd)         # (n_pad, c_out_pad)

        if self.globalFeats:
            samples = out[:n, :num_pairs * self.fdim_vis]   # (N, np*(fdim-1))
            glob = out[:n, self.glob_col]                   # (N,)
            return samples, glob
        return out[:n, :self.c_out_used]                    # (N, np*fdim)


# ---------------- pure-JAX reference (grid_sample, bilinear, border, ----
# ---------------- align_corners=True) for correctness checking       ----
def _ref_grid_sample(plane, coords):
    # plane: (C, H, W); coords: (N, 2) with (x, y)
    c, h, w = plane.shape
    ix = jnp.clip((coords[:, 0] + 1.0) * 0.5 * (w - 1), 0.0, w - 1)
    iy = jnp.clip((coords[:, 1] + 1.0) * 0.5 * (h - 1), 0.0, h - 1)
    x0 = jnp.floor(ix).astype(jnp.int32)
    y0 = jnp.floor(iy).astype(jnp.int32)
    x1 = jnp.minimum(x0 + 1, w - 1)
    y1 = jnp.minimum(y0 + 1, h - 1)
    wx = ix - x0.astype(jnp.float32)
    wy = iy - y0.astype(jnp.float32)

    def g(yy, xx):
        return plane[:, yy, xx].T  # (N, C)

    return (g(y0, x0) * ((1 - wx) * (1 - wy))[:, None]
            + g(y0, x1) * (wx * (1 - wy))[:, None]
            + g(y1, x0) * ((1 - wx) * wy)[:, None]
            + g(y1, x1) * (wx * wy)[:, None])


def _ref_forward(module, x):
    outs = []
    w = module.grid_w
    for p, (i, j) in enumerate(module.pairs):
        plane = module.planes_flat[p][:module.P].T.reshape(module.fdim, w, w)
        coords = jnp.stack([x[:, i], x[:, j]], axis=1)
        outs.append(_ref_grid_sample(plane, coords))
    return jnp.concatenate(outs, axis=1)


if __name__ == "__main__":
    key = jax.random.PRNGKey(0)
    k_param, k_x = jax.random.split(key)

    fdim, fsize, indim = 8, 16, 3        # num_pairs = 3, plane = 17x17
    N = 300                              # exercises N padding + >=2 grid tiles

    # coordinates slightly outside [-1, 1] to exercise border clamping
    x = jax.random.uniform(k_x, (N, indim), minval=-1.2, maxval=1.2,
                           dtype=jnp.float32)

    # ---- plain path --------------------------------------------------------
    module = FeaturePlanesPallas(fdim=fdim, fsize=fsize, indim=indim,
                                 tvlsqrt=False, globalFeats=False,
                                 key=k_param)
    out = jax.block_until_ready(module(x))
    assert out.shape == (N, len(module.pairs) * fdim), out.shape
    ref = _ref_forward(module, x)
    assert jnp.allclose(out, ref, atol=1e-5, rtol=1e-5), (
        float(jnp.max(jnp.abs(out - ref))))

    # ---- globalFeats path --------------------------------------------------
    module_g = FeaturePlanesPallas(fdim=fdim, fsize=fsize, indim=indim,
                                   tvlsqrt=False, globalFeats=True,
                                   key=k_param)
    samples_g, glob = module_g(x)
    samples_g = jax.block_until_ready(samples_g)
    ref_full = _ref_forward(module_g, x)   # (N, num_pairs*(fdim+1))
    ref3 = ref_full.reshape(N, len(module_g.pairs), module_g.fdim)
    ref_samples = ref3[:, :, :-1].reshape(N, -1)
    ref_glob = jnp.sum(ref3[:, :, -1], axis=1)
    assert samples_g.shape == (N, len(module_g.pairs) * fdim)
    assert jnp.allclose(samples_g, ref_samples, atol=1e-5, rtol=1e-5)
    assert jnp.allclose(glob, ref_glob, atol=1e-5, rtol=1e-5)

    print("KERNEL_OK")
</pallas_src>

<mosaic_0001>
module attributes {stable_mosaic.version = 11 : i64} {
  func.func @_feature_planes_kernel(%arg0: i32, %arg1: memref<152x6xf32, #tpu.memory_space<vmem>>, %arg2: memref<2x384xf32, #tpu.memory_space<vmem>>, %arg3: memref<1152x128xf32, #tpu.memory_space<vmem>>, %arg4: memref<152x128xf32, #tpu.memory_space<vmem>>, %arg5: memref<152x1152xf32, #tpu.memory_space<vmem>>) attributes {dimension_semantics = [#tpu.dimension_semantics<parallel>], iteration_bounds = array<i64: 2>, scalar_prefetch = 0 : i64, scratch_operands = 1 : i64, tpu.core_type = #tpu.core_type<tc>, window_params = [{transform_indices = @transform_0, window_bounds = array<i64: 152, 6>}, {pipeline_mode = #tpu.pipeline_mode<synchronous>, transform_indices = @transform_1, window_bounds = array<i64: 2, 384>}, {pipeline_mode = #tpu.pipeline_mode<synchronous>, transform_indices = @transform_2, window_bounds = array<i64: 1152, 128>}, {transform_indices = @transform_3, window_bounds = array<i64: 152, 128>}]} {
    %c0 = arith.constant 0 : index
    %c0_0 = arith.constant 0 : index
    %0 = vector.load %arg1[%c0, %c0_0] : memref<152x6xf32, #tpu.memory_space<vmem>>, vector<152x6xf32>
    %cst = arith.constant 1.000000e+00 : f32
    %1 = vector.broadcast %cst : f32 to vector<152x6xf32>
    %2 = arith.addf %0, %1 : vector<152x6xf32>
    %cst_1 = arith.constant 8.000000e+00 : f32
    %3 = vector.broadcast %cst_1 : f32 to vector<152x6xf32>
    %4 = arith.mulf %2, %3 : vector<152x6xf32>
    %cst_2 = arith.constant 0.000000e+00 : f32
    %cst_3 = arith.constant 1.600000e+01 : f32
    %5 = vector.broadcast %cst_2 : f32 to vector<152x6xf32>
    %6 = arith.maximumf %5, %4 : vector<152x6xf32>
    %7 = vector.broadcast %cst_3 : f32 to vector<152x6xf32>
    %8 = arith.minimumf %7, %6 : vector<152x6xf32>
    %c0_4 = arith.constant 0 : index
    %c0_5 = arith.constant 0 : index
    %9 = vector.load %arg2[%c0_4, %c0_5] : memref<2x384xf32, #tpu.memory_space<vmem>>, vector<1x384xf32>
    %c1 = arith.constant 1 : index
    %c0_6 = arith.constant 0 : index
    %10 = vector.load %arg2[%c1, %c0_6] : memref<2x384xf32, #tpu.memory_space<vmem>>, vector<1x384xf32>
    %11 = vector.extract_strided_slice %8 {offsets = [0, 0], sizes = [152, 1], strides = [1, 1]} : vector<152x6xf32> to vector<152x1xf32>
    %12 = vector.extract_strided_slice %8 {offsets = [0, 1], sizes = [152, 1], strides = [1, 1]} : vector<152x6xf32> to vector<152x1xf32>
    %13 = vector.broadcast %9 : vector<1x384xf32> to vector<152x384xf32>
    %14 = vector.broadcast %11 : vector<152x1xf32> to vector<152x384xf32>
    %15 = arith.subf %13, %14 : vector<152x384xf32>
    %16 = math.absf %15 : vector<152x384xf32>
    %cst_7 = arith.constant 1.000000e+00 : f32
    %17 = vector.broadcast %cst_7 : f32 to vector<152x384xf32>
    %18 = arith.subf %17, %16 : vector<152x384xf32>
    %cst_8 = arith.constant 0.000000e+00 : f32
    %19 = vector.broadcast %cst_8 : f32 to vector<152x384xf32>
    %20 = arith.maximumf %18, %19 : vector<152x384xf32>
    %21 = vector.broadcast %10 : vector<1x384xf32> to vector<152x384xf32>
    %22 = vector.broadcast %12 : vector<152x1xf32> to vector<152x384xf32>
    %23 = arith.subf %21, %22 : vector<152x384xf32>
    %24 = math.absf %23 : vector<152x384xf32>
    %cst_9 = arith.constant 1.000000e+00 : f32
    %25 = vector.broadcast %cst_9 : f32 to vector<152x384xf32>
    %26 = arith.subf %25, %24 : vector<152x384xf32>
    %cst_10 = arith.constant 0.000000e+00 : f32
    %27 = vector.broadcast %cst_10 : f32 to vector<152x384xf32>
    %28 = arith.maximumf %26, %27 : vector<152x384xf32>
    %29 = arith.mulf %20, %28 : vector<152x384xf32>
    %c0_11 = arith.constant 0 : index
    %c0_12 = arith.constant 0 : index
    %30 = vector.load %arg5[%c0_11, %c0_12] : memref<152x1152xf32, #tpu.memory_space<vmem>>, vector<152x384xf32>
    tpu.vector_store %arg5[%c0_11, %c0_12], %29 {strides = array<i32>} : memref<152x1152xf32, #tpu.memory_space<vmem>>, vector<152x384xf32>,
    %31 = vector.extract_strided_slice %8 {offsets = [0, 2], sizes = [152, 1], strides = [1, 1]} : vector<152x6xf32> to vector<152x1xf32>
    %32 = vector.extract_strided_slice %8 {offsets = [0, 3], sizes = [152, 1], strides = [1, 1]} : vector<152x6xf32> to vector<152x1xf32>
    %33 = vector.broadcast %9 : vector<1x384xf32> to vector<152x384xf32>
    %34 = vector.broadcast %31 : vector<152x1xf32> to vector<152x384xf32>
    %35 = arith.subf %33, %34 : vector<152x384xf32>
    %36 = math.absf %35 : vector<152x384xf32>
    %cst_13 = arith.constant 1.000000e+00 : f32
    %37 = vector.broadcast %cst_13 : f32 to vector<152x384xf32>
    %38 = arith.subf %37, %36 : vector<152x384xf32>
    %cst_14 = arith.constant 0.000000e+00 : f32
    %39 = vector.broadcast %cst_14 : f32 to vector<152x384xf32>
    %40 = arith.maximumf %38, %39 : vector<152x384xf32>
    %41 = vector.broadcast %10 : vector<1x384xf32> to vector<152x384xf32>
    %42 = vector.broadcast %32 : vector<152x1xf32> to vector<152x384xf32>
    %43 = arith.subf %41, %42 : vector<152x384xf32>
    %44 = math.absf %43 : vector<152x384xf32>
    %cst_15 = arith.constant 1.000000e+00 : f32
    %45 = vector.broadcast %cst_15 : f32 to vector<152x384xf32>
    %46 = arith.subf %45, %44 : vector<152x384xf32>
    %cst_16 = arith.constant 0.000000e+00 : f32
    %47 = vector.broadcast %cst_16 : f32 to vector<152x384xf32>
    %48 = arith.maximumf %46, %47 : vector<152x384xf32>
    %49 = arith.mulf %40, %48 : vector<152x384xf32>
    %c0_17 = arith.constant 0 : index
    %c384 = arith.constant 384 : index
    %50 = vector.load %arg5[%c0_17, %c384] : memref<152x1152xf32, #tpu.memory_space<vmem>>, vector<152x384xf32>
    tpu.vector_store %arg5[%c0_17, %c384], %49 {strides = array<i32>} : memref<152x1152xf32, #tpu.memory_space<vmem>>, vector<152x384xf32>,
    %51 = vector.extract_strided_slice %8 {offsets = [0, 4], sizes = [152, 1], strides = [1, 1]} : vector<152x6xf32> to vector<152x1xf32>
    %52 = vector.extract_strided_slice %8 {offsets = [0, 5], sizes = [152, 1], strides = [1, 1]} : vector<152x6xf32> to vector<152x1xf32>
    %53 = vector.broadcast %9 : vector<1x384xf32> to vector<152x384xf32>
    %54 = vector.broadcast %51 : vector<152x1xf32> to vector<152x384xf32>
    %55 = arith.subf %53, %54 : vector<152x384xf32>
    %56 = math.absf %55 : vector<152x384xf32>
    %cst_18 = arith.constant 1.000000e+00 : f32
    %57 = vector.broadcast %cst_18 : f32 to vector<152x384xf32>
    %58 = arith.subf %57, %56 : vector<152x384xf32>
    %cst_19 = arith.constant 0.000000e+00 : f32
    %59 = vector.broadcast %cst_19 : f32 to vector<152x384xf32>
    %60 = arith.maximumf %58, %59 : vector<152x384xf32>
    %61 = vector.broadcast %10 : vector<1x384xf32> to vector<152x384xf32>
    %62 = vector.broadcast %52 : vector<152x1xf32> to vector<152x384xf32>
    %63 = arith.subf %61, %62 : vector<152x384xf32>
    %64 = math.absf %63 : vector<152x384xf32>
    %cst_20 = arith.constant 1.000000e+00 : f32
    %65 = vector.broadcast %cst_20 : f32 to vector<152x384xf32>
    %66 = arith.subf %65, %64 : vector<152x384xf32>
    %cst_21 = arith.constant 0.000000e+00 : f32
    %67 = vector.broadcast %cst_21 : f32 to vector<152x384xf32>
    %68 = arith.maximumf %66, %67 : vector<152x384xf32>
    %69 = arith.mulf %60, %68 : vector<152x384xf32>
    %c0_22 = arith.constant 0 : index
    %c768 = arith.constant 768 : index
    %70 = vector.load %arg5[%c0_22, %c768] : memref<152x1152xf32, #tpu.memory_space<vmem>>, vector<152x384xf32>
    tpu.vector_store %arg5[%c0_22, %c768], %69 {strides = array<i32>} : memref<152x1152xf32, #tpu.memory_space<vmem>>, vector<152x384xf32>,
    %c0_23 = arith.constant 0 : index
    %c0_24 = arith.constant 0 : index
    %71 = vector.load %arg5[%c0_23, %c0_24] : memref<152x1152xf32, #tpu.memory_space<vmem>>, vector<152x1152xf32>
    %c0_25 = arith.constant 0 : index
    %c0_26 = arith.constant 0 : index
    %72 = vector.load %arg3[%c0_25, %c0_26] : memref<1152x128xf32, #tpu.memory_space<vmem>>, vector<1152x128xf32>
    %cst_27 = arith.constant dense<0.000000e+00> : vector<152x128xf32>
    %73 = tpu.matmul %71, %72, %cst_27 {dimension_numbers = #tpu.dot_dimension_numbers<[1], [0], [0], [1], [0, 0, 1, 1], [], []>} : vector<152x1152xf32>, vector<1152x128xf32>, vector<152x128xf32> -> vector<152x128xf32>
    %c0_28 = arith.constant 0 : index
    %c0_29 = arith.constant 0 : index
    %74 = vector.load %arg4[%c0_28, %c0_29] : memref<152x128xf32, #tpu.memory_space<vmem>>, vector<152x128xf32>
    tpu.vector_store %arg4[%c0_28, %c0_29], %73 {strides = array<i32>} : memref<152x128xf32, #tpu.memory_space<vmem>>, vector<152x128xf32>,
    return
  }
  func.func @transform_0(%arg0: i32) -> (i32, i32) {
    %c0_i32 = arith.constant 0 : i32
    %c0_i32_0 = arith.constant 0 : i32
    return %arg0, %c0_i32 : i32, i32
  }
  func.func @transform_1(%arg0: i32) -> (i32, i32) {
    %c0_i32 = arith.constant 0 : i32
    %c0_i32_0 = arith.constant 0 : i32
    %c0_i32_1 = arith.constant 0 : i32
    return %c0_i32, %c0_i32_0 : i32, i32
  }
  func.func @transform_2(%arg0: i32) -> (i32, i32) {
    %c0_i32 = arith.constant 0 : i32
    %c0_i32_0 = arith.constant 0 : i32
    %c0_i32_1 = arith.constant 0 : i32
    return %c0_i32, %c0_i32_0 : i32, i32
  }
  func.func @transform_3(%arg0: i32) -> (i32, i32) {
    %c0_i32 = arith.constant 0 : i32
    %c0_i32_0 = arith.constant 0 : i32
    return %arg0, %c0_i32 : i32, i32
  }
}

</mosaic_0001>

<llo_original>
// kernel: tpu_custom_call.1
$region0: #{tpu_custom_call.1}
  #allocation0 [shape = 'u32[]', space=smem, size = 0x4, offset = 0x4, fixed_abs, tag = 'smem constant byte address 0x4 - core index']
  #allocation1 [shape = 'u32[144,128]{1,0:T(1,128)}', space=vmem, size = 0x12000, scoped, tag = 'internal scratch']
  #allocation2 [shape = 'f32[152,1152]{1,0:T(8,128)}', space=vmem, size = 0xab000, scoped, tag = 'scratch operand']
  %s0 = inlined_call_operand.vmem [shape: f32[304,6], index: 0, kind: input, shape index: {}]
  %s1 = inlined_call_operand.vmem [shape: f32[2,384], index: 1, kind: input, shape index: {}]
  %s2 = inlined_call_operand.hbm [shape: f32[1152,128], index: 2, kind: input, shape index: {}]
  %s3 = inlined_call_operand.hbm [shape: f32[304,128], index: 3, kind: output, shape index: {}]
  %s4 = sld [smem:[#allocation0]]
  $region49: #{tpu_custom_call.1} parent=0
    _
  %s6 = ssub.s32 1, %s4
  %s7 = scalar_select 0, %s6, %s4
  $region1: #{tpu_custom_call.1} parent=0
    #allocation3 [shape = 'u8[589824]{0}', space=vmem, size = 0x90000, scoped, tag = 'input window, operand 2, single buffered']
    #allocation4 [shape = 's32[2]{0}', space=sflag, size = 0x8, scoped, tag = 'scoped memory for tpu_custom_call.1']
    #allocation5 [shape = 's32[2]{0}', space=sflag, size = 0x8, scoped, tag = 'scoped memory for tpu_custom_call.1']
    #allocation6 [shape = 'u8[155648]{0}', space=vmem, size = 0x26000, scoped, tag = 'output window, operand 0']
    %8 = vsyncpa [#allocation4], 0
    %9 = vsyncpa [#allocation5], 0
    %s10 = scalar_lea.sflag [#allocation5], 1
    %11 = vsyncpa %s10, 0
    loop: start=0, step=1, limit=4
    $region2: #{tpu_custom_call.1} parent=1 // loop_pre_header
      _
    $region3: #{tpu_custom_call.1} parent=1 // loop_header
      %s13 = sphi 0, %s17
      %p14 = scmp.ge.s32.totalorder %s13, 4
      %s23 = sphi 0, %s25
      %s26 = sphi 0, %s23
      %s27 = sphi 0, %s26
      %s43 = sphi 0, %s27
      %s47 = sphi 0, %s47
      %s49 = sphi 0, %s47
      %s50 = sphi 0, %s49
      %s64 = sphi 0, %s50
      %s68 = sphi 0, %s68
      %s70 = sphi 0, %s68
      %s71 = sphi 0, %s70
      %s85 = sphi 0, %s71
      %s91 = sphi 0, %s93
      %s94 = sphi 0, %s91
      %s95 = sphi 0, %s94
      %s111 = sphi 0, %s95
    $region4: #{tpu_custom_call.1} parent=1 // loop_header_branch
      %16 = sbr.rel (%p14) target = $region8
    $region5: #{tpu_custom_call.1} parent=1 // loop_body
      %s18 = ssub.s32 %s13, 1
      %s19 = ssub.s32 %s13, 2
      %s20 = sadd.s32 %s13, 1
      %s21 = ssub.s32 %s13, %s20
      %p22 = scmp.eq.s32.totalorder %s21, 0
      %s24 = sadd.s32 %s23, 1
      %s25 = scalar_select %p22, %s23, %s24
      %p28 = pneg %p22
      %p29 = scmp.eq.s32.totalorder %s13, 1
      %p30 = por %p28, %p29
      %p31 = scmp.ne.s32.totalorder %s23, %s26
      %p32 = scmp.eq.s32.totalorder %s13, 0
      %p33 = por %p31, %p32
      %p34 = scmp.ne.s32.totalorder %s23, %s26
      %p35 = scmp.eq.s32.totalorder %s18, 1
      %p36 = por %p34, %p35
      %p37 = scmp.ne.s32.totalorder %s26, %s27
      %p38 = scmp.eq.s32.totalorder %s18, 0
      %p39 = por %p37, %p38
      %p40 = scmp.ne.s32.totalorder %s26, %s27
      %p41 = scmp.eq.s32.totalorder %s19, 1
      %p42 = por %p40, %p41
      %p44 = scmp.ne.s32.totalorder %s27, %s43
      %p45 = scmp.eq.s32.totalorder %s19, 0
      %p46 = por %p44, %p45
      %s48 = sadd.s32 %s47, 1
      %p51 = scmp.eq.s32.totalorder %s13, 1
      %p52 = scmp.ne.s32.totalorder %s47, %s49
      %p53 = scmp.eq.s32.totalorder %s13, 0
      %p54 = por %p52, %p53
      %p55 = scmp.ne.s32.totalorder %s47, %s49
      %p56 = scmp.eq.s32.totalorder %s18, 1
      %p57 = por %p55, %p56
      %p58 = scmp.ne.s32.totalorder %s49, %s50
      %p59 = scmp.eq.s32.totalorder %s18, 0
      %p60 = por %p58, %p59
      %p61 = scmp.ne.s32.totalorder %s49, %s50
      %p62 = scmp.eq.s32.totalorder %s19, 1
      %p63 = por %p61, %p62
      %p65 = scmp.ne.s32.totalorder %s50, %s64
      %p66 = scmp.eq.s32.totalorder %s19, 0
      %p67 = por %p65, %p66
      %s69 = sadd.s32 %s68, 1
      %p72 = scmp.eq.s32.totalorder %s13, 1
      %p73 = scmp.ne.s32.totalorder %s68, %s70
      %p74 = scmp.eq.s32.totalorder %s13, 0
      %p75 = por %p73, %p74
      %p76 = scmp.ne.s32.totalorder %s68, %s70
      %p77 = scmp.eq.s32.totalorder %s18, 1
      %p78 = por %p76, %p77
      %p79 = scmp.ne.s32.totalorder %s70, %s71
      %p80 = scmp.eq.s32.totalorder %s18, 0
      %p81 = por %p79, %p80
      %p82 = scmp.ne.s32.totalorder %s70, %s71
      %p83 = scmp.eq.s32.totalorder %s19, 1
      %p84 = por %p82, %p83
      %p86 = scmp.ne.s32.totalorder %s71, %s85
      %p87 = scmp.eq.s32.totalorder %s19, 0
      %p88 = por %p86, %p87
      %s89 = ssub.s32 %s13, %s20
      %p90 = scmp.eq.s32.totalorder %s89, 0
      %s92 = sadd.s32 %s91, 1
      %s93 = scalar_select %p90, %s91, %s92
      %p96 = pneg %p90
      %p97 = scmp.eq.s32.totalorder %s13, 1
      %p98 = por %p96, %p97
      %p99 = scmp.ne.s32.totalorder %s91, %s94
      %p100 = scmp.eq.s32.totalorder %s13, 0
      %p101 = por %p99, %p100
      %p102 = scmp.ne.s32.totalorder %s91, %s94
      %p103 = scmp.eq.s32.totalorder %s18, 1
      %p104 = por %p102, %p103
      %p105 = scmp.ne.s32.totalorder %s94, %s95
      %p106 = scmp.eq.s32.totalorder %s18, 0
      %p107 = por %p105, %p106
      %p108 = scmp.ne.s32.totalorder %s94, %s95
      %p109 = scmp.eq.s32.totalorder %s19, 1
      %p110 = por %p108, %p109
      %p112 = scmp.ne.s32.totalorder %s95, %s111
      %p113 = scmp.eq.s32.totalorder %s19, 0
      %p114 = por %p112, %p113
      %p115 = scmp.le.s32.totalorder 1, %s13
      %p116 = scmp.lt.s32.totalorder %s13, 3
      %p117 = pnand %p115, %p116
      %p118 = pneg %p117
      // Predicated region
      $region9: #{tpu_custom_call.1} parent=5 // pred_check
        _
      $region10: #{tpu_custom_call.1} parent=5 // pred_check_branch
        %120 = sbr.rel (%p117) target = $region12
      $region11: #{tpu_custom_call.1} parent=5 // pred_region
        %s121 = ssub.s32 %s13, 1
        // Predicated region
        $region13: #{tpu_custom_call.1} parent=11 // pred_check
          %p122 = pneg %p60
        $region14: #{tpu_custom_call.1} parent=11 // pred_check_branch
          %124 = sbr.rel (%p122) target = $region16
        $region15: #{tpu_custom_call.1} parent=11 // pred_region
          _
        $region16: #{tpu_custom_call.1} parent=11 // pred_fallthru
          _
        // Predicated region
        $region17: #{tpu_custom_call.1} parent=11 // pred_check
          %p125 = pneg %p81
        $region18: #{tpu_custom_call.1} parent=11 // pred_check_branch
          %127 = sbr.rel (%p125) target = $region20
        $region19: #{tpu_custom_call.1} parent=11 // pred_region
          %s129 = ssub.s32 18432, 18432
          %130 = vsyncadd [#allocation4], %s129
          %s131 = sshll.u32 [#allocation3], 4
          %s132 = int_to_ptr.vmem [resolvable:$true] %s131
          %137 = dma.hbm_to_vmem [thread:$0]  %s2, 18432, %s132, [#allocation4], 128, 128, 8
        $region20: #{tpu_custom_call.1} parent=11 // pred_fallthru
          _
      $region12: #{tpu_custom_call.1} parent=5 // pred_fallthru
        _
      %p138 = scmp.lt.s32.totalorder %s13, 2
      // Predicated region
      $region21: #{tpu_custom_call.1} parent=5 // pred_check
        %p139 = pneg %p138
      $region22: #{tpu_custom_call.1} parent=5 // pred_check_branch
        %141 = sbr.rel (%p139) target = $region24
      $region23: #{tpu_custom_call.1} parent=5 // pred_region
        // Predicated region
        $region25: #{tpu_custom_call.1} parent=23 // pred_check
          %p142 = pneg %p33
        $region26: #{tpu_custom_call.1} parent=23 // pred_check_branch
          %144 = sbr.rel (%p142) target = $region28
        $region27: #{tpu_custom_call.1} parent=23 // pred_region
          %s145 = smul.u32 19, %s13
          %p146 = scmp.lt.s32.totalorder %s145, 37
          %s147 = scalar_select %p146, %s145, 37
          %s148 = smul.addr %s147, 8
          %s149 = scalar_lea.vmem %s0, %s148
          %s150 = smul.u32 19, %s13
        $region28: #{tpu_custom_call.1} parent=23 // pred_fallthru
          _
      $region24: #{tpu_custom_call.1} parent=5 // pred_fallthru
        _
      %p151 = scmp.le.s32.totalorder 1, %s13
      %p152 = scmp.lt.s32.totalorder %s13, 3
      %p153 = pnand %p151, %p152
      %p154 = pneg %p153
      // Predicated region
      $region29: #{tpu_custom_call.1} parent=5 // pred_check
        _
      $region30: #{tpu_custom_call.1} parent=5 // pred_check_branch
        %156 = sbr.rel (%p153) target = $region32
      $region31: #{tpu_custom_call.1} parent=5 // pred_region
        %s157 = ssub.s32 %s13, 1
        // Predicated region
        $region33: #{tpu_custom_call.1} parent=31 // pred_check
          %p158 = pneg %p81
        $region34: #{tpu_custom_call.1} parent=31 // pred_check_branch
          %160 = sbr.rel (%p158) target = $region36
        $region35: #{tpu_custom_call.1} parent=31 // pred_region
          %161 = dma.done [#allocation4], 18432
        $region36: #{tpu_custom_call.1} parent=31 // pred_fallthru
          _
        %s162 = smul.u32 19, %s18
        %p163 = scmp.lt.s32.totalorder %s162, 37
        %s164 = scalar_select %p163, %s162, 37
        %s165 = smul.addr %s164, 8
        %s166 = scalar_lea.vmem %s0, %s165
        %p167 = pneg %p39
        %p168 = pneg %p36
        %p169 = pneg %p60
        %p170 = pneg %p57
        %p171 = pneg %p81
        %p172 = pneg %p78
        %p173 = pneg %p107
        %p174 = pneg %p104
        %s175 = sand.u32 %s94, 1
        %s176 = scalar_lea.sflag [#allocation5], %s175
        %s177 = sand.u32 %s94, 1
        %s178 = smul.addr %s177, 152
        %s179 = scalar_lea.vmem [#allocation6], %s178
        %s180 = smul.u32 19, %s18
        %p181 = scmp.lt.s32.totalorder %s180, 37
        %s182 = scalar_select %p181, %s180, 37
        %s183 = smul.addr %s182, 8
        %s184 = scalar_lea.vmem %s0, %s183
        %s185 = smul.u32 19, %s18
        %s186 = smul.u32 19, %s18
        %v187 = vld [vmem:[%s184] sm:$0xff]
        %v188 = vld [vmem:[%s184 + $0x8] sm:$0xff]
        %v189 = vld [vmem:[%s184 + $0x10] sm:$0xff]
        %v190 = vld [vmem:[%s184 + $0x18] sm:$0xff]
        %v191 = vld [vmem:[%s184 + $0x20] sm:$0xff]
        %v192 = vld [vmem:[%s184 + $0x28] sm:$0xff]
        %v193 = vld [vmem:[%s184 + $0x30] sm:$0xff]
        %v194 = vld [vmem:[%s184 + $0x38] sm:$0xff]
        %v195 = vld [vmem:[%s184 + $0x40] sm:$0xff]
        %v196 = vld [vmem:[%s184 + $0x48] sm:$0xff]
        %v197 = vld [vmem:[%s184 + $0x50] sm:$0xff]
        %v198 = vld [vmem:[%s184 + $0x58] sm:$0xff]
        %v199 = vld [vmem:[%s184 + $0x60] sm:$0xff]
        %v200 = vld [vmem:[%s184 + $0x68] sm:$0xff]
        %v201 = vld [vmem:[%s184 + $0x70] sm:$0xff]
        %v202 = vld [vmem:[%s184 + $0x78] sm:$0xff]
        %v203 = vld [vmem:[%s184 + $0x80] sm:$0xff]
        %v204 = vld [vmem:[%s184 + $0x88] sm:$0xff]
        %v205 = vld [vmem:[%s184 + $0x90] sm:$0xff]
        %v206 = vadd.f32 %v187, 1.0
        %v207 = vadd.f32 %v188, 1.0
        %v208 = vadd.f32 %v189, 1.0
        %v209 = vadd.f32 %v190, 1.0
        %v210 = vadd.f32 %v191, 1.0
        %v211 = vadd.f32 %v192, 1.0
        %v212 = vadd.f32 %v193, 1.0
        %v213 = vadd.f32 %v194, 1.0
        %v214 = vadd.f32 %v195, 1.0
        %v215 = vadd.f32 %v196, 1.0
        %v216 = vadd.f32 %v197, 1.0
        %v217 = vadd.f32 %v198, 1.0
        %v218 = vadd.f32 %v199, 1.0
        %v219 = vadd.f32 %v200, 1.0
        %v220 = vadd.f32 %v201, 1.0
        %v221 = vadd.f32 %v202, 1.0
        %v222 = vadd.f32 %v203, 1.0
        %v223 = vadd.f32 %v204, 1.0
        %v224 = vadd.f32 %v205, 1.0
        %v225 = vmul.f32 %v206, 8.0
        %v226 = vmul.f32 %v207, 8.0
        %v227 = vmul.f32 %v208, 8.0
        %v228 = vmul.f32 %v209, 8.0
        %v229 = vmul.f32 %v210, 8.0
        %v230 = vmul.f32 %v211, 8.0
        %v231 = vmul.f32 %v212, 8.0
        %v232 = vmul.f32 %v213, 8.0
        %v233 = vmul.f32 %v214, 8.0
        %v234 = vmul.f32 %v215, 8.0
        %v235 = vmul.f32 %v216, 8.0
        %v236 = vmul.f32 %v217, 8.0
        %v237 = vmul.f32 %v218, 8.0
        %v238 = vmul.f32 %v219, 8.0
        %v239 = vmul.f32 %v220, 8.0
        %v240 = vmul.f32 %v221, 8.0
        %v241 = vmul.f32 %v222, 8.0
        %v242 = vmul.f32 %v223, 8.0
        %v243 = vmul.f32 %v224, 8.0
        %v244 = vmax.f32 %v225, 0.0
        %v245 = vmax.f32 %v226, 0.0
        %v246 = vmax.f32 %v227, 0.0
        %v247 = vmax.f32 %v228, 0.0
        %v248 = vmax.f32 %v229, 0.0
        %v249 = vmax.f32 %v230, 0.0
        %v250 = vmax.f32 %v231, 0.0
        %v251 = vmax.f32 %v232, 0.0
        %v252 = vmax.f32 %v233, 0.0
        %v253 = vmax.f32 %v234, 0.0
        %v254 = vmax.f32 %v235, 0.0
        %v255 = vmax.f32 %v236, 0.0
        %v256 = vmax.f32 %v237, 0.0
        %v257 = vmax.f32 %v238, 0.0
        %v258 = vmax.f32 %v239, 0.0
        %v259 = vmax.f32 %v240, 0.0
        %v260 = vmax.f32 %v241, 0.0
        %v261 = vmax.f32 %v242, 0.0
        %v262 = vmax.f32 %v243, 0.0
        %v263 = vmin.f32 %v244, 16.0
        %v264 = vmin.f32 %v245, 16.0
        %v265 = vmin.f32 %v246, 16.0
        %v266 = vmin.f32 %v247, 16.0
        %v267 = vmin.f32 %v248, 16.0
        %v268 = vmin.f32 %v249, 16.0
        %v269 = vmin.f32 %v250, 16.0
        %v270 = vmin.f32 %v251, 16.0
        %v271 = vmin.f32 %v252, 16.0
        %v272 = vmin.f32 %v253, 16.0
        %v273 = vmin.f32 %v254, 16.0
        %v274 = vmin.f32 %v255, 16.0
        %v275 = vmin.f32 %v256, 16.0
        %v276 = vmin.f32 %v257, 16.0
        %v277 = vmin.f32 %v258, 16.0
        %v278 = vmin.f32 %v259, 16.0
        %v279 = vmin.f32 %v260, 16.0
        %v280 = vmin.f32 %v261, 16.0
        %v281 = vmin.f32 %v262, 16.0
        %v282 = vld [vmem:[%s1] ss:$2 sm:$0x7]
        %s283 = scalar_lea.vmem %s1, 1
        %v284 = vld [vmem:[%s283] ss:$2 sm:$0x7]
        %v286 = vlaneseq
        %v287 = vshrl.u32 %v286, 7
        %v288 = vsub.s32 0, %v287
        %v289 = vrot.slane %v282, %v288
        %v290 = vlaneseq
        %v291 = vshrl.u32 %v290, 7
        %v292 = vsub.s32 1, %v291
        %v293 = vrot.slane %v282, %v292
        %v294 = vlaneseq
        %v295 = vshrl.u32 %v294, 7
        %v296 = vsub.s32 2, %v295
        %v297 = vrot.slane %v282, %v296
        %302 = vset.pattern.permute.xlu0 0
        %303 = vperm.xlu0 %302, %v263
        %v304 = vpop.permute.xlu0 %303
        %307 = vset.pattern.permute.xlu0 0
        %308 = vperm.xlu0 %307, %v264
        %v309 = vpop.permute.xlu0 %308
        %312 = vset.pattern.permute.xlu0 0
        %313 = vperm.xlu0 %312, %v265
        %v314 = vpop.permute.xlu0 %313
        %317 = vset.pattern.permute.xlu0 0
        %318 = vperm.xlu0 %317, %v266
        %v319 = vpop.permute.xlu0 %318
        %322 = vset.pattern.permute.xlu0 0
        %323 = vperm.xlu0 %322, %v267
        %v324 = vpop.permute.xlu0 %323
        %327 = vset.pattern.permute.xlu0 0
        %328 = vperm.xlu0 %327, %v268
        %v329 = vpop.permute.xlu0 %328
        %332 = vset.pattern.permute.xlu0 0
        %333 = vperm.xlu0 %332, %v269
        %v334 = vpop.permute.xlu0 %333
        %337 = vset.pattern.permute.xlu0 0
        %338 = vperm.xlu0 %337, %v270
        %v339 = vpop.permute.xlu0 %338
        %342 = vset.pattern.permute.xlu0 0
        %343 = vperm.xlu0 %342, %v271
        %v344 = vpop.permute.xlu0 %343
        %347 = vset.pattern.permute.xlu0 0
        %348 = vperm.xlu0 %347, %v272
        %v349 = vpop.permute.xlu0 %348
        %352 = vset.pattern.permute.xlu0 0
        %353 = vperm.xlu0 %352, %v273
        %v354 = vpop.permute.xlu0 %353
        %357 = vset.pattern.permute.xlu0 0
        %358 = vperm.xlu0 %357, %v274
        %v359 = vpop.permute.xlu0 %358
        %362 = vset.pattern.permute.xlu0 0
        %363 = vperm.xlu0 %362, %v275
        %v364 = vpop.permute.xlu0 %363
        %367 = vset.pattern.permute.xlu0 0
        %368 = vperm.xlu0 %367, %v276
        %v369 = vpop.permute.xlu0 %368
        %372 = vset.pattern.permute.xlu0 0
        %373 = vperm.xlu0 %372, %v277
        %v374 = vpop.permute.xlu0 %373
        %377 = vset.pattern.permute.xlu0 0
        %378 = vperm.xlu0 %377, %v278
        %v379 = vpop.permute.xlu0 %378
        %382 = vset.pattern.permute.xlu0 0
        %383 = vperm.xlu0 %382, %v279
        %v384 = vpop.permute.xlu0 %383
        %387 = vset.pattern.permute.xlu0 0
        %388 = vperm.xlu0 %387, %v280
        %v389 = vpop.permute.xlu0 %388
        %392 = vset.pattern.permute.xlu0 0
        %393 = vperm.xlu0 %392, %v281
        %v394 = vpop.permute.xlu0 %393
        %v396 = vsub.f32 %v289, %v304
        %v397 = vsub.f32 %v293, %v304
        %v398 = vsub.f32 %v297, %v304
        %v399 = vsub.f32 %v289, %v309
        %v400 = vsub.f32 %v293, %v309
        %v401 = vsub.f32 %v297, %v309
        %v402 = vsub.f32 %v289, %v314
        %v403 = vsub.f32 %v293, %v314
        %v404 = vsub.f32 %v297, %v314
        %v405 = vsub.f32 %v289, %v319
        %v406 = vsub.f32 %v293, %v319
        %v407 = vsub.f32 %v297, %v319
        %v408 = vsub.f32 %v289, %v324
        %v409 = vsub.f32 %v293, %v324
        %v410 = vsub.f32 %v297, %v324
        %v411 = vsub.f32 %v289, %v329
        %v412 = vsub.f32 %v293, %v329
        %v413 = vsub.f32 %v297, %v329
        %v414 = vsub.f32 %v289, %v334
        %v415 = vsub.f32 %v293, %v334
        %v416 = vsub.f32 %v297, %v334
        %v417 = vsub.f32 %v289, %v339
        %v418 = vsub.f32 %v293, %v339
        %v419 = vsub.f32 %v297, %v339
        %v420 = vsub.f32 %v289, %v344
        %v421 = vsub.f32 %v293, %v344
        %v422 = vsub.f32 %v297, %v344
        %v423 = vsub.f32 %v289, %v349
        %v424 = vsub.f32 %v293, %v349
        %v425 = vsub.f32 %v297, %v349
        %v426 = vsub.f32 %v289, %v354
        %v427 = vsub.f32 %v293, %v354
        %v428 = vsub.f32 %v297, %v354
        %v429 = vsub.f32 %v289, %v359
        %v430 = vsub.f32 %v293, %v359
        %v431 = vsub.f32 %v297, %v359
        %v432 = vsub.f32 %v289, %v364
        %v433 = vsub.f32 %v293, %v364
        %v434 = vsub.f32 %v297, %v364
        %v435 = vsub.f32 %v289, %v369
        %v436 = vsub.f32 %v293, %v369
        %v437 = vsub.f32 %v297, %v369
        %v438 = vsub.f32 %v289, %v374
        %v439 = vsub.f32 %v293, %v374
        %v440 = vsub.f32 %v297, %v374
        %v441 = vsub.f32 %v289, %v379
        %v442 = vsub.f32 %v293, %v379
        %v443 = vsub.f32 %v297, %v379
        %v444 = vsub.f32 %v289, %v384
        %v445 = vsub.f32 %v293, %v384
        %v446 = vsub.f32 %v297, %v384
        %v447 = vsub.f32 %v289, %v389
        %v448 = vsub.f32 %v293, %v389
        %v449 = vsub.f32 %v297, %v389
        %v450 = vsub.f32 %v289, %v394
        %v451 = vsub.f32 %v293, %v394
        %v452 = vsub.f32 %v297, %v394
        %v453 = vand.u32 2147483647, %v396
        %v454 = vand.u32 2147483647, %v397
        %v455 = vand.u32 2147483647, %v398
        %v456 = vand.u32 2147483647, %v399
        %v457 = vand.u32 2147483647, %v400
        %v458 = vand.u32 2147483647, %v401
        %v459 = vand.u32 2147483647, %v402
        %v460 = vand.u32 2147483647, %v403
        %v461 = vand.u32 2147483647, %v404
        %v462 = vand.u32 2147483647, %v405
        %v463 = vand.u32 2147483647, %v406
        %v464 = vand.u32 2147483647, %v407
        %v465 = vand.u32 2147483647, %v408
        %v466 = vand.u32 2147483647, %v409
        %v467 = vand.u32 2147483647, %v410
        %v468 = vand.u32 2147483647, %v411
        %v469 = vand.u32 2147483647, %v412
        %v470 = vand.u32 2147483647, %v413
        %v471 = vand.u32 2147483647, %v414
        %v472 = vand.u32 2147483647, %v415
        %v473 = vand.u32 2147483647, %v416
        %v474 = vand.u32 2147483647, %v417
        %v475 = vand.u32 2147483647, %v418
        %v476 = vand.u32 2147483647, %v419
        %v477 = vand.u32 2147483647, %v420
        %v478 = vand.u32 2147483647, %v421
        %v479 = vand.u32 2147483647, %v422
        %v480 = vand.u32 2147483647, %v423
        %v481 = vand.u32 2147483647, %v424
        %v482 = vand.u32 2147483647, %v425
        %v483 = vand.u32 2147483647, %v426
        %v484 = vand.u32 2147483647, %v427
        %v485 = vand.u32 2147483647, %v428
        %v486 = vand.u32 2147483647, %v429
        %v487 = vand.u32 2147483647, %v430
        %v488 = vand.u32 2147483647, %v431
        %v489 = vand.u32 2147483647, %v432
        %v490 = vand.u32 2147483647, %v433
        %v491 = vand.u32 2147483647, %v434
        %v492 = vand.u32 2147483647, %v435
        %v493 = vand.u32 2147483647, %v436
        %v494 = vand.u32 2147483647, %v437
        %v495 = vand.u32 2147483647, %v438
        %v496 = vand.u32 2147483647, %v439
        %v497 = vand.u32 2147483647, %v440
        %v498 = vand.u32 2147483647, %v441
        %v499 = vand.u32 2147483647, %v442
        %v500 = vand.u32 2147483647, %v443
        %v501 = vand.u32 2147483647, %v444
        %v502 = vand.u32 2147483647, %v445
        %v503 = vand.u32 2147483647, %v446
        %v504 = vand.u32 2147483647, %v447
        %v505 = vand.u32 2147483647, %v448
        %v506 = vand.u32 2147483647, %v449
        %v507 = vand.u32 2147483647, %v450
        %v508 = vand.u32 2147483647, %v451
        %v509 = vand.u32 2147483647, %v452
        %v510 = vsub.f32 1.0, %v453
        %v511 = vsub.f32 1.0, %v454
        %v512 = vsub.f32 1.0, %v455
        %v513 = vsub.f32 1.0, %v456
        %v514 = vsub.f32 1.0, %v457
        %v515 = vsub.f32 1.0, %v458
        %v516 = vsub.f32 1.0, %v459
        %v517 = vsub.f32 1.0, %v460
        %v518 = vsub.f32 1.0, %v461
        %v519 = vsub.f32 1.0, %v462
        %v520 = vsub.f32 1.0, %v463
        %v521 = vsub.f32 1.0, %v464
        %v522 = vsub.f32 1.0, %v465
        %v523 = vsub.f32 1.0, %v466
        %v524 = vsub.f32 1.0, %v467
        %v525 = vsub.f32 1.0, %v468
        %v526 = vsub.f32 1.0, %v469
        %v527 = vsub.f32 1.0, %v470
        %v528 = vsub.f32 1.0, %v471
        %v529 = vsub.f32 1.0, %v472
        %v530 = vsub.f32 1.0, %v473
        %v531 = vsub.f32 1.0, %v474
        %v532 = vsub.f32 1.0, %v475
        %v533 = vsub.f32 1.0, %v476
        %v534 = vsub.f32 1.0, %v477
        %v535 = vsub.f32 1.0, %v478
        %v536 = vsub.f32 1.0, %v479
        %v537 = vsub.f32 1.0, %v480
        %v538 = vsub.f32 1.0, %v481
        %v539 = vsub.f32 1.0, %v482
        %v540 = vsub.f32 1.0, %v483
        %v541 = vsub.f32 1.0, %v484
        %v542 = vsub.f32 1.0, %v485
        %v543 = vsub.f32 1.0, %v486
        %v544 = vsub.f32 1.0, %v487
        %v545 = vsub.f32 1.0, %v488
        %v546 = vsub.f32 1.0, %v489
        %v547 = vsub.f32 1.0, %v490
        %v548 = vsub.f32 1.0, %v491
        %v549 = vsub.f32 1.0, %v492
        %v550 = vsub.f32 1.0, %v493
        %v551 = vsub.f32 1.0, %v494
        %v552 = vsub.f32 1.0, %v495
        %v553 = vsub.f32 1.0, %v496
        %v554 = vsub.f32 1.0, %v497
        %v555 = vsub.f32 1.0, %v498
        %v556 = vsub.f32 1.0, %v499
        %v557 = vsub.f32 1.0, %v500
        %v558 = vsub.f32 1.0, %v501
        %v559 = vsub.f32 1.0, %v502
        %v560 = vsub.f32 1.0, %v503
        %v561 = vsub.f32 1.0, %v504
        %v562 = vsub.f32 1.0, %v505
        %v563 = vsub.f32 1.0, %v506
        %v564 = vsub.f32 1.0, %v507
        %v565 = vsub.f32 1.0, %v508
        %v566 = vsub.f32 1.0, %v509
        %v567 = vmax.f32 %v510, 0.0
        %v568 = vmax.f32 %v511, 0.0
        %v569 = vmax.f32 %v512, 0.0
        %v570 = vmax.f32 %v513, 0.0
        %v571 = vmax.f32 %v514, 0.0
        %v572 = vmax.f32 %v515, 0.0
        %v573 = vmax.f32 %v516, 0.0
        %v574 = vmax.f32 %v517, 0.0
        %v575 = vmax.f32 %v518, 0.0
        %v576 = vmax.f32 %v519, 0.0
        %v577 = vmax.f32 %v520, 0.0
        %v578 = vmax.f32 %v521, 0.0
        %v579 = vmax.f32 %v522, 0.0
        %v580 = vmax.f32 %v523, 0.0
        %v581 = vmax.f32 %v524, 0.0
        %v582 = vmax.f32 %v525, 0.0
        %v583 = vmax.f32 %v526, 0.0
        %v584 = vmax.f32 %v527, 0.0
        %v585 = vmax.f32 %v528, 0.0
        %v586 = vmax.f32 %v529, 0.0
        %v587 = vmax.f32 %v530, 0.0
        %v588 = vmax.f32 %v531, 0.0
        %v589 = vmax.f32 %v532, 0.0
        %v590 = vmax.f32 %v533, 0.0
        %v591 = vmax.f32 %v534, 0.0
        %v592 = vmax.f32 %v535, 0.0
        %v593 = vmax.f32 %v536, 0.0
        %v594 = vmax.f32 %v537, 0.0
        %v595 = vmax.f32 %v538, 0.0
        %v596 = vmax.f32 %v539, 0.0
        %v597 = vmax.f32 %v540, 0.0
        %v598 = vmax.f32 %v541, 0.0
        %v599 = vmax.f32 %v542, 0.0
        %v600 = vmax.f32 %v543, 0.0
        %v601 = vmax.f32 %v544, 0.0
        %v602 = vmax.f32 %v545, 0.0
        %v603 = vmax.f32 %v546, 0.0
        %v604 = vmax.f32 %v547, 0.0
        %v605 = vmax.f32 %v548, 0.0
        %v606 = vmax.f32 %v549, 0.0
        %v607 = vmax.f32 %v550, 0.0
        %v608 = vmax.f32 %v551, 0.0
        %v609 = vmax.f32 %v552, 0.0
        %v610 = vmax.f32 %v553, 0.0
        %v611 = vmax.f32 %v554, 0.0
        %v612 = vmax.f32 %v555, 0.0
        %v613 = vmax.f32 %v556, 0.0
        %v614 = vmax.f32 %v557, 0.0
        %v615 = vmax.f32 %v558, 0.0
        %v616 = vmax.f32 %v559, 0.0
        %v617 = vmax.f32 %v560, 0.0
        %v618 = vmax.f32 %v561, 0.0
        %v619 = vmax.f32 %v562, 0.0
        %v620 = vmax.f32 %v563, 0.0
        %v621 = vmax.f32 %v564, 0.0
        %v622 = vmax.f32 %v565, 0.0
        %v623 = vmax.f32 %v566, 0.0
        %v625 = vlaneseq
        %v626 = vshrl.u32 %v625, 7
        %v627 = vsub.s32 0, %v626
        %v628 = vrot.slane %v284, %v627
        %v629 = vlaneseq
        %v630 = vshrl.u32 %v629, 7
        %v631 = vsub.s32 1, %v630
        %v632 = vrot.slane %v284, %v631
        %v633 = vlaneseq
        %v634 = vshrl.u32 %v633, 7
        %v635 = vsub.s32 2, %v634
        %v636 = vrot.slane %v284, %v635
        %640 = vset.pattern.permute.xlu0 1
        %641 = vperm.xlu0 %640, %v263
        %v642 = vpop.permute.xlu0 %641
        %644 = vset.pattern.permute.xlu0 1
        %645 = vperm.xlu0 %644, %v264
        %v646 = vpop.permute.xlu0 %645
        %648 = vset.pattern.permute.xlu0 1
        %649 = vperm.xlu0 %648, %v265
        %v650 = vpop.permute.xlu0 %649
        %652 = vset.pattern.permute.xlu0 1
        %653 = vperm.xlu0 %652, %v266
        %v654 = vpop.permute.xlu0 %653
        %656 = vset.pattern.permute.xlu0 1
        %657 = vperm.xlu0 %656, %v267
        %v658 = vpop.permute.xlu0 %657
        %660 = vset.pattern.permute.xlu0 1
        %661 = vperm.xlu0 %660, %v268
        %v662 = vpop.permute.xlu0 %661
        %664 = vset.pattern.permute.xlu0 1
        %665 = vperm.xlu0 %664, %v269
        %v666 = vpop.permute.xlu0 %665
        %668 = vset.pattern.permute.xlu0 1
        %669 = vperm.xlu0 %668, %v270
        %v670 = vpop.permute.xlu0 %669
        %672 = vset.pattern.permute.xlu0 1
        %673 = vperm.xlu0 %672, %v271
        %v674 = vpop.permute.xlu0 %673
        %676 = vset.pattern.permute.xlu0 1
        %677 = vperm.xlu0 %676, %v272
        %v678 = vpop.permute.xlu0 %677
        %680 = vset.pattern.permute.xlu0 1
        %681 = vperm.xlu0 %680, %v273
        %v682 = vpop.permute.xlu0 %681
        %684 = vset.pattern.permute.xlu0 1
        %685 = vperm.xlu0 %684, %v274
        %v686 = vpop.permute.xlu0 %685
        %688 = vset.pattern.permute.xlu0 1
        %689 = vperm.xlu0 %688, %v275
        %v690 = vpop.permute.xlu0 %689
        %692 = vset.pattern.permute.xlu0 1
        %693 = vperm.xlu0 %692, %v276
        %v694 = vpop.permute.xlu0 %693
        %696 = vset.pattern.permute.xlu0 1
        %697 = vperm.xlu0 %696, %v277
        %v698 = vpop.permute.xlu0 %697
        %700 = vset.pattern.permute.xlu0 1
        %701 = vperm.xlu0 %700, %v278
        %v702 = vpop.permute.xlu0 %701
        %704 = vset.pattern.permute.xlu0 1
        %705 = vperm.xlu0 %704, %v279
        %v706 = vpop.permute.xlu0 %705
        %708 = vset.pattern.permute.xlu0 1
        %709 = vperm.xlu0 %708, %v280
        %v710 = vpop.permute.xlu0 %709
        %712 = vset.pattern.permute.xlu0 1
        %713 = vperm.xlu0 %712, %v281
        %v714 = vpop.permute.xlu0 %713
        %v716 = vsub.f32 %v628, %v642
        %v717 = vsub.f32 %v632, %v642
        %v718 = vsub.f32 %v636, %v642
        %v719 = vsub.f32 %v628, %v646
        %v720 = vsub.f32 %v632, %v646
        %v721 = vsub.f32 %v636, %v646
        %v722 = vsub.f32 %v628, %v650
        %v723 = vsub.f32 %v632, %v650
        %v724 = vsub.f32 %v636, %v650
        %v725 = vsub.f32 %v628, %v654
        %v726 = vsub.f32 %v632, %v654
        %v727 = vsub.f32 %v636, %v654
        %v728 = vsub.f32 %v628, %v658
        %v729 = vsub.f32 %v632, %v658
        %v730 = vsub.f32 %v636, %v658
        %v731 = vsub.f32 %v628, %v662
        %v732 = vsub.f32 %v632, %v662
        %v733 = vsub.f32 %v636, %v662
        %v734 = vsub.f32 %v628, %v666
        %v735 = vsub.f32 %v632, %v666
        %v736 = vsub.f32 %v636, %v666
        %v737 = vsub.f32 %v628, %v670
        %v738 = vsub.f32 %v632, %v670
        %v739 = vsub.f32 %v636, %v670
        %v740 = vsub.f32 %v628, %v674
        %v741 = vsub.f32 %v632, %v674
        %v742 = vsub.f32 %v636, %v674
        %v743 = vsub.f32 %v628, %v678
        %v744 = vsub.f32 %v632, %v678
        %v745 = vsub.f32 %v636, %v678
        %v746 = vsub.f32 %v628, %v682
        %v747 = vsub.f32 %v632, %v682
        %v748 = vsub.f32 %v636, %v682
        %v749 = vsub.f32 %v628, %v686
        %v750 = vsub.f32 %v632, %v686
        %v751 = vsub.f32 %v636, %v686
        %v752 = vsub.f32 %v628, %v690
        %v753 = vsub.f32 %v632, %v690
        %v754 = vsub.f32 %v636, %v690
        %v755 = vsub.f32 %v628, %v694
        %v756 = vsub.f32 %v632, %v694
        %v757 = vsub.f32 %v636, %v694
        %v758 = vsub.f32 %v628, %v698
        %v759 = vsub.f32 %v632, %v698
        %v760 = vsub.f32 %v636, %v698
        %v761 = vsub.f32 %v628, %v702
        %v762 = vsub.f32 %v632, %v702
        %v763 = vsub.f32 %v636, %v702
        %v764 = vsub.f32 %v628, %v706
        %v765 = vsub.f32 %v632, %v706
        %v766 = vsub.f32 %v636, %v706
        %v767 = vsub.f32 %v628, %v710
        %v768 = vsub.f32 %v632, %v710
        %v769 = vsub.f32 %v636, %v710
        %v770 = vsub.f32 %v628, %v714
        %v771 = vsub.f32 %v632, %v714
        %v772 = vsub.f32 %v636, %v714
        %v773 = vand.u32 2147483647, %v716
        %v774 = vand.u32 2147483647, %v717
        %v775 = vand.u32 2147483647, %v718
        %v776 = vand.u32 2147483647, %v719
        %v777 = vand.u32 2147483647, %v720
        %v778 = vand.u32 2147483647, %v721
        %v779 = vand.u32 2147483647, %v722
        %v780 = vand.u32 2147483647, %v723
        %v781 = vand.u32 2147483647, %v724
        %v782 = vand.u32 2147483647, %v725
        %v783 = vand.u32 2147483647, %v726
        %v784 = vand.u32 2147483647, %v727
        %v785 = vand.u32 2147483647, %v728
        %v786 = vand.u32 2147483647, %v729
        %v787 = vand.u32 2147483647, %v730
        %v788 = vand.u32 2147483647, %v731
        %v789 = vand.u32 2147483647, %v732
        %v790 = vand.u32 2147483647, %v733
        %v791 = vand.u32 2147483647, %v734
        %v792 = vand.u32 2147483647, %v735
        %v793 = vand.u32 2147483647, %v736
        %v794 = vand.u32 2147483647, %v737
        %v795 = vand.u32 2147483647, %v738
        %v796 = vand.u32 2147483647, %v739
        %v797 = vand.u32 2147483647, %v740
        %v798 = vand.u32 2147483647, %v741
        %v799 = vand.u32 2147483647, %v742
        %v800 = vand.u32 2147483647, %v743
        %v801 = vand.u32 2147483647, %v744
        %v802 = vand.u32 2147483647, %v745
        %v803 = vand.u32 2147483647, %v746
        %v804 = vand.u32 2147483647, %v747
        %v805 = vand.u32 2147483647, %v748
        %v806 = vand.u32 2147483647, %v749
        %v807 = vand.u32 2147483647, %v750
        %v808 = vand.u32 2147483647, %v751
        %v809 = vand.u32 2147483647, %v752
        %v810 = vand.u32 2147483647, %v753
        %v811 = vand.u32 2147483647, %v754
        %v812 = vand.u32 2147483647, %v755
        %v813 = vand.u32 2147483647, %v756
        %v814 = vand.u32 2147483647, %v757
        %v815 = vand.u32 2147483647, %v758
        %v816 = vand.u32 2147483647, %v759
        %v817 = vand.u32 2147483647, %v760
        %v818 = vand.u32 2147483647, %v761
        %v819 = vand.u32 2147483647, %v762
        %v820 = vand.u32 2147483647, %v763
        %v821 = vand.u32 2147483647, %v764
        %v822 = vand.u32 2147483647, %v765
        %v823 = vand.u32 2147483647, %v766
        %v824 = vand.u32 2147483647, %v767
        %v825 = vand.u32 2147483647, %v768
        %v826 = vand.u32 2147483647, %v769
        %v827 = vand.u32 2147483647, %v770
        %v828 = vand.u32 2147483647, %v771
        %v829 = vand.u32 2147483647, %v772
        %v830 = vsub.f32 1.0, %v773
        %v831 = vsub.f32 1.0, %v774
        %v832 = vsub.f32 1.0, %v775
        %v833 = vsub.f32 1.0, %v776
        %v834 = vsub.f32 1.0, %v777
        %v835 = vsub.f32 1.0, %v778
        %v836 = vsub.f32 1.0, %v779
        %v837 = vsub.f32 1.0, %v780
        %v838 = vsub.f32 1.0, %v781
        %v839 = vsub.f32 1.0, %v782
        %v840 = vsub.f32 1.0, %v783
        %v841 = vsub.f32 1.0, %v784
        %v842 = vsub.f32 1.0, %v785
        %v843 = vsub.f32 1.0, %v786
        %v844 = vsub.f32 1.0, %v787
        %v845 = vsub.f32 1.0, %v788
        %v846 = vsub.f32 1.0, %v789
        %v847 = vsub.f32 1.0, %v790
        %v848 = vsub.f32 1.0, %v791
        %v849 = vsub.f32 1.0, %v792
        %v850 = vsub.f32 1.0, %v793
        %v851 = vsub.f32 1.0, %v794
        %v852 = vsub.f32 1.0, %v795
        %v853 = vsub.f32 1.0, %v796
        %v854 = vsub.f32 1.0, %v797
        %v855 = vsub.f32 1.0, %v798
        %v856 = vsub.f32 1.0, %v799
        %v857 = vsub.f32 1.0, %v800
        %v858 = vsub.f32 1.0, %v801
        %v859 = vsub.f32 1.0, %v802
        %v860 = vsub.f32 1.0, %v803
        %v861 = vsub.f32 1.0, %v804
        %v862 = vsub.f32 1.0, %v805
        %v863 = vsub.f32 1.0, %v806
        %v864 = vsub.f32 1.0, %v807
        %v865 = vsub.f32 1.0, %v808
        %v866 = vsub.f32 1.0, %v809
        %v867 = vsub.f32 1.0, %v810
        %v868 = vsub.f32 1.0, %v811
        %v869 = vsub.f32 1.0, %v812
        %v870 = vsub.f32 1.0, %v813
        %v871 = vsub.f32 1.0, %v814
        %v872 = vsub.f32 1.0, %v815
        %v873 = vsub.f32 1.0, %v816
        %v874 = vsub.f32 1.0, %v817
        %v875 = vsub.f32 1.0, %v818
        %v876 = vsub.f32 1.0, %v819
        %v877 = vsub.f32 1.0, %v820
        %v878 = vsub.f32 1.0, %v821
        %v879 = vsub.f32 1.0, %v822
        %v880 = vsub.f32 1.0, %v823
        %v881 = vsub.f32 1.0, %v824
        %v882 = vsub.f32 1.0, %v825
        %v883 = vsub.f32 1.0, %v826
        %v884 = vsub.f32 1.0, %v827
        %v885 = vsub.f32 1.0, %v828
        %v886 = vsub.f32 1.0, %v829
        %v887 = vmax.f32 %v830, 0.0
        %v888 = vmax.f32 %v831, 0.0
        %v889 = vmax.f32 %v832, 0.0
        %v890 = vmax.f32 %v833, 0.0
        %v891 = vmax.f32 %v834, 0.0
        %v892 = vmax.f32 %v835, 0.0
        %v893 = vmax.f32 %v836, 0.0
        %v894 = vmax.f32 %v837, 0.0
        %v895 = vmax.f32 %v838, 0.0
        %v896 = vmax.f32 %v839, 0.0
        %v897 = vmax.f32 %v840, 0.0
        %v898 = vmax.f32 %v841, 0.0
        %v899 = vmax.f32 %v842, 0.0
        %v900 = vmax.f32 %v843, 0.0
        %v901 = vmax.f32 %v844, 0.0
        %v902 = vmax.f32 %v845, 0.0
        %v903 = vmax.f32 %v846, 0.0
        %v904 = vmax.f32 %v847, 0.0
        %v905 = vmax.f32 %v848, 0.0
        %v906 = vmax.f32 %v849, 0.0
        %v907 = vmax.f32 %v850, 0.0
        %v908 = vmax.f32 %v851, 0.0
        %v909 = vmax.f32 %v852, 0.0
        %v910 = vmax.f32 %v853, 0.0
        %v911 = vmax.f32 %v854, 0.0
        %v912 = vmax.f32 %v855, 0.0
        %v913 = vmax.f32 %v856, 0.0
        %v914 = vmax.f32 %v857, 0.0
        %v915 = vmax.f32 %v858, 0.0
        %v916 = vmax.f32 %v859, 0.0
        %v917 = vmax.f32 %v860, 0.0
        %v918 = vmax.f32 %v861, 0.0
        %v919 = vmax.f32 %v862, 0.0
        %v920 = vmax.f32 %v863, 0.0
        %v921 = vmax.f32 %v864, 0.0
        %v922 = vmax.f32 %v865, 0.0
        %v923 = vmax.f32 %v866, 0.0
        %v924 = vmax.f32 %v867, 0.0
        %v925 = vmax.f32 %v868, 0.0
        %v926 = vmax.f32 %v869, 0.0
        %v927 = vmax.f32 %v870, 0.0
        %v928 = vmax.f32 %v871, 0.0
        %v929 = vmax.f32 %v872, 0.0
        %v930 = vmax.f32 %v873, 0.0
        %v931 = vmax.f32 %v874, 0.0
        %v932 = vmax.f32 %v875, 0.0
        %v933 = vmax.f32 %v876, 0.0
        %v934 = vmax.f32 %v877, 0.0
        %v935 = vmax.f32 %v878, 0.0
        %v936 = vmax.f32 %v879, 0.0
        %v937 = vmax.f32 %v880, 0.0
        %v938 = vmax.f32 %v881, 0.0
        %v939 = vmax.f32 %v882, 0.0
        %v940 = vmax.f32 %v883, 0.0
        %v941 = vmax.f32 %v884, 0.0
        %v942 = vmax.f32 %v885, 0.0
        %v943 = vmax.f32 %v886, 0.0
        %v944 = vmul.f32 %v567, %v887
        %v945 = vmul.f32 %v568, %v888
        %v946 = vmul.f32 %v569, %v889
        %v947 = vmul.f32 %v570, %v890
        %v948 = vmul.f32 %v571, %v891
        %v949 = vmul.f32 %v572, %v892
        %v950 = vmul.f32 %v573, %v893
        %v951 = vmul.f32 %v574, %v894
        %v952 = vmul.f32 %v575, %v895
        %v953 = vmul.f32 %v576, %v896
        %v954 = vmul.f32 %v577, %v897
        %v955 = vmul.f32 %v578, %v898
        %v956 = vmul.f32 %v579, %v899
        %v957 = vmul.f32 %v580, %v900
        %v958 = vmul.f32 %v581, %v901
        %v959 = vmul.f32 %v582, %v902
        %v960 = vmul.f32 %v583, %v903
        %v961 = vmul.f32 %v584, %v904
        %v962 = vmul.f32 %v585, %v905
        %v963 = vmul.f32 %v586, %v906
        %v964 = vmul.f32 %v587, %v907
        %v965 = vmul.f32 %v588, %v908
        %v966 = vmul.f32 %v589, %v909
        %v967 = vmul.f32 %v590, %v910
        %v968 = vmul.f32 %v591, %v911
        %v969 = vmul.f32 %v592, %v912
        %v970 = vmul.f32 %v593, %v913
        %v971 = vmul.f32 %v594, %v914
        %v972 = vmul.f32 %v595, %v915
        %v973 = vmul.f32 %v596, %v916
        %v974 = vmul.f32 %v597, %v917
        %v975 = vmul.f32 %v598, %v918
        %v976 = vmul.f32 %v599, %v919
        %v977 = vmul.f32 %v600, %v920
        %v978 = vmul.f32 %v601, %v921
        %v979 = vmul.f32 %v602, %v922
        %v980 = vmul.f32 %v603, %v923
        %v981 = vmul.f32 %v604, %v924
        %v982 = vmul.f32 %v605, %v925
        %v983 = vmul.f32 %v606, %v926
        %v984 = vmul.f32 %v607, %v927
        %v985 = vmul.f32 %v608, %v928
        %v986 = vmul.f32 %v609, %v929
        %v987 = vmul.f32 %v610, %v930
        %v988 = vmul.f32 %v611, %v931
        %v989 = vmul.f32 %v612, %v932
        %v990 = vmul.f32 %v613, %v933
        %v991 = vmul.f32 %v614, %v934
        %v992 = vmul.f32 %v615, %v935
        %v993 = vmul.f32 %v616, %v936
        %v994 = vmul.f32 %v617, %v937
        %v995 = vmul.f32 %v618, %v938
        %v996 = vmul.f32 %v619, %v939
        %v997 = vmul.f32 %v620, %v940
        %v998 = vmul.f32 %v621, %v941
        %v999 = vmul.f32 %v622, %v942
        %v1000 = vmul.f32 %v623, %v943
        %1001 = vst [vmem:[#allocation2] sm:$0xff] %v944
        %1002 = vst [vmem:[#allocation2 + $0x8] sm:$0xff] %v945
        %1003 = vst [vmem:[#allocation2 + $0x10] sm:$0xff] %v946
        %1004 = vst [vmem:[#allocation2 + $0x48] sm:$0xff] %v947
        %1005 = vst [vmem:[#allocation2 + $0x50] sm:$0xff] %v948
        %1006 = vst [vmem:[#allocation2 + $0x58] sm:$0xff] %v949
        %1007 = vst [vmem:[#allocation2 + $0x90] sm:$0xff] %v950
        %1008 = vst [vmem:[#allocation2 + $0x98] sm:$0xff] %v951
        %1009 = vst [vmem:[#allocation2 + $0xa0] sm:$0xff] %v952
        %1010 = vst [vmem:[#allocation2 + $0xd8] sm:$0xff] %v953
        %1011 = vst [vmem:[#allocation2 + $0xe0] sm:$0xff] %v954
        %1012 = vst [vmem:[#allocation2 + $0xe8] sm:$0xff] %v955
        %1013 = vst [vmem:[#allocation2 + $0x120] sm:$0xff] %v956
        %1014 = vst [vmem:[#allocation2 + $0x128] sm:$0xff] %v957
        %1015 = vst [vmem:[#allocation2 + $0x130] sm:$0xff] %v958
        %1016 = vst [vmem:[#allocation2 + $0x168] sm:$0xff] %v959
        %1017 = vst [vmem:[#allocation2 + $0x170] sm:$0xff] %v960
        %1018 = vst [vmem:[#allocation2 + $0x178] sm:$0xff] %v961
        %1019 = vst [vmem:[#allocation2 + $0x1b0] sm:$0xff] %v962
        %1020 = vst [vmem:[#allocation2 + $0x1b8] sm:$0xff] %v963
        %1021 = vst [vmem:[#allocation2 + $0x1c0] sm:$0xff] %v964
        %1022 = vst [vmem:[#allocation2 + $0x1f8] sm:$0xff] %v965
        %1023 = vst [vmem:[#allocation2 + $0x200] sm:$0xff] %v966
        %1024 = vst [vmem:[#allocation2 + $0x208] sm:$0xff] %v967
        %1025 = vst [vmem:[#allocation2 + $0x240] sm:$0xff] %v968
        %1026 = vst [vmem:[#allocation2 + $0x248] sm:$0xff] %v969
        %1027 = vst [vmem:[#allocation2 + $0x250] sm:$0xff] %v970
        %1028 = vst [vmem:[#allocation2 + $0x288] sm:$0xff] %v971
        %1029 = vst [vmem:[#allocation2 + $0x290] sm:$0xff] %v972
        %1030 = vst [vmem:[#allocation2 + $0x298] sm:$0xff] %v973
        %1031 = vst [vmem:[#allocation2 + $0x2d0] sm:$0xff] %v974
        %1032 = vst [vmem:[#allocation2 + $0x2d8] sm:$0xff] %v975
        %1033 = vst [vmem:[#allocation2 + $0x2e0] sm:$0xff] %v976
        %1034 = vst [vmem:[#allocation2 + $0x318] sm:$0xff] %v977
        %1035 = vst [vmem:[#allocation2 + $0x320] sm:$0xff] %v978
        %1036 = vst [vmem:[#allocation2 + $0x328] sm:$0xff] %v979
        %1037 = vst [vmem:[#allocation2 + $0x360] sm:$0xff] %v980
        %1038 = vst [vmem:[#allocation2 + $0x368] sm:$0xff] %v981
        %1039 = vst [vmem:[#allocation2 + $0x370] sm:$0xff] %v982
        %1040 = vst [vmem:[#allocation2 + $0x3a8] sm:$0xff] %v983
        %1041 = vst [vmem:[#allocation2 + $0x3b0] sm:$0xff] %v984
        %1042 = vst [vmem:[#allocation2 + $0x3b8] sm:$0xff] %v985
        %1043 = vst [vmem:[#allocation2 + $0x3f0] sm:$0xff] %v986
        %1044 = vst [vmem:[#allocation2 + $0x3f8] sm:$0xff] %v987
        %1045 = vst [vmem:[#allocation2 + $0x400] sm:$0xff] %v988
        %1046 = vst [vmem:[#allocation2 + $0x438] sm:$0xff] %v989
        %1047 = vst [vmem:[#allocation2 + $0x440] sm:$0xff] %v990
        %1048 = vst [vmem:[#allocation2 + $0x448] sm:$0xff] %v991
        %1049 = vst [vmem:[#allocation2 + $0x480] sm:$0xff] %v992
        %1050 = vst [vmem:[#allocation2 + $0x488] sm:$0xff] %v993
        %1051 = vst [vmem:[#allocation2 + $0x490] sm:$0xff] %v994
        %1052 = vst [vmem:[#allocation2 + $0x4c8] sm:$0xff] %v995
        %1053 = vst [vmem:[#allocation2 + $0x4d0] sm:$0xff] %v996
        %1054 = vst [vmem:[#allocation2 + $0x4d8] sm:$0xff] %v997
        %1055 = vst [vmem:[#allocation2 + $0x510] sm:$0xff] %v998
        %1056 = vst [vmem:[#allocation2 + $0x518] sm:$0xff] %v999
        %1057 = vst [vmem:[#allocation2 + $0x520] sm:$0xff] %v1000
        %1058 = vset.pattern.permute.xlu0 2
        %1059 = vperm.xlu0 %1058, %v263
        %v1060 = vpop.permute.xlu0 %1059
        %1062 = vset.pattern.permute.xlu0 2
        %1063 = vperm.xlu0 %1062, %v264
        %v1064 = vpop.permute.xlu0 %1063
        %1066 = vset.pattern.permute.xlu0 2
        %1067 = vperm.xlu0 %1066, %v265
        %v1068 = vpop.permute.xlu0 %1067
        %1070 = vset.pattern.permute.xlu0 2
        %1071 = vperm.xlu0 %1070, %v266
        %v1072 = vpop.permute.xlu0 %1071
        %1074 = vset.pattern.permute.xlu0 2
        %1075 = vperm.xlu0 %1074, %v267
        %v1076 = vpop.permute.xlu0 %1075
        %1078 = vset.pattern.permute.xlu0 2
        %1079 = vperm.xlu0 %1078, %v268
        %v1080 = vpop.permute.xlu0 %1079
        %1082 = vset.pattern.permute.xlu0 2
        %1083 = vperm.xlu0 %1082, %v269
        %v1084 = vpop.permute.xlu0 %1083
        %1086 = vset.pattern.permute.xlu0 2
        %1087 = vperm.xlu0 %1086, %v270
        %v1088 = vpop.permute.xlu0 %1087
        %1090 = vset.pattern.permute.xlu0 2
        %1091 = vperm.xlu0 %1090, %v271
        %v1092 = vpop.permute.xlu0 %1091
        %1094 = vset.pattern.permute.xlu0 2
        %1095 = vperm.xlu0 %1094, %v272
        %v1096 = vpop.permute.xlu0 %1095
        %1098 = vset.pattern.permute.xlu0 2
        %1099 = vperm.xlu0 %1098, %v273
        %v1100 = vpop.permute.xlu0 %1099
        %1102 = vset.pattern.permute.xlu0 2
        %1103 = vperm.xlu0 %1102, %v274
        %v1104 = vpop.permute.xlu0 %1103
        %1106 = vset.pattern.permute.xlu0 2
        %1107 = vperm.xlu0 %1106, %v275
        %v1108 = vpop.permute.xlu0 %1107
        %1110 = vset.pattern.permute.xlu0 2
        %1111 = vperm.xlu0 %1110, %v276
        %v1112 = vpop.permute.xlu0 %1111
        %1114 = vset.pattern.permute.xlu0 2
        %1115 = vperm.xlu0 %1114, %v277
        %v1116 = vpop.permute.xlu0 %1115
        %1118 = vset.pattern.permute.xlu0 2
        %1119 = vperm.xlu0 %1118, %v278
        %v1120 = vpop.permute.xlu0 %1119
        %1122 = vset.pattern.permute.xlu0 2
        %1123 = vperm.xlu0 %1122, %v279
        %v1124 = vpop.permute.xlu0 %1123
        %1126 = vset.pattern.permute.xlu0 2
        %1127 = vperm.xlu0 %1126, %v280
        %v1128 = vpop.permute.xlu0 %1127
        %1130 = vset.pattern.permute.xlu0 2
        %1131 = vperm.xlu0 %1130, %v281
        %v1132 = vpop.permute.xlu0 %1131
        %v1134 = vsub.f32 %v289, %v1060
        %v1135 = vsub.f32 %v293, %v1060
        %v1136 = vsub.f32 %v297, %v1060
        %v1137 = vsub.f32 %v289, %v1064
        %v1138 = vsub.f32 %v293, %v1064
        %v1139 = vsub.f32 %v297, %v1064
        %v1140 = vsub.f32 %v289, %v1068
        %v1141 = vsub.f32 %v293, %v1068
        %v1142 = vsub.f32 %v297, %v1068
        %v1143 = vsub.f32 %v289, %v1072
        %v1144 = vsub.f32 %v293, %v1072
        %v1145 = vsub.f32 %v297, %v1072
        %v1146 = vsub.f32 %v289, %v1076
        %v1147 = vsub.f32 %v293, %v1076
        %v1148 = vsub.f32 %v297, %v1076
        %v1149 = vsub.f32 %v289, %v1080
        %v1150 = vsub.f32 %v293, %v1080
        %v1151 = vsub.f32 %v297, %v1080
        %v1152 = vsub.f32 %v289, %v1084
        %v1153 = vsub.f32 %v293, %v1084
        %v1154 = vsub.f32 %v297, %v1084
        %v1155 = vsub.f32 %v289, %v1088
        %v1156 = vsub.f32 %v293, %v1088
        %v1157 = vsub.f32 %v297, %v1088
        %v1158 = vsub.f32 %v289, %v1092
        %v1159 = vsub.f32 %v293, %v1092
        %v1160 = vsub.f32 %v297, %v1092
        %v1161 = vsub.f32 %v289, %v1096
        %v1162 = vsub.f32 %v293, %v1096
        %v1163 = vsub.f32 %v297, %v1096
        %v1164 = vsub.f32 %v289, %v1100
        %v1165 = vsub.f32 %v293, %v1100
        %v1166 = vsub.f32 %v297, %v1100
        %v1167 = vsub.f32 %v289, %v1104
        %v1168 = vsub.f32 %v293, %v1104
        %v1169 = vsub.f32 %v297, %v1104
        %v1170 = vsub.f32 %v289, %v1108
        %v1171 = vsub.f32 %v293, %v1108
        %v1172 = vsub.f32 %v297, %v1108
        %v1173 = vsub.f32 %v289, %v1112
        %v1174 = vsub.f32 %v293, %v1112
        %v1175 = vsub.f32 %v297, %v1112
        %v1176 = vsub.f32 %v289, %v1116
        %v1177 = vsub.f32 %v293, %v1116
        %v1178 = vsub.f32 %v297, %v1116
        %v1179 = vsub.f32 %v289, %v1120
        %v1180 = vsub.f32 %v293, %v1120
        %v1181 = vsub.f32 %v297, %v1120
        %v1182 = vsub.f32 %v289, %v1124
        %v1183 = vsub.f32 %v293, %v1124
        %v1184 = vsub.f32 %v297, %v1124
        %v1185 = vsub.f32 %v289, %v1128
        %v1186 = vsub.f32 %v293, %v1128
        %v1187 = vsub.f32 %v297, %v1128
        %v1188 = vsub.f32 %v289, %v1132
        %v1189 = vsub.f32 %v293, %v1132
        %v1190 = vsub.f32 %v297, %v1132
        %v1191 = vand.u32 2147483647, %v1134
        %v1192 = vand.u32 2147483647, %v1135
        %v1193 = vand.u32 2147483647, %v1136
        %v1194 = vand.u32 2147483647, %v1137
        %v1195 = vand.u32 2147483647, %v1138
        %v1196 = vand.u32 2147483647, %v1139
        %v1197 = vand.u32 2147483647, %v1140
        %v1198 = vand.u32 2147483647, %v1141
        %v1199 = vand.u32 2147483647, %v1142
        %v1200 = vand.u32 2147483647, %v1143
        %v1201 = vand.u32 2147483647, %v1144
        %v1202 = vand.u32 2147483647, %v1145
        %v1203 = vand.u32 2147483647, %v1146
        %v1204 = vand.u32 2147483647, %v1147
        %v1205 = vand.u32 2147483647, %v1148
        %v1206 = vand.u32 2147483647, %v1149
        %v1207 = vand.u32 2147483647, %v1150
        %v1208 = vand.u32 2147483647, %v1151
        %v1209 = vand.u32 2147483647, %v1152
        %v1210 = vand.u32 2147483647, %v1153
        %v1211 = vand.u32 2147483647, %v1154
        %v1212 = vand.u32 2147483647, %v1155
        %v1213 = vand.u32 2147483647, %v1156
        %v1214 = vand.u32 2147483647, %v1157
        %v1215 = vand.u32 2147483647, %v1158
        %v1216 = vand.u32 2147483647, %v1159
        %v1217 = vand.u32 2147483647, %v1160
        %v1218 = vand.u32 2147483647, %v1161
        %v1219 = vand.u32 2147483647, %v1162
        %v1220 = vand.u32 2147483647, %v1163
        %v1221 = vand.u32 2147483647, %v1164
        %v1222 = vand.u32 2147483647, %v1165
        %v1223 = vand.u32 2147483647, %v1166
        %v1224 = vand.u32 2147483647, %v1167
        %v1225 = vand.u32 2147483647, %v1168
        %v1226 = vand.u32 2147483647, %v1169
        %v1227 = vand.u32 2147483647, %v1170
        %v1228 = vand.u32 2147483647, %v1171
        %v1229 = vand.u32 2147483647, %v1172
        %v1230 = vand.u32 2147483647, %v1173
        %v1231 = vand.u32 2147483647, %v1174
        %v1232 = vand.u32 2147483647, %v1175
        %v1233 = vand.u32 2147483647, %v1176
        %v1234 = vand.u32 2147483647, %v1177
        %v1235 = vand.u32 2147483647, %v1178
        %v1236 = vand.u32 2147483647, %v1179
        %v1237 = vand.u32 2147483647, %v1180
        %v1238 = vand.u32 2147483647, %v1181
        %v1239 = vand.u32 2147483647, %v1182
        %v1240 = vand.u32 2147483647, %v1183
        %v1241 = vand.u32 2147483647, %v1184
        %v1242 = vand.u32 2147483647, %v1185
        %v1243 = vand.u32 2147483647, %v1186
        %v1244 = vand.u32 2147483647, %v1187
        %v1245 = vand.u32 2147483647, %v1188
        %v1246 = vand.u32 2147483647, %v1189
        %v1247 = vand.u32 2147483647, %v1190
        %v1248 = vsub.f32 1.0, %v1191
        %v1249 = vsub.f32 1.0, %v1192
        %v1250 = vsub.f32 1.0, %v1193
        %v1251 = vsub.f32 1.0, %v1194
        %v1252 = vsub.f32 1.0, %v1195
        %v1253 = vsub.f32 1.0, %v1196
        %v1254 = vsub.f32 1.0, %v1197
        %v1255 = vsub.f32 1.0, %v1198
        %v1256 = vsub.f32 1.0, %v1199
        %v1257 = vsub.f32 1.0, %v1200
        %v1258 = vsub.f32 1.0, %v1201
        %v1259 = vsub.f32 1.0, %v1202
        %v1260 = vsub.f32 1.0, %v1203
        %v1261 = vsub.f32 1.0, %v1204
        %v1262 = vsub.f32 1.0, %v1205
        %v1263 = vsub.f32 1.0, %v1206
        %v1264 = vsub.f32 1.0, %v1207
        %v1265 = vsub.f32 1.0, %v1208
        %v1266 = vsub.f32 1.0, %v1209
        %v1267 = vsub.f32 1.0, %v1210
        %v1268 = vsub.f32 1.0, %v1211
        %v1269 = vsub.f32 1.0, %v1212
        %v1270 = vsub.f32 1.0, %v1213
        %v1271 = vsub.f32 1.0, %v1214
        %v1272 = vsub.f32 1.0, %v1215
        %v1273 = vsub.f32 1.0, %v1216
        %v1274 = vsub.f32 1.0, %v1217
        %v1275 = vsub.f32 1.0, %v1218
        %v1276 = vsub.f32 1.0, %v1219
        %v1277 = vsub.f32 1.0, %v1220
        %v1278 = vsub.f32 1.0, %v1221
        %v1279 = vsub.f32 1.0, %v1222
        %v1280 = vsub.f32 1.0, %v1223
        %v1281 = vsub.f32 1.0, %v1224
        %v1282 = vsub.f32 1.0, %v1225
        %v1283 = vsub.f32 1.0, %v1226
        %v1284 = vsub.f32 1.0, %v1227
        %v1285 = vsub.f32 1.0, %v1228
        %v1286 = vsub.f32 1.0, %v1229
        %v1287 = vsub.f32 1.0, %v1230
        %v1288 = vsub.f32 1.0, %v1231
        %v1289 = vsub.f32 1.0, %v1232
        %v1290 = vsub.f32 1.0, %v1233
        %v1291 = vsub.f32 1.0, %v1234
        %v1292 = vsub.f32 1.0, %v1235
        %v1293 = vsub.f32 1.0, %v1236
        %v1294 = vsub.f32 1.0, %v1237
        %v1295 = vsub.f32 1.0, %v1238
        %v1296 = vsub.f32 1.0, %v1239
        %v1297 = vsub.f32 1.0, %v1240
        %v1298 = vsub.f32 1.0, %v1241
        %v1299 = vsub.f32 1.0, %v1242
        %v1300 = vsub.f32 1.0, %v1243
        %v1301 = vsub.f32 1.0, %v1244
        %v1302 = vsub.f32 1.0, %v1245
        %v1303 = vsub.f32 1.0, %v1246
        %v1304 = vsub.f32 1.0, %v1247
        %v1305 = vmax.f32 %v1248, 0.0
        %v1306 = vmax.f32 %v1249, 0.0
        %v1307 = vmax.f32 %v1250, 0.0
        %v1308 = vmax.f32 %v1251, 0.0
        %v1309 = vmax.f32 %v1252, 0.0
        %v1310 = vmax.f32 %v1253, 0.0
        %v1311 = vmax.f32 %v1254, 0.0
        %v1312 = vmax.f32 %v1255, 0.0
        %v1313 = vmax.f32 %v1256, 0.0
        %v1314 = vmax.f32 %v1257, 0.0
        %v1315 = vmax.f32 %v1258, 0.0
        %v1316 = vmax.f32 %v1259, 0.0
        %v1317 = vmax.f32 %v1260, 0.0
        %v1318 = vmax.f32 %v1261, 0.0
        %v1319 = vmax.f32 %v1262, 0.0
        %v1320 = vmax.f32 %v1263, 0.0
        %v1321 = vmax.f32 %v1264, 0.0
        %v1322 = vmax.f32 %v1265, 0.0
        %v1323 = vmax.f32 %v1266, 0.0
        %v1324 = vmax.f32 %v1267, 0.0
        %v1325 = vmax.f32 %v1268, 0.0
        %v1326 = vmax.f32 %v1269, 0.0
        %v1327 = vmax.f32 %v1270, 0.0
        %v1328 = vmax.f32 %v1271, 0.0
        %v1329 = vmax.f32 %v1272, 0.0
        %v1330 = vmax.f32 %v1273, 0.0
        %v1331 = vmax.f32 %v1274, 0.0
        %v1332 = vmax.f32 %v1275, 0.0
        %v1333 = vmax.f32 %v1276, 0.0
        %v1334 = vmax.f32 %v1277, 0.0
        %v1335 = vmax.f32 %v1278, 0.0
        %v1336 = vmax.f32 %v1279, 0.0
        %v1337 = vmax.f32 %v1280, 0.0
        %v1338 = vmax.f32 %v1281, 0.0
        %v1339 = vmax.f32 %v1282, 0.0
        %v1340 = vmax.f32 %v1283, 0.0
        %v1341 = vmax.f32 %v1284, 0.0
        %v1342 = vmax.f32 %v1285, 0.0
        %v1343 = vmax.f32 %v1286, 0.0
        %v1344 = vmax.f32 %v1287, 0.0
        %v1345 = vmax.f32 %v1288, 0.0
        %v1346 = vmax.f32 %v1289, 0.0
        %v1347 = vmax.f32 %v1290, 0.0
        %v1348 = vmax.f32 %v1291, 0.0
        %v1349 = vmax.f32 %v1292, 0.0
        %v1350 = vmax.f32 %v1293, 0.0
        %v1351 = vmax.f32 %v1294, 0.0
        %v1352 = vmax.f32 %v1295, 0.0
        %v1353 = vmax.f32 %v1296, 0.0
        %v1354 = vmax.f32 %v1297, 0.0
        %v1355 = vmax.f32 %v1298, 0.0
        %v1356 = vmax.f32 %v1299, 0.0
        %v1357 = vmax.f32 %v1300, 0.0
        %v1358 = vmax.f32 %v1301, 0.0
        %v1359 = vmax.f32 %v1302, 0.0
        %v1360 = vmax.f32 %v1303, 0.0
        %v1361 = vmax.f32 %v1304, 0.0
        %1362 = vset.pattern.permute.xlu0 3
        %1363 = vperm.xlu0 %1362, %v263
        %v1364 = vpop.permute.xlu0 %1363
        %1366 = vset.pattern.permute.xlu0 3
        %1367 = vperm.xlu0 %1366, %v264
        %v1368 = vpop.permute.xlu0 %1367
        %1370 = vset.pattern.permute.xlu0 3
        %1371 = vperm.xlu0 %1370, %v265
        %v1372 = vpop.permute.xlu0 %1371
        %1374 = vset.pattern.permute.xlu0 3
        %1375 = vperm.xlu0 %1374, %v266
        %v1376 = vpop.permute.xlu0 %1375
        %1378 = vset.pattern.permute.xlu0 3
        %1379 = vperm.xlu0 %1378, %v267
        %v1380 = vpop.permute.xlu0 %1379
        %1382 = vset.pattern.permute.xlu0 3
        %1383 = vperm.xlu0 %1382, %v268
        %v1384 = vpop.permute.xlu0 %1383
        %1386 = vset.pattern.permute.xlu0 3
        %1387 = vperm.xlu0 %1386, %v269
        %v1388 = vpop.permute.xlu0 %1387
        %1390 = vset.pattern.permute.xlu0 3
        %1391 = vperm.xlu0 %1390, %v270
        %v1392 = vpop.permute.xlu0 %1391
        %1394 = vset.pattern.permute.xlu0 3
        %1395 = vperm.xlu0 %1394, %v271
        %v1396 = vpop.permute.xlu0 %1395
        %1398 = vset.pattern.permute.xlu0 3
        %1399 = vperm.xlu0 %1398, %v272
        %v1400 = vpop.permute.xlu0 %1399
        %1402 = vset.pattern.permute.xlu0 3
        %1403 = vperm.xlu0 %1402, %v273
        %v1404 = vpop.permute.xlu0 %1403
        %1406 = vset.pattern.permute.xlu0 3
        %1407 = vperm.xlu0 %1406, %v274
        %v1408 = vpop.permute.xlu0 %1407
        %1410 = vset.pattern.permute.xlu0 3
        %1411 = vperm.xlu0 %1410, %v275
        %v1412 = vpop.permute.xlu0 %1411
        %1414 = vset.pattern.permute.xlu0 3
        %1415 = vperm.xlu0 %1414, %v276
        %v1416 = vpop.permute.xlu0 %1415
        %1418 = vset.pattern.permute.xlu0 3
        %1419 = vperm.xlu0 %1418, %v277
        %v1420 = vpop.permute.xlu0 %1419
        %1422 = vset.pattern.permute.xlu0 3
        %1423 = vperm.xlu0 %1422, %v278
        %v1424 = vpop.permute.xlu0 %1423
        %1426 = vset.pattern.permute.xlu0 3
        %1427 = vperm.xlu0 %1426, %v279
        %v1428 = vpop.permute.xlu0 %1427
        %1430 = vset.pattern.permute.xlu0 3
        %1431 = vperm.xlu0 %1430, %v280
        %v1432 = vpop.permute.xlu0 %1431
        %1434 = vset.pattern.permute.xlu0 3
        %1435 = vperm.xlu0 %1434, %v281
        %v1436 = vpop.permute.xlu0 %1435
        %v1438 = vsub.f32 %v628, %v1364
        %v1439 = vsub.f32 %v632, %v1364
        %v1440 = vsub.f32 %v636, %v1364
        %v1441 = vsub.f32 %v628, %v1368
        %v1442 = vsub.f32 %v632, %v1368
        %v1443 = vsub.f32 %v636, %v1368
        %v1444 = vsub.f32 %v628, %v1372
        %v1445 = vsub.f32 %v632, %v1372
        %v1446 = vsub.f32 %v636, %v1372
        %v1447 = vsub.f32 %v628, %v1376
        %v1448 = vsub.f32 %v632, %v1376
        %v1449 = vsub.f32 %v636, %v1376
        %v1450 = vsub.f32 %v628, %v1380
        %v1451 = vsub.f32 %v632, %v1380
        %v1452 = vsub.f32 %v636, %v1380
        %v1453 = vsub.f32 %v628, %v1384
        %v1454 = vsub.f32 %v632, %v1384
        %v1455 = vsub.f32 %v636, %v1384
        %v1456 = vsub.f32 %v628, %v1388
        %v1457 = vsub.f32 %v632, %v1388
        %v1458 = vsub.f32 %v636, %v1388
        %v1459 = vsub.f32 %v628, %v1392
        %v1460 = vsub.f32 %v632, %v1392
        %v1461 = vsub.f32 %v636, %v1392
        %v1462 = vsub.f32 %v628, %v1396
        %v1463 = vsub.f32 %v632, %v1396
        %v1464 = vsub.f32 %v636, %v1396
        %v1465 = vsub.f32 %v628, %v1400
        %v1466 = vsub.f32 %v632, %v1400
        %v1467 = vsub.f32 %v636, %v1400
        %v1468 = vsub.f32 %v628, %v1404
        %v1469 = vsub.f32 %v632, %v1404
        %v1470 = vsub.f32 %v636, %v1404
        %v1471 = vsub.f32 %v628, %v1408
        %v1472 = vsub.f32 %v632, %v1408
        %v1473 = vsub.f32 %v636, %v1408
        %v1474 = vsub.f32 %v628, %v1412
        %v1475 = vsub.f32 %v632, %v1412
        %v1476 = vsub.f32 %v636, %v1412
        %v1477 = vsub.f32 %v628, %v1416
        %v1478 = vsub.f32 %v632, %v1416
        %v1479 = vsub.f32 %v636, %v1416
        %v1480 = vsub.f32 %v628, %v1420
        %v1481 = vsub.f32 %v632, %v1420
        %v1482 = vsub.f32 %v636, %v1420
        %v1483 = vsub.f32 %v628, %v1424
        %v1484 = vsub.f32 %v632, %v1424
        %v1485 = vsub.f32 %v636, %v1424
        %v1486 = vsub.f32 %v628, %v1428
        %v1487 = vsub.f32 %v632, %v1428
        %v1488 = vsub.f32 %v636, %v1428
        %v1489 = vsub.f32 %v628, %v1432
        %v1490 = vsub.f32 %v632, %v1432
        %v1491 = vsub.f32 %v636, %v1432
        %v1492 = vsub.f32 %v628, %v1436
        %v1493 = vsub.f32 %v632, %v1436
        %v1494 = vsub.f32 %v636, %v1436
        %v1495 = vand.u32 2147483647, %v1438
        %v1496 = vand.u32 2147483647, %v1439
        %v1497 = vand.u32 2147483647, %v1440
        %v1498 = vand.u32 2147483647, %v1441
        %v1499 = vand.u32 2147483647, %v1442
        %v1500 = vand.u32 2147483647, %v1443
        %v1501 = vand.u32 2147483647, %v1444
        %v1502 = vand.u32 2147483647, %v1445
        %v1503 = vand.u32 2147483647, %v1446
        %v1504 = vand.u32 2147483647, %v1447
        %v1505 = vand.u32 2147483647, %v1448
        %v1506 = vand.u32 2147483647, %v1449
        %v1507 = vand.u32 2147483647, %v1450
        %v1508 = vand.u32 2147483647, %v1451
        %v1509 = vand.u32 2147483647, %v1452
        %v1510 = vand.u32 2147483647, %v1453
        %v1511 = vand.u32 2147483647, %v1454
        %v1512 = vand.u32 2147483647, %v1455
        %v1513 = vand.u32 2147483647, %v1456
        %v1514 = vand.u32 2147483647, %v1457
        %v1515 = vand.u32 2147483647, %v1458
        %v1516 = vand.u32 2147483647, %v1459
        %v1517 = vand.u32 2147483647, %v1460
        %v1518 = vand.u32 2147483647, %v1461
        %v1519 = vand.u32 2147483647, %v1462
        %v1520 = vand.u32 2147483647, %v1463
        %v1521 = vand.u32 2147483647, %v1464
        %v1522 = vand.u32 2147483647, %v1465
        %v1523 = vand.u32 2147483647, %v1466
        %v1524 = vand.u32 2147483647, %v1467
        %v1525 = vand.u32 2147483647, %v1468
        %v1526 = vand.u32 2147483647, %v1469
        %v1527 = vand.u32 2147483647, %v1470
        %v1528 = vand.u32 2147483647, %v1471
        %v1529 = vand.u32 2147483647, %v1472
        %v1530 = vand.u32 2147483647, %v1473
        %v1531 = vand.u32 2147483647, %v1474
        %v1532 = vand.u32 2147483647, %v1475
        %v1533 = vand.u32 2147483647, %v1476
        %v1534 = vand.u32 2147483647, %v1477
        %v1535 = vand.u32 2147483647, %v1478
        %v1536 = vand.u32 2147483647, %v1479
        %v1537 = vand.u32 2147483647, %v1480
        %v1538 = vand.u32 2147483647, %v1481
        %v1539 = vand.u32 2147483647, %v1482
        %v1540 = vand.u32 2147483647, %v1483
        %v1541 = vand.u32 2147483647, %v1484
        %v1542 = vand.u32 2147483647, %v1485
        %v1543 = vand.u32 2147483647, %v1486
        %v1544 = vand.u32 2147483647, %v1487
        %v1545 = vand.u32 2147483647, %v1488
        %v1546 = vand.u32 2147483647, %v1489
        %v1547 = vand.u32 2147483647, %v1490
        %v1548 = vand.u32 2147483647, %v1491
        %v1549 = vand.u32 2147483647, %v1492
        %v1550 = vand.u32 2147483647, %v1493
        %v1551 = vand.u32 2147483647, %v1494
        %v1552 = vsub.f32 1.0, %v1495
        %v1553 = vsub.f32 1.0, %v1496
        %v1554 = vsub.f32 1.0, %v1497
        %v1555 = vsub.f32 1.0, %v1498
        %v1556 = vsub.f32 1.0, %v1499
        %v1557 = vsub.f32 1.0, %v1500
        %v1558 = vsub.f32 1.0, %v1501
        %v1559 = vsub.f32 1.0, %v1502
        %v1560 = vsub.f32 1.0, %v1503
        %v1561 = vsub.f32 1.0, %v1504
        %v1562 = vsub.f32 1.0, %v1505
        %v1563 = vsub.f32 1.0, %v1506
        %v1564 = vsub.f32 1.0, %v1507
        %v1565 = vsub.f32 1.0, %v1508
        %v1566 = vsub.f32 1.0, %v1509
        %v1567 = vsub.f32 1.0, %v1510
        %v1568 = vsub.f32 1.0, %v1511
        %v1569 = vsub.f32 1.0, %v1512
        %v1570 = vsub.f32 1.0, %v1513
        %v1571 = vsub.f32 1.0, %v1514
        %v1572 = vsub.f32 1.0, %v1515
        %v1573 = vsub.f32 1.0, %v1516
        %v1574 = vsub.f32 1.0, %v1517
        %v1575 = vsub.f32 1.0, %v1518
        %v1576 = vsub.f32 1.0, %v1519
        %v1577 = vsub.f32 1.0, %v1520
        %v1578 = vsub.f32 1.0, %v1521
        %v1579 = vsub.f32 1.0, %v1522
        %v1580 = vsub.f32 1.0, %v1523
        %v1581 = vsub.f32 1.0, %v1524
        %v1582 = vsub.f32 1.0, %v1525
        %v1583 = vsub.f32 1.0, %v1526
        %v1584 = vsub.f32 1.0, %v1527
        %v1585 = vsub.f32 1.0, %v1528
        %v1586 = vsub.f32 1.0, %v1529
        %v1587 = vsub.f32 1.0, %v1530
        %v1588 = vsub.f32 1.0, %v1531
        %v1589 = vsub.f32 1.0, %v1532
        %v1590 = vsub.f32 1.0, %v1533
        %v1591 = vsub.f32 1.0, %v1534
        %v1592 = vsub.f32 1.0, %v1535
        %v1593 = vsub.f32 1.0, %v1536
        %v1594 = vsub.f32 1.0, %v1537
        %v1595 = vsub.f32 1.0, %v1538
        %v1596 = vsub.f32 1.0, %v1539
        %v1597 = vsub.f32 1.0, %v1540
        %v1598 = vsub.f32 1.0, %v1541
        %v1599 = vsub.f32 1.0, %v1542
        %v1600 = vsub.f32 1.0, %v1543
        %v1601 = vsub.f32 1.0, %v1544
        %v1602 = vsub.f32 1.0, %v1545
        %v1603 = vsub.f32 1.0, %v1546
        %v1604 = vsub.f32 1.0, %v1547
        %v1605 = vsub.f32 1.0, %v1548
        %v1606 = vsub.f32 1.0, %v1549
        %v1607 = vsub.f32 1.0, %v1550
        %v1608 = vsub.f32 1.0, %v1551
        %v1609 = vmax.f32 %v1552, 0.0
        %v1610 = vmax.f32 %v1553, 0.0
        %v1611 = vmax.f32 %v1554, 0.0
        %v1612 = vmax.f32 %v1555, 0.0
        %v1613 = vmax.f32 %v1556, 0.0
        %v1614 = vmax.f32 %v1557, 0.0
        %v1615 = vmax.f32 %v1558, 0.0
        %v1616 = vmax.f32 %v1559, 0.0
        %v1617 = vmax.f32 %v1560, 0.0
        %v1618 = vmax.f32 %v1561, 0.0
        %v1619 = vmax.f32 %v1562, 0.0
        %v1620 = vmax.f32 %v1563, 0.0
        %v1621 = vmax.f32 %v1564, 0.0
        %v1622 = vmax.f32 %v1565, 0.0
        %v1623 = vmax.f32 %v1566, 0.0
        %v1624 = vmax.f32 %v1567, 0.0
        %v1625 = vmax.f32 %v1568, 0.0
        %v1626 = vmax.f32 %v1569, 0.0
        %v1627 = vmax.f32 %v1570, 0.0
        %v1628 = vmax.f32 %v1571, 0.0
        %v1629 = vmax.f32 %v1572, 0.0
        %v1630 = vmax.f32 %v1573, 0.0
        %v1631 = vmax.f32 %v1574, 0.0
        %v1632 = vmax.f32 %v1575, 0.0
        %v1633 = vmax.f32 %v1576, 0.0
        %v1634 = vmax.f32 %v1577, 0.0
        %v1635 = vmax.f32 %v1578, 0.0
        %v1636 = vmax.f32 %v1579, 0.0
        %v1637 = vmax.f32 %v1580, 0.0
        %v1638 = vmax.f32 %v1581, 0.0
        %v1639 = vmax.f32 %v1582, 0.0
        %v1640 = vmax.f32 %v1583, 0.0
        %v1641 = vmax.f32 %v1584, 0.0
        %v1642 = vmax.f32 %v1585, 0.0
        %v1643 = vmax.f32 %v1586, 0.0
        %v1644 = vmax.f32 %v1587, 0.0
        %v1645 = vmax.f32 %v1588, 0.0
        %v1646 = vmax.f32 %v1589, 0.0
        %v1647 = vmax.f32 %v1590, 0.0
        %v1648 = vmax.f32 %v1591, 0.0
        %v1649 = vmax.f32 %v1592, 0.0
        %v1650 = vmax.f32 %v1593, 0.0
        %v1651 = vmax.f32 %v1594, 0.0
        %v1652 = vmax.f32 %v1595, 0.0
        %v1653 = vmax.f32 %v1596, 0.0
        %v1654 = vmax.f32 %v1597, 0.0
        %v1655 = vmax.f32 %v1598, 0.0
        %v1656 = vmax.f32 %v1599, 0.0
        %v1657 = vmax.f32 %v1600, 0.0
        %v1658 = vmax.f32 %v1601, 0.0
        %v1659 = vmax.f32 %v1602, 0.0
        %v1660 = vmax.f32 %v1603, 0.0
        %v1661 = vmax.f32 %v1604, 0.0
        %v1662 = vmax.f32 %v1605, 0.0
        %v1663 = vmax.f32 %v1606, 0.0
        %v1664 = vmax.f32 %v1607, 0.0
        %v1665 = vmax.f32 %v1608, 0.0
        %v1666 = vmul.f32 %v1305, %v1609
        %v1667 = vmul.f32 %v1306, %v1610
        %v1668 = vmul.f32 %v1307, %v1611
        %v1669 = vmul.f32 %v1308, %v1612
        %v1670 = vmul.f32 %v1309, %v1613
        %v1671 = vmul.f32 %v1310, %v1614
        %v1672 = vmul.f32 %v1311, %v1615
        %v1673 = vmul.f32 %v1312, %v1616
        %v1674 = vmul.f32 %v1313, %v1617
        %v1675 = vmul.f32 %v1314, %v1618
        %v1676 = vmul.f32 %v1315, %v1619
        %v1677 = vmul.f32 %v1316, %v1620
        %v1678 = vmul.f32 %v1317, %v1621
        %v1679 = vmul.f32 %v1318, %v1622
        %v1680 = vmul.f32 %v1319, %v1623
        %v1681 = vmul.f32 %v1320, %v1624
        %v1682 = vmul.f32 %v1321, %v1625
        %v1683 = vmul.f32 %v1322, %v1626
        %v1684 = vmul.f32 %v1323, %v1627
        %v1685 = vmul.f32 %v1324, %v1628
        %v1686 = vmul.f32 %v1325, %v1629
        %v1687 = vmul.f32 %v1326, %v1630
        %v1688 = vmul.f32 %v1327, %v1631
        %v1689 = vmul.f32 %v1328, %v1632
        %v1690 = vmul.f32 %v1329, %v1633
        %v1691 = vmul.f32 %v1330, %v1634
        %v1692 = vmul.f32 %v1331, %v1635
        %v1693 = vmul.f32 %v1332, %v1636
        %v1694 = vmul.f32 %v1333, %v1637
        %v1695 = vmul.f32 %v1334, %v1638
        %v1696 = vmul.f32 %v1335, %v1639
        %v1697 = vmul.f32 %v1336, %v1640
        %v1698 = vmul.f32 %v1337, %v1641
        %v1699 = vmul.f32 %v1338, %v1642
        %v1700 = vmul.f32 %v1339, %v1643
        %v1701 = vmul.f32 %v1340, %v1644
        %v1702 = vmul.f32 %v1341, %v1645
        %v1703 = vmul.f32 %v1342, %v1646
        %v1704 = vmul.f32 %v1343, %v1647
        %v1705 = vmul.f32 %v1344, %v1648
        %v1706 = vmul.f32 %v1345, %v1649
        %v1707 = vmul.f32 %v1346, %v1650
        %v1708 = vmul.f32 %v1347, %v1651
        %v1709 = vmul.f32 %v1348, %v1652
        %v1710 = vmul.f32 %v1349, %v1653
        %v1711 = vmul.f32 %v1350, %v1654
        %v1712 = vmul.f32 %v1351, %v1655
        %v1713 = vmul.f32 %v1352, %v1656
        %v1714 = vmul.f32 %v1353, %v1657
        %v1715 = vmul.f32 %v1354, %v1658
        %v1716 = vmul.f32 %v1355, %v1659
        %v1717 = vmul.f32 %v1356, %v1660
        %v1718 = vmul.f32 %v1357, %v1661
        %v1719 = vmul.f32 %v1358, %v1662
        %v1720 = vmul.f32 %v1359, %v1663
        %v1721 = vmul.f32 %v1360, %v1664
        %v1722 = vmul.f32 %v1361, %v1665
        %1723 = vst [vmem:[#allocation2 + $0x18] sm:$0xff] %v1666
        %1724 = vst [vmem:[#allocation2 + $0x20] sm:$0xff] %v1667
        %1725 = vst [vmem:[#allocation2 + $0x28] sm:$0xff] %v1668
        %1726 = vst [vmem:[#allocation2 + $0x60] sm:$0xff] %v1669
        %1727 = vst [vmem:[#allocation2 + $0x68] sm:$0xff] %v1670
        %1728 = vst [vmem:[#allocation2 + $0x70] sm:$0xff] %v1671
        %1729 = vst [vmem:[#allocation2 + $0xa8] sm:$0xff] %v1672
        %1730 = vst [vmem:[#allocation2 + $0xb0] sm:$0xff] %v1673
        %1731 = vst [vmem:[#allocation2 + $0xb8] sm:$0xff] %v1674
        %1732 = vst [vmem:[#allocation2 + $0xf0] sm:$0xff] %v1675
        %1733 = vst [vmem:[#allocation2 + $0xf8] sm:$0xff] %v1676
        %1734 = vst [vmem:[#allocation2 + $0x100] sm:$0xff] %v1677
        %1735 = vst [vmem:[#allocation2 + $0x138] sm:$0xff] %v1678
        %1736 = vst [vmem:[#allocation2 + $0x140] sm:$0xff] %v1679
        %1737 = vst [vmem:[#allocation2 + $0x148] sm:$0xff] %v1680
        %1738 = vst [vmem:[#allocation2 + $0x180] sm:$0xff] %v1681
        %1739 = vst [vmem:[#allocation2 + $0x188] sm:$0xff] %v1682
        %1740 = vst [vmem:[#allocation2 + $0x190] sm:$0xff] %v1683
        %1741 = vst [vmem:[#allocation2 + $0x1c8] sm:$0xff] %v1684
        %1742 = vst [vmem:[#allocation2 + $0x1d0] sm:$0xff] %v1685
        %1743 = vst [vmem:[#allocation2 + $0x1d8] sm:$0xff] %v1686
        %1744 = vst [vmem:[#allocation2 + $0x210] sm:$0xff] %v1687
        %1745 = vst [vmem:[#allocation2 + $0x218] sm:$0xff] %v1688
        %1746 = vst [vmem:[#allocation2 + $0x220] sm:$0xff] %v1689
        %1747 = vst [vmem:[#allocation2 + $0x258] sm:$0xff] %v1690
        %1748 = vst [vmem:[#allocation2 + $0x260] sm:$0xff] %v1691
        %1749 = vst [vmem:[#allocation2 + $0x268] sm:$0xff] %v1692
        %1750 = vst [vmem:[#allocation2 + $0x2a0] sm:$0xff] %v1693
        %1751 = vst [vmem:[#allocation2 + $0x2a8] sm:$0xff] %v1694
        %1752 = vst [vmem:[#allocation2 + $0x2b0] sm:$0xff] %v1695
        %1753 = vst [vmem:[#allocation2 + $0x2e8] sm:$0xff] %v1696
        %1754 = vst [vmem:[#allocation2 + $0x2f0] sm:$0xff] %v1697
        %1755 = vst [vmem:[#allocation2 + $0x2f8] sm:$0xff] %v1698
        %1756 = vst [vmem:[#allocation2 + $0x330] sm:$0xff] %v1699
        %1757 = vst [vmem:[#allocation2 + $0x338] sm:$0xff] %v1700
        %1758 = vst [vmem:[#allocation2 + $0x340] sm:$0xff] %v1701
        %1759 = vst [vmem:[#allocation2 + $0x378] sm:$0xff] %v1702
        %1760 = vst [vmem:[#allocation2 + $0x380] sm:$0xff] %v1703
        %1761 = vst [vmem:[#allocation2 + $0x388] sm:$0xff] %v1704
        %1762 = vst [vmem:[#allocation2 + $0x3c0] sm:$0xff] %v1705
        %1763 = vst [vmem:[#allocation2 + $0x3c8] sm:$0xff] %v1706
        %1764 = vst [vmem:[#allocation2 + $0x3d0] sm:$0xff] %v1707
        %1765 = vst [vmem:[#allocation2 + $0x408] sm:$0xff] %v1708
        %1766 = vst [vmem:[#allocation2 + $0x410] sm:$0xff] %v1709
        %1767 = vst [vmem:[#allocation2 + $0x418] sm:$0xff] %v1710
        %1768 = vst [vmem:[#allocation2 + $0x450] sm:$0xff] %v1711
        %1769 = vst [vmem:[#allocation2 + $0x458] sm:$0xff] %v1712
        %1770 = vst [vmem:[#allocation2 + $0x460] sm:$0xff] %v1713
        %1771 = vst [vmem:[#allocation2 + $0x498] sm:$0xff] %v1714
        %1772 = vst [vmem:[#allocation2 + $0x4a0] sm:$0xff] %v1715
        %1773 = vst [vmem:[#allocation2 + $0x4a8] sm:$0xff] %v1716
        %1774 = vst [vmem:[#allocation2 + $0x4e0] sm:$0xff] %v1717
        %1775 = vst [vmem:[#allocation2 + $0x4e8] sm:$0xff] %v1718
        %1776 = vst [vmem:[#allocation2 + $0x4f0] sm:$0xff] %v1719
        %1777 = vst [vmem:[#allocation2 + $0x528] sm:$0xff] %v1720
        %1778 = vst [vmem:[#allocation2 + $0x530] sm:$0xff] %v1721
        %1779 = vst [vmem:[#allocation2 + $0x538] sm:$0xff] %v1722
        %1780 = vset.pattern.permute.xlu0 4
        %1781 = vperm.xlu0 %1780, %v263
        %v1782 = vpop.permute.xlu0 %1781
        %1784 = vset.pattern.permute.xlu0 4
        %1785 = vperm.xlu0 %1784, %v264
        %v1786 = vpop.permute.xlu0 %1785
        %1788 = vset.pattern.permute.xlu0 4
        %1789 = vperm.xlu0 %1788, %v265
        %v1790 = vpop.permute.xlu0 %1789
        %1792 = vset.pattern.permute.xlu0 4
        %1793 = vperm.xlu0 %1792, %v266
        %v1794 = vpop.permute.xlu0 %1793
        %1796 = vset.pattern.permute.xlu0 4
        %1797 = vperm.xlu0 %1796, %v267
        %v1798 = vpop.permute.xlu0 %1797
        %1800 = vset.pattern.permute.xlu0 4
        %1801 = vperm.xlu0 %1800, %v268
        %v1802 = vpop.permute.xlu0 %1801
        %1804 = vset.pattern.permute.xlu0 4
        %1805 = vperm.xlu0 %1804, %v269
        %v1806 = vpop.permute.xlu0 %1805
        %1808 = vset.pattern.permute.xlu0 4
        %1809 = vperm.xlu0 %1808, %v270
        %v1810 = vpop.permute.xlu0 %1809
        %1812 = vset.pattern.permute.xlu0 4
        %1813 = vperm.xlu0 %1812, %v271
        %v1814 = vpop.permute.xlu0 %1813
        %1816 = vset.pattern.permute.xlu0 4
        %1817 = vperm.xlu0 %1816, %v272
        %v1818 = vpop.permute.xlu0 %1817
        %1820 = vset.pattern.permute.xlu0 4
        %1821 = vperm.xlu0 %1820, %v273
        %v1822 = vpop.permute.xlu0 %1821
        %1824 = vset.pattern.permute.xlu0 4
        %1825 = vperm.xlu0 %1824, %v274
        %v1826 = vpop.permute.xlu0 %1825
        %1828 = vset.pattern.permute.xlu0 4
        %1829 = vperm.xlu0 %1828, %v275
        %v1830 = vpop.permute.xlu0 %1829
        %1832 = vset.pattern.permute.xlu0 4
        %1833 = vperm.xlu0 %1832, %v276
        %v1834 = vpop.permute.xlu0 %1833
        %1836 = vset.pattern.permute.xlu0 4
        %1837 = vperm.xlu0 %1836, %v277
        %v1838 = vpop.permute.xlu0 %1837
        %1840 = vset.pattern.permute.xlu0 4
        %1841 = vperm.xlu0 %1840, %v278
        %v1842 = vpop.permute.xlu0 %1841
        %1844 = vset.pattern.permute.xlu0 4
        %1845 = vperm.xlu0 %1844, %v279
        %v1846 = vpop.permute.xlu0 %1845
        %1848 = vset.pattern.permute.xlu0 4
        %1849 = vperm.xlu0 %1848, %v280
        %v1850 = vpop.permute.xlu0 %1849
        %1852 = vset.pattern.permute.xlu0 4
        %1853 = vperm.xlu0 %1852, %v281
        %v1854 = vpop.permute.xlu0 %1853
        %v1856 = vsub.f32 %v289, %v1782
        %v1857 = vsub.f32 %v293, %v1782
        %v1858 = vsub.f32 %v297, %v1782
        %v1859 = vsub.f32 %v289, %v1786
        %v1860 = vsub.f32 %v293, %v1786
        %v1861 = vsub.f32 %v297, %v1786
        %v1862 = vsub.f32 %v289, %v1790
        %v1863 = vsub.f32 %v293, %v1790
        %v1864 = vsub.f32 %v297, %v1790
        %v1865 = vsub.f32 %v289, %v1794
        %v1866 = vsub.f32 %v293, %v1794
        %v1867 = vsub.f32 %v297, %v1794
        %v1868 = vsub.f32 %v289, %v1798
        %v1869 = vsub.f32 %v293, %v1798
        %v1870 = vsub.f32 %v297, %v1798
        %v1871 = vsub.f32 %v289, %v1802
        %v1872 = vsub.f32 %v293, %v1802
        %v1873 = vsub.f32 %v297, %v1802
        %v1874 = vsub.f32 %v289, %v1806
        %v1875 = vsub.f32 %v293, %v1806
        %v1876 = vsub.f32 %v297, %v1806
        %v1877 = vsub.f32 %v289, %v1810
        %v1878 = vsub.f32 %v293, %v1810
        %v1879 = vsub.f32 %v297, %v1810
        %v1880 = vsub.f32 %v289, %v1814
        %v1881 = vsub.f32 %v293, %v1814
        %v1882 = vsub.f32 %v297, %v1814
        %v1883 = vsub.f32 %v289, %v1818
        %v1884 = vsub.f32 %v293, %v1818
        %v1885 = vsub.f32 %v297, %v1818
        %v1886 = vsub.f32 %v289, %v1822
        %v1887 = vsub.f32 %v293, %v1822
        %v1888 = vsub.f32 %v297, %v1822
        %v1889 = vsub.f32 %v289, %v1826
        %v1890 = vsub.f32 %v293, %v1826
        %v1891 = vsub.f32 %v297, %v1826
        %v1892 = vsub.f32 %v289, %v1830
        %v1893 = vsub.f32 %v293, %v1830
        %v1894 = vsub.f32 %v297, %v1830
        %v1895 = vsub.f32 %v289, %v1834
        %v1896 = vsub.f32 %v293, %v1834
        %v1897 = vsub.f32 %v297, %v1834
        %v1898 = vsub.f32 %v289, %v1838
        %v1899 = vsub.f32 %v293, %v1838
        %v1900 = vsub.f32 %v297, %v1838
        %v1901 = vsub.f32 %v289, %v1842
        %v1902 = vsub.f32 %v293, %v1842
        %v1903 = vsub.f32 %v297, %v1842
        %v1904 = vsub.f32 %v289, %v1846
        %v1905 = vsub.f32 %v293, %v1846
        %v1906 = vsub.f32 %v297, %v1846
        %v1907 = vsub.f32 %v289, %v1850
        %v1908 = vsub.f32 %v293, %v1850
        %v1909 = vsub.f32 %v297, %v1850
        %v1910 = vsub.f32 %v289, %v1854
        %v1911 = vsub.f32 %v293, %v1854
        %v1912 = vsub.f32 %v297, %v1854
        %v1913 = vand.u32 2147483647, %v1856
        %v1914 = vand.u32 2147483647, %v1857
        %v1915 = vand.u32 2147483647, %v1858
        %v1916 = vand.u32 2147483647, %v1859
        %v1917 = vand.u32 2147483647, %v1860
        %v1918 = vand.u32 2147483647, %v1861
        %v1919 = vand.u32 2147483647, %v1862
        %v1920 = vand.u32 2147483647, %v1863
        %v1921 = vand.u32 2147483647, %v1864
        %v1922 = vand.u32 2147483647, %v1865
        %v1923 = vand.u32 2147483647, %v1866
        %v1924 = vand.u32 2147483647, %v1867
        %v1925 = vand.u32 2147483647, %v1868
        %v1926 = vand.u32 2147483647, %v1869
        %v1927 = vand.u32 2147483647, %v1870
        %v1928 = vand.u32 2147483647, %v1871
        %v1929 = vand.u32 2147483647, %v1872
        %v1930 = vand.u32 2147483647, %v1873
        %v1931 = vand.u32 2147483647, %v1874
        %v1932 = vand.u32 2147483647, %v1875
        %v1933 = vand.u32 2147483647, %v1876
        %v1934 = vand.u32 2147483647, %v1877
        %v1935 = vand.u32 2147483647, %v1878
        %v1936 = vand.u32 2147483647, %v1879
        %v1937 = vand.u32 2147483647, %v1880
        %v1938 = vand.u32 2147483647, %v1881
        %v1939 = vand.u32 2147483647, %v1882
        %v1940 = vand.u32 2147483647, %v1883
        %v1941 = vand.u32 2147483647, %v1884
        %v1942 = vand.u32 2147483647, %v1885
        %v1943 = vand.u32 2147483647, %v1886
        %v1944 = vand.u32 2147483647, %v1887
        %v1945 = vand.u32 2147483647, %v1888
        %v1946 = vand.u32 2147483647, %v1889
        %v1947 = vand.u32 2147483647, %v1890
        %v1948 = vand.u32 2147483647, %v1891
        %v1949 = vand.u32 2147483647, %v1892
        %v1950 = vand.u32 2147483647, %v1893
        %v1951 = vand.u32 2147483647, %v1894
        %v1952 = vand.u32 2147483647, %v1895
        %v1953 = vand.u32 2147483647, %v1896
        %v1954 = vand.u32 2147483647, %v1897
        %v1955 = vand.u32 2147483647, %v1898
        %v1956 = vand.u32 2147483647, %v1899
        %v1957 = vand.u32 2147483647, %v1900
        %v1958 = vand.u32 2147483647, %v1901
        %v1959 = vand.u32 2147483647, %v1902
        %v1960 = vand.u32 2147483647, %v1903
        %v1961 = vand.u32 2147483647, %v1904
        %v1962 = vand.u32 2147483647, %v1905
        %v1963 = vand.u32 2147483647, %v1906
        %v1964 = vand.u32 2147483647, %v1907
        %v1965 = vand.u32 2147483647, %v1908
        %v1966 = vand.u32 2147483647, %v1909
        %v1967 = vand.u32 2147483647, %v1910
        %v1968 = vand.u32 2147483647, %v1911
        %v1969 = vand.u32 2147483647, %v1912
        %v1970 = vsub.f32 1.0, %v1913
        %v1971 = vsub.f32 1.0, %v1914
        %v1972 = vsub.f32 1.0, %v1915
        %v1973 = vsub.f32 1.0, %v1916
        %v1974 = vsub.f32 1.0, %v1917
        %v1975 = vsub.f32 1.0, %v1918
        %v1976 = vsub.f32 1.0, %v1919
        %v1977 = vsub.f32 1.0, %v1920
        %v1978 = vsub.f32 1.0, %v1921
        %v1979 = vsub.f32 1.0, %v1922
        %v1980 = vsub.f32 1.0, %v1923
        %v1981 = vsub.f32 1.0, %v1924
        %v1982 = vsub.f32 1.0, %v1925
        %v1983 = vsub.f32 1.0, %v1926
        %v1984 = vsub.f32 1.0, %v1927
        %v1985 = vsub.f32 1.0, %v1928
        %v1986 = vsub.f32 1.0, %v1929
        %v1987 = vsub.f32 1.0, %v1930
        %v1988 = vsub.f32 1.0, %v1931
        %v1989 = vsub.f32 1.0, %v1932
        %v1990 = vsub.f32 1.0, %v1933
        %v1991 = vsub.f32 1.0, %v1934
        %v1992 = vsub.f32 1.0, %v1935
        %v1993 = vsub.f32 1.0, %v1936
        %v1994 = vsub.f32 1.0, %v1937
        %v1995 = vsub.f32 1.0, %v1938
        %v1996 = vsub.f32 1.0, %v1939
        %v1997 = vsub.f32 1.0, %v1940
        %v1998 = vsub.f32 1.0, %v1941
        %v1999 = vsub.f32 1.0, %v1942
        %v2000 = vsub.f32 1.0, %v1943
        %v2001 = vsub.f32 1.0, %v1944
        %v2002 = vsub.f32 1.0, %v1945
        %v2003 = vsub.f32 1.0, %v1946
        %v2004 = vsub.f32 1.0, %v1947
        %v2005 = vsub.f32 1.0, %v1948
        %v2006 = vsub.f32 1.0, %v1949
        %v2007 = vsub.f32 1.0, %v1950
        %v2008 = vsub.f32 1.0, %v1951
        %v2009 = vsub.f32 1.0, %v1952
        %v2010 = vsub.f32 1.0, %v1953
        %v2011 = vsub.f32 1.0, %v1954
        %v2012 = vsub.f32 1.0, %v1955
        %v2013 = vsub.f32 1.0, %v1956
        %v2014 = vsub.f32 1.0, %v1957
        %v2015 = vsub.f32 1.0, %v1958
        %v2016 = vsub.f32 1.0, %v1959
        %v2017 = vsub.f32 1.0, %v1960
        %v2018 = vsub.f32 1.0, %v1961
        %v2019 = vsub.f32 1.0, %v1962
        %v2020 = vsub.f32 1.0, %v1963
        %v2021 = vsub.f32 1.0, %v1964
        %v2022 = vsub.f32 1.0, %v1965
        %v2023 = vsub.f32 1.0, %v1966
        %v2024 = vsub.f32 1.0, %v1967
        %v2025 = vsub.f32 1.0, %v1968
        %v2026 = vsub.f32 1.0, %v1969
        %v2027 = vmax.f32 %v1970, 0.0
        %v2028 = vmax.f32 %v1971, 0.0
        %v2029 = vmax.f32 %v1972, 0.0
        %v2030 = vmax.f32 %v1973, 0.0
        %v2031 = vmax.f32 %v1974, 0.0
        %v2032 = vmax.f32 %v1975, 0.0
        %v2033 = vmax.f32 %v1976, 0.0
        %v2034 = vmax.f32 %v1977, 0.0
        %v2035 = vmax.f32 %v1978, 0.0
        %v2036 = vmax.f32 %v1979, 0.0
        %v2037 = vmax.f32 %v1980, 0.0
        %v2038 = vmax.f32 %v1981, 0.0
        %v2039 = vmax.f32 %v1982, 0.0
        %v2040 = vmax.f32 %v1983, 0.0
        %v2041 = vmax.f32 %v1984, 0.0
        %v2042 = vmax.f32 %v1985, 0.0
        %v2043 = vmax.f32 %v1986, 0.0
        %v2044 = vmax.f32 %v1987, 0.0
        %v2045 = vmax.f32 %v1988, 0.0
        %v2046 = vmax.f32 %v1989, 0.0
        %v2047 = vmax.f32 %v1990, 0.0
        %v2048 = vmax.f32 %v1991, 0.0
        %v2049 = vmax.f32 %v1992, 0.0
        %v2050 = vmax.f32 %v1993, 0.0
        %v2051 = vmax.f32 %v1994, 0.0
        %v2052 = vmax.f32 %v1995, 0.0
        %v2053 = vmax.f32 %v1996, 0.0
        %v2054 = vmax.f32 %v1997, 0.0
        %v2055 = vmax.f32 %v1998, 0.0
        %v2056 = vmax.f32 %v1999, 0.0
        %v2057 = vmax.f32 %v2000, 0.0
        %v2058 = vmax.f32 %v2001, 0.0
        %v2059 = vmax.f32 %v2002, 0.0
        %v2060 = vmax.f32 %v2003, 0.0
        %v2061 = vmax.f32 %v2004, 0.0
        %v2062 = vmax.f32 %v2005, 0.0
        %v2063 = vmax.f32 %v2006, 0.0
        %v2064 = vmax.f32 %v2007, 0.0
        %v2065 = vmax.f32 %v2008, 0.0
        %v2066 = vmax.f32 %v2009, 0.0
        %v2067 = vmax.f32 %v2010, 0.0
        %v2068 = vmax.f32 %v2011, 0.0
        %v2069 = vmax.f32 %v2012, 0.0
        %v2070 = vmax.f32 %v2013, 0.0
        %v2071 = vmax.f32 %v2014, 0.0
        %v2072 = vmax.f32 %v2015, 0.0
        %v2073 = vmax.f32 %v2016, 0.0
        %v2074 = vmax.f32 %v2017, 0.0
        %v2075 = vmax.f32 %v2018, 0.0
        %v2076 = vmax.f32 %v2019, 0.0
        %v2077 = vmax.f32 %v2020, 0.0
        %v2078 = vmax.f32 %v2021, 0.0
        %v2079 = vmax.f32 %v2022, 0.0
        %v2080 = vmax.f32 %v2023, 0.0
        %v2081 = vmax.f32 %v2024, 0.0
        %v2082 = vmax.f32 %v2025, 0.0
        %v2083 = vmax.f32 %v2026, 0.0
        %2084 = vset.pattern.permute.xlu0 5
        %2085 = vperm.xlu0 %2084, %v263
        %v2086 = vpop.permute.xlu0 %2085
        %2088 = vset.pattern.permute.xlu0 5
        %2089 = vperm.xlu0 %2088, %v264
        %v2090 = vpop.permute.xlu0 %2089
        %2092 = vset.pattern.permute.xlu0 5
        %2093 = vperm.xlu0 %2092, %v265
        %v2094 = vpop.permute.xlu0 %2093
        %2096 = vset.pattern.permute.xlu0 5
        %2097 = vperm.xlu0 %2096, %v266
        %v2098 = vpop.permute.xlu0 %2097
        %2100 = vset.pattern.permute.xlu0 5
        %2101 = vperm.xlu0 %2100, %v267
        %v2102 = vpop.permute.xlu0 %2101
        %2104 = vset.pattern.permute.xlu0 5
        %2105 = vperm.xlu0 %2104, %v268
        %v2106 = vpop.permute.xlu0 %2105
        %2108 = vset.pattern.permute.xlu0 5
        %2109 = vperm.xlu0 %2108, %v269
        %v2110 = vpop.permute.xlu0 %2109
        %2112 = vset.pattern.permute.xlu0 5
        %2113 = vperm.xlu0 %2112, %v270
        %v2114 = vpop.permute.xlu0 %2113
        %2116 = vset.pattern.permute.xlu0 5
        %2117 = vperm.xlu0 %2116, %v271
        %v2118 = vpop.permute.xlu0 %2117
        %2120 = vset.pattern.permute.xlu0 5
        %2121 = vperm.xlu0 %2120, %v272
        %v2122 = vpop.permute.xlu0 %2121
        %2124 = vset.pattern.permute.xlu0 5
        %2125 = vperm.xlu0 %2124, %v273
        %v2126 = vpop.permute.xlu0 %2125
        %2128 = vset.pattern.permute.xlu0 5
        %2129 = vperm.xlu0 %2128, %v274
        %v2130 = vpop.permute.xlu0 %2129
        %2132 = vset.pattern.permute.xlu0 5
        %2133 = vperm.xlu0 %2132, %v275
        %v2134 = vpop.permute.xlu0 %2133
        %2136 = vset.pattern.permute.xlu0 5
        %2137 = vperm.xlu0 %2136, %v276
        %v2138 = vpop.permute.xlu0 %2137
        %2140 = vset.pattern.permute.xlu0 5
        %2141 = vperm.xlu0 %2140, %v277
        %v2142 = vpop.permute.xlu0 %2141
        %2144 = vset.pattern.permute.xlu0 5
        %2145 = vperm.xlu0 %2144, %v278
        %v2146 = vpop.permute.xlu0 %2145
        %2148 = vset.pattern.permute.xlu0 5
        %2149 = vperm.xlu0 %2148, %v279
        %v2150 = vpop.permute.xlu0 %2149
        %2152 = vset.pattern.permute.xlu0 5
        %2153 = vperm.xlu0 %2152, %v280
        %v2154 = vpop.permute.xlu0 %2153
        %2156 = vset.pattern.permute.xlu0 5
        %2157 = vperm.xlu0 %2156, %v281
        %v2158 = vpop.permute.xlu0 %2157
        %v2160 = vsub.f32 %v628, %v2086
        %v2161 = vsub.f32 %v632, %v2086
        %v2162 = vsub.f32 %v636, %v2086
        %v2163 = vsub.f32 %v628, %v2090
        %v2164 = vsub.f32 %v632, %v2090
        %v2165 = vsub.f32 %v636, %v2090
        %v2166 = vsub.f32 %v628, %v2094
        %v2167 = vsub.f32 %v632, %v2094
        %v2168 = vsub.f32 %v636, %v2094
        %v2169 = vsub.f32 %v628, %v2098
        %v2170 = vsub.f32 %v632, %v2098
        %v2171 = vsub.f32 %v636, %v2098
        %v2172 = vsub.f32 %v628, %v2102
        %v2173 = vsub.f32 %v632, %v2102
        %v2174 = vsub.f32 %v636, %v2102
        %v2175 = vsub.f32 %v628, %v2106
        %v2176 = vsub.f32 %v632, %v2106
        %v2177 = vsub.f32 %v636, %v2106
        %v2178 = vsub.f32 %v628, %v2110
        %v2179 = vsub.f32 %v632, %v2110
        %v2180 = vsub.f32 %v636, %v2110
        %v2181 = vsub.f32 %v628, %v2114
        %v2182 = vsub.f32 %v632, %v2114
        %v2183 = vsub.f32 %v636, %v2114
        %v2184 = vsub.f32 %v628, %v2118
        %v2185 = vsub.f32 %v632, %v2118
        %v2186 = vsub.f32 %v636, %v2118
        %v2187 = vsub.f32 %v628, %v2122
        %v2188 = vsub.f32 %v632, %v2122
        %v2189 = vsub.f32 %v636, %v2122
        %v2190 = vsub.f32 %v628, %v2126
        %v2191 = vsub.f32 %v632, %v2126
        %v2192 = vsub.f32 %v636, %v2126
        %v2193 = vsub.f32 %v628, %v2130
        %v2194 = vsub.f32 %v632, %v2130
        %v2195 = vsub.f32 %v636, %v2130
        %v2196 = vsub.f32 %v628, %v2134
        %v2197 = vsub.f32 %v632, %v2134
        %v2198 = vsub.f32 %v636, %v2134
        %v2199 = vsub.f32 %v628, %v2138
        %v2200 = vsub.f32 %v632, %v2138
        %v2201 = vsub.f32 %v636, %v2138
        %v2202 = vsub.f32 %v628, %v2142
        %v2203 = vsub.f32 %v632, %v2142
        %v2204 = vsub.f32 %v636, %v2142
        %v2205 = vsub.f32 %v628, %v2146
        %v2206 = vsub.f32 %v632, %v2146
        %v2207 = vsub.f32 %v636, %v2146
        %v2208 = vsub.f32 %v628, %v2150
        %v2209 = vsub.f32 %v632, %v2150
        %v2210 = vsub.f32 %v636, %v2150
        %v2211 = vsub.f32 %v628, %v2154
        %v2212 = vsub.f32 %v632, %v2154
        %v2213 = vsub.f32 %v636, %v2154
        %v2214 = vsub.f32 %v628, %v2158
        %v2215 = vsub.f32 %v632, %v2158
        %v2216 = vsub.f32 %v636, %v2158
        %v2217 = vand.u32 2147483647, %v2160
        %v2218 = vand.u32 2147483647, %v2161
        %v2219 = vand.u32 2147483647, %v2162
        %v2220 = vand.u32 2147483647, %v2163
        %v2221 = vand.u32 2147483647, %v2164
        %v2222 = vand.u32 2147483647, %v2165
        %v2223 = vand.u32 2147483647, %v2166
        %v2224 = vand.u32 2147483647, %v2167
        %v2225 = vand.u32 2147483647, %v2168
        %v2226 = vand.u32 2147483647, %v2169
        %v2227 = vand.u32 2147483647, %v2170
        %v2228 = vand.u32 2147483647, %v2171
        %v2229 = vand.u32 2147483647, %v2172
        %v2230 = vand.u32 2147483647, %v2173
        %v2231 = vand.u32 2147483647, %v2174
        %v2232 = vand.u32 2147483647, %v2175
        %v2233 = vand.u32 2147483647, %v2176
        %v2234 = vand.u32 2147483647, %v2177
        %v2235 = vand.u32 2147483647, %v2178
        %v2236 = vand.u32 2147483647, %v2179
        %v2237 = vand.u32 2147483647, %v2180
        %v2238 = vand.u32 2147483647, %v2181
        %v2239 = vand.u32 2147483647, %v2182
        %v2240 = vand.u32 2147483647, %v2183
        %v2241 = vand.u32 2147483647, %v2184
        %v2242 = vand.u32 2147483647, %v2185
        %v2243 = vand.u32 2147483647, %v2186
        %v2244 = vand.u32 2147483647, %v2187
        %v2245 = vand.u32 2147483647, %v2188
        %v2246 = vand.u32 2147483647, %v2189
        %v2247 = vand.u32 2147483647, %v2190
        %v2248 = vand.u32 2147483647, %v2191
        %v2249 = vand.u32 2147483647, %v2192
        %v2250 = vand.u32 2147483647, %v2193
        %v2251 = vand.u32 2147483647, %v2194
        %v2252 = vand.u32 2147483647, %v2195
        %v2253 = vand.u32 2147483647, %v2196
        %v2254 = vand.u32 2147483647, %v2197
        %v2255 = vand.u32 2147483647, %v2198
        %v2256 = vand.u32 2147483647, %v2199
        %v2257 = vand.u32 2147483647, %v2200
        %v2258 = vand.u32 2147483647, %v2201
        %v2259 = vand.u32 2147483647, %v2202
        %v2260 = vand.u32 2147483647, %v2203
        %v2261 = vand.u32 2147483647, %v2204
        %v2262 = vand.u32 2147483647, %v2205
        %v2263 = vand.u32 2147483647, %v2206
        %v2264 = vand.u32 2147483647, %v2207
        %v2265 = vand.u32 2147483647, %v2208
        %v2266 = vand.u32 2147483647, %v2209
        %v2267 = vand.u32 2147483647, %v2210
        %v2268 = vand.u32 2147483647, %v2211
        %v2269 = vand.u32 2147483647, %v2212
        %v2270 = vand.u32 2147483647, %v2213
        %v2271 = vand.u32 2147483647, %v2214
        %v2272 = vand.u32 2147483647, %v2215
        %v2273 = vand.u32 2147483647, %v2216
        %v2274 = vsub.f32 1.0, %v2217
        %v2275 = vsub.f32 1.0, %v2218
        %v2276 = vsub.f32 1.0, %v2219
        %v2277 = vsub.f32 1.0, %v2220
        %v2278 = vsub.f32 1.0, %v2221
        %v2279 = vsub.f32 1.0, %v2222
        %v2280 = vsub.f32 1.0, %v2223
        %v2281 = vsub.f32 1.0, %v2224
        %v2282 = vsub.f32 1.0, %v2225
        %v2283 = vsub.f32 1.0, %v2226
        %v2284 = vsub.f32 1.0, %v2227
        %v2285 = vsub.f32 1.0, %v2228
        %v2286 = vsub.f32 1.0, %v2229
        %v2287 = vsub.f32 1.0, %v2230
        %v2288 = vsub.f32 1.0, %v2231
        %v2289 = vsub.f32 1.0, %v2232
        %v2290 = vsub.f32 1.0, %v2233
        %v2291 = vsub.f32 1.0, %v2234
        %v2292 = vsub.f32 1.0, %v2235
        %v2293 = vsub.f32 1.0, %v2236
        %v2294 = vsub.f32 1.0, %v2237
        %v2295 = vsub.f32 1.0, %v2238
        %v2296 = vsub.f32 1.0, %v2239
        %v2297 = vsub.f32 1.0, %v2240
        %v2298 = vsub.f32 1.0, %v2241
        %v2299 = vsub.f32 1.0, %v2242
        %v2300 = vsub.f32 1.0, %v2243
        %v2301 = vsub.f32 1.0, %v2244
        %v2302 = vsub.f32 1.0, %v2245
        %v2303 = vsub.f32 1.0, %v2246
        %v2304 = vsub.f32 1.0, %v2247
        %v2305 = vsub.f32 1.0, %v2248
        %v2306 = vsub.f32 1.0, %v2249
        %v2307 = vsub.f32 1.0, %v2250
        %v2308 = vsub.f32 1.0, %v2251
        %v2309 = vsub.f32 1.0, %v2252
        %v2310 = vsub.f32 1.0, %v2253
        %v2311 = vsub.f32 1.0, %v2254
        %v2312 = vsub.f32 1.0, %v2255
        %v2313 = vsub.f32 1.0, %v2256
        %v2314 = vsub.f32 1.0, %v2257
        %v2315 = vsub.f32 1.0, %v2258
        %v2316 = vsub.f32 1.0, %v2259
        %v2317 = vsub.f32 1.0, %v2260
        %v2318 = vsub.f32 1.0, %v2261
        %v2319 = vsub.f32 1.0, %v2262
        %v2320 = vsub.f32 1.0, %v2263
        %v2321 = vsub.f32 1.0, %v2264
        %v2322 = vsub.f32 1.0, %v2265
        %v2323 = vsub.f32 1.0, %v2266
        %v2324 = vsub.f32 1.0, %v2267
        %v2325 = vsub.f32 1.0, %v2268
        %v2326 = vsub.f32 1.0, %v2269
        %v2327 = vsub.f32 1.0, %v2270
        %v2328 = vsub.f32 1.0, %v2271
        %v2329 = vsub.f32 1.0, %v2272
        %v2330 = vsub.f32 1.0, %v2273
        %v2331 = vmax.f32 %v2274, 0.0
        %v2332 = vmax.f32 %v2275, 0.0
        %v2333 = vmax.f32 %v2276, 0.0
        %v2334 = vmax.f32 %v2277, 0.0
        %v2335 = vmax.f32 %v2278, 0.0
        %v2336 = vmax.f32 %v2279, 0.0
        %v2337 = vmax.f32 %v2280, 0.0
        %v2338 = vmax.f32 %v2281, 0.0
        %v2339 = vmax.f32 %v2282, 0.0
        %v2340 = vmax.f32 %v2283, 0.0
        %v2341 = vmax.f32 %v2284, 0.0
        %v2342 = vmax.f32 %v2285, 0.0
        %v2343 = vmax.f32 %v2286, 0.0
        %v2344 = vmax.f32 %v2287, 0.0
        %v2345 = vmax.f32 %v2288, 0.0
        %v2346 = vmax.f32 %v2289, 0.0
        %v2347 = vmax.f32 %v2290, 0.0
        %v2348 = vmax.f32 %v2291, 0.0
        %v2349 = vmax.f32 %v2292, 0.0
        %v2350 = vmax.f32 %v2293, 0.0
        %v2351 = vmax.f32 %v2294, 0.0
        %v2352 = vmax.f32 %v2295, 0.0
        %v2353 = vmax.f32 %v2296, 0.0
        %v2354 = vmax.f32 %v2297, 0.0
        %v2355 = vmax.f32 %v2298, 0.0
        %v2356 = vmax.f32 %v2299, 0.0
        %v2357 = vmax.f32 %v2300, 0.0
        %v2358 = vmax.f32 %v2301, 0.0
        %v2359 = vmax.f32 %v2302, 0.0
        %v2360 = vmax.f32 %v2303, 0.0
        %v2361 = vmax.f32 %v2304, 0.0
        %v2362 = vmax.f32 %v2305, 0.0
        %v2363 = vmax.f32 %v2306, 0.0
        %v2364 = vmax.f32 %v2307, 0.0
        %v2365 = vmax.f32 %v2308, 0.0
        %v2366 = vmax.f32 %v2309, 0.0
        %v2367 = vmax.f32 %v2310, 0.0
        %v2368 = vmax.f32 %v2311, 0.0
        %v2369 = vmax.f32 %v2312, 0.0
        %v2370 = vmax.f32 %v2313, 0.0
        %v2371 = vmax.f32 %v2314, 0.0
        %v2372 = vmax.f32 %v2315, 0.0
        %v2373 = vmax.f32 %v2316, 0.0
        %v2374 = vmax.f32 %v2317, 0.0
        %v2375 = vmax.f32 %v2318, 0.0
        %v2376 = vmax.f32 %v2319, 0.0
        %v2377 = vmax.f32 %v2320, 0.0
        %v2378 = vmax.f32 %v2321, 0.0
        %v2379 = vmax.f32 %v2322, 0.0
        %v2380 = vmax.f32 %v2323, 0.0
        %v2381 = vmax.f32 %v2324, 0.0
        %v2382 = vmax.f32 %v2325, 0.0
        %v2383 = vmax.f32 %v2326, 0.0
        %v2384 = vmax.f32 %v2327, 0.0
        %v2385 = vmax.f32 %v2328, 0.0
        %v2386 = vmax.f32 %v2329, 0.0
        %v2387 = vmax.f32 %v2330, 0.0
        %v2388 = vmul.f32 %v2027, %v2331
        %v2389 = vmul.f32 %v2028, %v2332
        %v2390 = vmul.f32 %v2029, %v2333
        %v2391 = vmul.f32 %v2030, %v2334
        %v2392 = vmul.f32 %v2031, %v2335
        %v2393 = vmul.f32 %v2032, %v2336
        %v2394 = vmul.f32 %v2033, %v2337
        %v2395 = vmul.f32 %v2034, %v2338
        %v2396 = vmul.f32 %v2035, %v2339
        %v2397 = vmul.f32 %v2036, %v2340
        %v2398 = vmul.f32 %v2037, %v2341
        %v2399 = vmul.f32 %v2038, %v2342
        %v2400 = vmul.f32 %v2039, %v2343
        %v2401 = vmul.f32 %v2040, %v2344
        %v2402 = vmul.f32 %v2041, %v2345
        %v2403 = vmul.f32 %v2042, %v2346
        %v2404 = vmul.f32 %v2043, %v2347
        %v2405 = vmul.f32 %v2044, %v2348
        %v2406 = vmul.f32 %v2045, %v2349
        %v2407 = vmul.f32 %v2046, %v2350
        %v2408 = vmul.f32 %v2047, %v2351
        %v2409 = vmul.f32 %v2048, %v2352
        %v2410 = vmul.f32 %v2049, %v2353
        %v2411 = vmul.f32 %v2050, %v2354
        %v2412 = vmul.f32 %v2051, %v2355
        %v2413 = vmul.f32 %v2052, %v2356
        %v2414 = vmul.f32 %v2053, %v2357
        %v2415 = vmul.f32 %v2054, %v2358
        %v2416 = vmul.f32 %v2055, %v2359
        %v2417 = vmul.f32 %v2056, %v2360
        %v2418 = vmul.f32 %v2057, %v2361
        %v2419 = vmul.f32 %v2058, %v2362
        %v2420 = vmul.f32 %v2059, %v2363
        %v2421 = vmul.f32 %v2060, %v2364
        %v2422 = vmul.f32 %v2061, %v2365
        %v2423 = vmul.f32 %v2062, %v2366
        %v2424 = vmul.f32 %v2063, %v2367
        %v2425 = vmul.f32 %v2064, %v2368
        %v2426 = vmul.f32 %v2065, %v2369
        %v2427 = vmul.f32 %v2066, %v2370
        %v2428 = vmul.f32 %v2067, %v2371
        %v2429 = vmul.f32 %v2068, %v2372
        %v2430 = vmul.f32 %v2069, %v2373
        %v2431 = vmul.f32 %v2070, %v2374
        %v2432 = vmul.f32 %v2071, %v2375
        %v2433 = vmul.f32 %v2072, %v2376
        %v2434 = vmul.f32 %v2073, %v2377
        %v2435 = vmul.f32 %v2074, %v2378
        %v2436 = vmul.f32 %v2075, %v2379
        %v2437 = vmul.f32 %v2076, %v2380
        %v2438 = vmul.f32 %v2077, %v2381
        %v2439 = vmul.f32 %v2078, %v2382
        %v2440 = vmul.f32 %v2079, %v2383
        %v2441 = vmul.f32 %v2080, %v2384
        %v2442 = vmul.f32 %v2081, %v2385
        %v2443 = vmul.f32 %v2082, %v2386
        %v2444 = vmul.f32 %v2083, %v2387
        %2445 = vst [vmem:[#allocation2 + $0x30] sm:$0xff] %v2388
        %2446 = vst [vmem:[#allocation2 + $0x38] sm:$0xff] %v2389
        %2447 = vst [vmem:[#allocation2 + $0x40] sm:$0xff] %v2390
        %2448 = vst [vmem:[#allocation2 + $0x78] sm:$0xff] %v2391
        %2449 = vst [vmem:[#allocation2 + $0x80] sm:$0xff] %v2392
        %2450 = vst [vmem:[#allocation2 + $0x88] sm:$0xff] %v2393
        %2451 = vst [vmem:[#allocation2 + $0xc0] sm:$0xff] %v2394
        %2452 = vst [vmem:[#allocation2 + $0xc8] sm:$0xff] %v2395
        %2453 = vst [vmem:[#allocation2 + $0xd0] sm:$0xff] %v2396
        %2454 = vst [vmem:[#allocation2 + $0x108] sm:$0xff] %v2397
        %2455 = vst [vmem:[#allocation2 + $0x110] sm:$0xff] %v2398
        %2456 = vst [vmem:[#allocation2 + $0x118] sm:$0xff] %v2399
        %2457 = vst [vmem:[#allocation2 + $0x150] sm:$0xff] %v2400
        %2458 = vst [vmem:[#allocation2 + $0x158] sm:$0xff] %v2401
        %2459 = vst [vmem:[#allocation2 + $0x160] sm:$0xff] %v2402
        %2460 = vst [vmem:[#allocation2 + $0x198] sm:$0xff] %v2403
        %2461 = vst [vmem:[#allocation2 + $0x1a0] sm:$0xff] %v2404
        %2462 = vst [vmem:[#allocation2 + $0x1a8] sm:$0xff] %v2405
        %2463 = vst [vmem:[#allocation2 + $0x1e0] sm:$0xff] %v2406
        %2464 = vst [vmem:[#allocation2 + $0x1e8] sm:$0xff] %v2407
        %2465 = vst [vmem:[#allocation2 + $0x1f0] sm:$0xff] %v2408
        %2466 = vst [vmem:[#allocation2 + $0x228] sm:$0xff] %v2409
        %2467 = vst [vmem:[#allocation2 + $0x230] sm:$0xff] %v2410
        %2468 = vst [vmem:[#allocation2 + $0x238] sm:$0xff] %v2411
        %2469 = vst [vmem:[#allocation2 + $0x270] sm:$0xff] %v2412
        %2470 = vst [vmem:[#allocation2 + $0x278] sm:$0xff] %v2413
        %2471 = vst [vmem:[#allocation2 + $0x280] sm:$0xff] %v2414
        %2472 = vst [vmem:[#allocation2 + $0x2b8] sm:$0xff] %v2415
        %2473 = vst [vmem:[#allocation2 + $0x2c0] sm:$0xff] %v2416
        %2474 = vst [vmem:[#allocation2 + $0x2c8] sm:$0xff] %v2417
        %2475 = vst [vmem:[#allocation2 + $0x300] sm:$0xff] %v2418
        %2476 = vst [vmem:[#allocation2 + $0x308] sm:$0xff] %v2419
        %2477 = vst [vmem:[#allocation2 + $0x310] sm:$0xff] %v2420
        %2478 = vst [vmem:[#allocation2 + $0x348] sm:$0xff] %v2421
        %2479 = vst [vmem:[#allocation2 + $0x350] sm:$0xff] %v2422
        %2480 = vst [vmem:[#allocation2 + $0x358] sm:$0xff] %v2423
        %2481 = vst [vmem:[#allocation2 + $0x390] sm:$0xff] %v2424
        %2482 = vst [vmem:[#allocation2 + $0x398] sm:$0xff] %v2425
        %2483 = vst [vmem:[#allocation2 + $0x3a0] sm:$0xff] %v2426
        %2484 = vst [vmem:[#allocation2 + $0x3d8] sm:$0xff] %v2427
        %2485 = vst [vmem:[#allocation2 + $0x3e0] sm:$0xff] %v2428
        %2486 = vst [vmem:[#allocation2 + $0x3e8] sm:$0xff] %v2429
        %2487 = vst [vmem:[#allocation2 + $0x420] sm:$0xff] %v2430
        %2488 = vst [vmem:[#allocation2 + $0x428] sm:$0xff] %v2431
        %2489 = vst [vmem:[#allocation2 + $0x430] sm:$0xff] %v2432
        %2490 = vst [vmem:[#allocation2 + $0x468] sm:$0xff] %v2433
        %2491 = vst [vmem:[#allocation2 + $0x470] sm:$0xff] %v2434
        %2492 = vst [vmem:[#allocation2 + $0x478] sm:$0xff] %v2435
        %2493 = vst [vmem:[#allocation2 + $0x4b0] sm:$0xff] %v2436
        %2494 = vst [vmem:[#allocation2 + $0x4b8] sm:$0xff] %v2437
        %2495 = vst [vmem:[#allocation2 + $0x4c0] sm:$0xff] %v2438
        %2496 = vst [vmem:[#allocation2 + $0x4f8] sm:$0xff] %v2439
        %2497 = vst [vmem:[#allocation2 + $0x500] sm:$0xff] %v2440
        %2498 = vst [vmem:[#allocation2 + $0x508] sm:$0xff] %v2441
        %2499 = vst [vmem:[#allocation2 + $0x540] sm:$0xff] %v2442
        %2500 = vst [vmem:[#allocation2 + $0x548] sm:$0xff] %v2443
        %2501 = vst [vmem:[#allocation2 + $0x550] sm:$0xff] %v2444
        %v2502 = vld [vmem:[#allocation2] sm:$0xff]
        %v2503 = vld [vmem:[#allocation2 + $0x8] sm:$0xff]
        %v2504 = vld [vmem:[#allocation2 + $0x10] sm:$0xff]
        %v2505 = vld [vmem:[#allocation2 + $0x18] sm:$0xff]
        %v2506 = vld [vmem:[#allocation2 + $0x20] sm:$0xff]
        %v2507 = vld [vmem:[#allocation2 + $0x28] sm:$0xff]
        %v2508 = vld [vmem:[#allocation2 + $0x30] sm:$0xff]
        %v2509 = vld [vmem:[#allocation2 + $0x38] sm:$0xff]
        %v2510 = vld [vmem:[#allocation2 + $0x40] sm:$0xff]
        %v2511 = vld [vmem:[#allocation2 + $0x48] sm:$0xff]
        %v2512 = vld [vmem:[#allocation2 + $0x50] sm:$0xff]
        %v2513 = vld [vmem:[#allocation2 + $0x58] sm:$0xff]
        %v2514 = vld [vmem:[#allocation2 + $0x60] sm:$0xff]
        %v2515 = vld [vmem:[#allocation2 + $0x68] sm:$0xff]
        %v2516 = vld [vmem:[#allocation2 + $0x70] sm:$0xff]
        %v2517 = vld [vmem:[#allocation2 + $0x78] sm:$0xff]
        %v2518 = vld [vmem:[#allocation2 + $0x80] sm:$0xff]
        %v2519 = vld [vmem:[#allocation2 + $0x88] sm:$0xff]
        %v2520 = vld [vmem:[#allocation2 + $0x90] sm:$0xff]
        %v2521 = vld [vmem:[#allocation2 + $0x98] sm:$0xff]
        %v2522 = vld [vmem:[#allocation2 + $0xa0] sm:$0xff]
        %v2523 = vld [vmem:[#allocation2 + $0xa8] sm:$0xff]
        %v2524 = vld [vmem:[#allocation2 + $0xb0] sm:$0xff]
        %v2525 = vld [vmem:[#allocation2 + $0xb8] sm:$0xff]
        %v2526 = vld [vmem:[#allocation2 + $0xc0] sm:$0xff]
        %v2527 = vld [vmem:[#allocation2 + $0xc8] sm:$0xff]
        %v2528 = vld [vmem:[#allocation2 + $0xd0] sm:$0xff]
        %v2529 = vld [vmem:[#allocation2 + $0xd8] sm:$0xff]
        %v2530 = vld [vmem:[#allocation2 + $0xe0] sm:$0xff]
        %v2531 = vld [vmem:[#allocation2 + $0xe8] sm:$0xff]
        %v2532 = vld [vmem:[#allocation2 + $0xf0] sm:$0xff]
        %v2533 = vld [vmem:[#allocation2 + $0xf8] sm:$0xff]
        %v2534 = vld [vmem:[#allocation2 + $0x100] sm:$0xff]
        %v2535 = vld [vmem:[#allocation2 + $0x108] sm:$0xff]
        %v2536 = vld [vmem:[#allocation2 + $0x110] sm:$0xff]
        %v2537 = vld [vmem:[#allocation2 + $0x118] sm:$0xff]
        %v2538 = vld [vmem:[#allocation2 + $0x120] sm:$0xff]
        %v2539 = vld [vmem:[#allocation2 + $0x128] sm:$0xff]
        %v2540 = vld [vmem:[#allocation2 + $0x130] sm:$0xff]
        %v2541 = vld [vmem:[#allocation2 + $0x138] sm:$0xff]
        %v2542 = vld [vmem:[#allocation2 + $0x140] sm:$0xff]
        %v2543 = vld [vmem:[#allocation2 + $0x148] sm:$0xff]
        %v2544 = vld [vmem:[#allocation2 + $0x150] sm:$0xff]
        %v2545 = vld [vmem:[#allocation2 + $0x158] sm:$0xff]
        %v2546 = vld [vmem:[#allocation2 + $0x160] sm:$0xff]
        %v2547 = vld [vmem:[#allocation2 + $0x168] sm:$0xff]
        %v2548 = vld [vmem:[#allocation2 + $0x170] sm:$0xff]
        %v2549 = vld [vmem:[#allocation2 + $0x178] sm:$0xff]
        %v2550 = vld [vmem:[#allocation2 + $0x180] sm:$0xff]
        %v2551 = vld [vmem:[#allocation2 + $0x188] sm:$0xff]
        %v2552 = vld [vmem:[#allocation2 + $0x190] sm:$0xff]
        %v2553 = vld [vmem:[#allocation2 + $0x198] sm:$0xff]
        %v2554 = vld [vmem:[#allocation2 + $0x1a0] sm:$0xff]
        %v2555 = vld [vmem:[#allocation2 + $0x1a8] sm:$0xff]
        %v2556 = vld [vmem:[#allocation2 + $0x1b0] sm:$0xff]
        %v2557 = vld [vmem:[#allocation2 + $0x1b8] sm:$0xff]
        %v2558 = vld [vmem:[#allocation2 + $0x1c0] sm:$0xff]
        %v2559 = vld [vmem:[#allocation2 + $0x1c8] sm:$0xff]
        %v2560 = vld [vmem:[#allocation2 + $0x1d0] sm:$0xff]
        %v2561 = vld [vmem:[#allocation2 + $0x1d8] sm:$0xff]
        %v2562 = vld [vmem:[#allocation2 + $0x1e0] sm:$0xff]
        %v2563 = vld [vmem:[#allocation2 + $0x1e8] sm:$0xff]
        %v2564 = vld [vmem:[#allocation2 + $0x1f0] sm:$0xff]
        %v2565 = vld [vmem:[#allocation2 + $0x1f8] sm:$0xff]
        %v2566 = vld [vmem:[#allocation2 + $0x200] sm:$0xff]
        %v2567 = vld [vmem:[#allocation2 + $0x208] sm:$0xff]
        %v2568 = vld [vmem:[#allocation2 + $0x210] sm:$0xff]
        %v2569 = vld [vmem:[#allocation2 + $0x218] sm:$0xff]
        %v2570 = vld [vmem:[#allocation2 + $0x220] sm:$0xff]
        %v2571 = vld [vmem:[#allocation2 + $0x228] sm:$0xff]
        %v2572 = vld [vmem:[#allocation2 + $0x230] sm:$0xff]
        %v2573 = vld [vmem:[#allocation2 + $0x238] sm:$0xff]
        %v2574 = vld [vmem:[#allocation2 + $0x240] sm:$0xff]
        %v2575 = vld [vmem:[#allocation2 + $0x248] sm:$0xff]
        %v2576 = vld [vmem:[#allocation2 + $0x250] sm:$0xff]
        %v2577 = vld [vmem:[#allocation2 + $0x258] sm:$0xff]
        %v2578 = vld [vmem:[#allocation2 + $0x260] sm:$0xff]
        %v2579 = vld [vmem:[#allocation2 + $0x268] sm:$0xff]
        %v2580 = vld [vmem:[#allocation2 + $0x270] sm:$0xff]
        %v2581 = vld [vmem:[#allocation2 + $0x278] sm:$0xff]
        %v2582 = vld [vmem:[#allocation2 + $0x280] sm:$0xff]
        %v2583 = vld [vmem:[#allocation2 + $0x288] sm:$0xff]
        %v2584 = vld [vmem:[#allocation2 + $0x290] sm:$0xff]
        %v2585 = vld [vmem:[#allocation2 + $0x298] sm:$0xff]
        %v2586 = vld [vmem:[#allocation2 + $0x2a0] sm:$0xff]
        %v2587 = vld [vmem:[#allocation2 + $0x2a8] sm:$0xff]
        %v2588 = vld [vmem:[#allocation2 + $0x2b0] sm:$0xff]
        %v2589 = vld [vmem:[#allocation2 + $0x2b8] sm:$0xff]
        %v2590 = vld [vmem:[#allocation2 + $0x2c0] sm:$0xff]
        %v2591 = vld [vmem:[#allocation2 + $0x2c8] sm:$0xff]
        %v2592 = vld [vmem:[#allocation2 + $0x2d0] sm:$0xff]
        %v2593 = vld [vmem:[#allocation2 + $0x2d8] sm:$0xff]
        %v2594 = vld [vmem:[#allocation2 + $0x2e0] sm:$0xff]
        %v2595 = vld [vmem:[#allocation2 + $0x2e8] sm:$0xff]
        %v2596 = vld [vmem:[#allocation2 + $0x2f0] sm:$0xff]
        %v2597 = vld [vmem:[#allocation2 + $0x2f8] sm:$0xff]
        %v2598 = vld [vmem:[#allocation2 + $0x300] sm:$0xff]
        %v2599 = vld [vmem:[#allocation2 + $0x308] sm:$0xff]
        %v2600 = vld [vmem:[#allocation2 + $0x310] sm:$0xff]
        %v2601 = vld [vmem:[#allocation2 + $0x318] sm:$0xff]
        %v2602 = vld [vmem:[#allocation2 + $0x320] sm:$0xff]
        %v2603 = vld [vmem:[#allocation2 + $0x328] sm:$0xff]
        %v2604 = vld [vmem:[#allocation2 + $0x330] sm:$0xff]
        %v2605 = vld [vmem:[#allocation2 + $0x338] sm:$0xff]
        %v2606 = vld [vmem:[#allocation2 + $0x340] sm:$0xff]
        %v2607 = vld [vmem:[#allocation2 + $0x348] sm:$0xff]
        %v2608 = vld [vmem:[#allocation2 + $0x350] sm:$0xff]
        %v2609 = vld [vmem:[#allocation2 + $0x358] sm:$0xff]
        %v2610 = vld [vmem:[#allocation2 + $0x360] sm:$0xff]
        %v2611 = vld [vmem:[#allocation2 + $0x368] sm:$0xff]
        %v2612 = vld [vmem:[#allocation2 + $0x370] sm:$0xff]
        %v2613 = vld [vmem:[#allocation2 + $0x378] sm:$0xff]
        %v2614 = vld [vmem:[#allocation2 + $0x380] sm:$0xff]
        %v2615 = vld [vmem:[#allocation2 + $0x388] sm:$0xff]
        %v2616 = vld [vmem:[#allocation2 + $0x390] sm:$0xff]
        %v2617 = vld [vmem:[#allocation2 + $0x398] sm:$0xff]
        %v2618 = vld [vmem:[#allocation2 + $0x3a0] sm:$0xff]
        %v2619 = vld [vmem:[#allocation2 + $0x3a8] sm:$0xff]
        %v2620 = vld [vmem:[#allocation2 + $0x3b0] sm:$0xff]
        %v2621 = vld [vmem:[#allocation2 + $0x3b8] sm:$0xff]
        %v2622 = vld [vmem:[#allocation2 + $0x3c0] sm:$0xff]
        %v2623 = vld [vmem:[#allocation2 + $0x3c8] sm:$0xff]
        %v2624 = vld [vmem:[#allocation2 + $0x3d0] sm:$0xff]
        %v2625 = vld [vmem:[#allocation2 + $0x3d8] sm:$0xff]
        %v2626 = vld [vmem:[#allocation2 + $0x3e0] sm:$0xff]
        %v2627 = vld [vmem:[#allocation2 + $0x3e8] sm:$0xff]
        %v2628 = vld [vmem:[#allocation2 + $0x3f0] sm:$0xff]
        %v2629 = vld [vmem:[#allocation2 + $0x3f8] sm:$0xff]
        %v2630 = vld [vmem:[#allocation2 + $0x400] sm:$0xff]
        %v2631 = vld [vmem:[#allocation2 + $0x408] sm:$0xff]
        %v2632 = vld [vmem:[#allocation2 + $0x410] sm:$0xff]
        %v2633 = vld [vmem:[#allocation2 + $0x418] sm:$0xff]
        %v2634 = vld [vmem:[#allocation2 + $0x420] sm:$0xff]
        %v2635 = vld [vmem:[#allocation2 + $0x428] sm:$0xff]
        %v2636 = vld [vmem:[#allocation2 + $0x430] sm:$0xff]
        %v2637 = vld [vmem:[#allocation2 + $0x438] sm:$0xff]
        %v2638 = vld [vmem:[#allocation2 + $0x440] sm:$0xff]
        %v2639 = vld [vmem:[#allocation2 + $0x448] sm:$0xff]
        %v2640 = vld [vmem:[#allocation2 + $0x450] sm:$0xff]
        %v2641 = vld [vmem:[#allocation2 + $0x458] sm:$0xff]
        %v2642 = vld [vmem:[#allocation2 + $0x460] sm:$0xff]
        %v2643 = vld [vmem:[#allocation2 + $0x468] sm:$0xff]
        %v2644 = vld [vmem:[#allocation2 + $0x470] sm:$0xff]
        %v2645 = vld [vmem:[#allocation2 + $0x478] sm:$0xff]
        %v2646 = vld [vmem:[#allocation2 + $0x480] sm:$0xff]
        %v2647 = vld [vmem:[#allocation2 + $0x488] sm:$0xff]
        %v2648 = vld [vmem:[#allocation2 + $0x490] sm:$0xff]
        %v2649 = vld [vmem:[#allocation2 + $0x498] sm:$0xff]
        %v2650 = vld [vmem:[#allocation2 + $0x4a0] sm:$0xff]
        %v2651 = vld [vmem:[#allocation2 + $0x4a8] sm:$0xff]
        %v2652 = vld [vmem:[#allocation2 + $0x4b0] sm:$0xff]
        %v2653 = vld [vmem:[#allocation2 + $0x4b8] sm:$0xff]
        %v2654 = vld [vmem:[#allocation2 + $0x4c0] sm:$0xff]
        %v2655 = vld [vmem:[#allocation2 + $0x4c8] sm:$0xff]
        %v2656 = vld [vmem:[#allocation2 + $0x4d0] sm:$0xff]
        %v2657 = vld [vmem:[#allocation2 + $0x4d8] sm:$0xff]
        %v2658 = vld [vmem:[#allocation2 + $0x4e0] sm:$0xff]
        %v2659 = vld [vmem:[#allocation2 + $0x4e8] sm:$0xff]
        %v2660 = vld [vmem:[#allocation2 + $0x4f0] sm:$0xff]
        %v2661 = vld [vmem:[#allocation2 + $0x4f8] sm:$0xff]
        %v2662 = vld [vmem:[#allocation2 + $0x500] sm:$0xff]
        %v2663 = vld [vmem:[#allocation2 + $0x508] sm:$0xff]
        %v2664 = vld [vmem:[#allocation2 + $0x510] sm:$0xff]
        %v2665 = vld [vmem:[#allocation2 + $0x518] sm:$0xff]
        %v2666 = vld [vmem:[#allocation2 + $0x520] sm:$0xff]
        %v2667 = vld [vmem:[#allocation2 + $0x528] sm:$0xff]
        %v2668 = vld [vmem:[#allocation2 + $0x530] sm:$0xff]
        %v2669 = vld [vmem:[#allocation2 + $0x538] sm:$0xff]
        %v2670 = vld [vmem:[#allocation2 + $0x540] sm:$0xff]
        %v2671 = vld [vmem:[#allocation2 + $0x548] sm:$0xff]
        %v2672 = vld [vmem:[#allocation2 + $0x550] sm:$0xff]
        %v2673 = vld [vmem:[#allocation3] sm:$0xff]
        %v2674 = vld [vmem:[#allocation3 + $0x8] sm:$0xff]
        %v2675 = vld [vmem:[#allocation3 + $0x10] sm:$0xff]
        %v2676 = vld [vmem:[#allocation3 + $0x18] sm:$0xff]
        %v2677 = vld [vmem:[#allocation3 + $0x20] sm:$0xff]
        %v2678 = vld [vmem:[#allocation3 + $0x28] sm:$0xff]
        %v2679 = vld [vmem:[#allocation3 + $0x30] sm:$0xff]
        %v2680 = vld [vmem:[#allocation3 + $0x38] sm:$0xff]
        %v2681 = vld [vmem:[#allocation3 + $0x40] sm:$0xff]
        %v2682 = vld [vmem:[#allocation3 + $0x48] sm:$0xff]
        %v2683 = vld [vmem:[#allocation3 + $0x50] sm:$0xff]
        %v2684 = vld [vmem:[#allocation3 + $0x58] sm:$0xff]
        %v2685 = vld [vmem:[#allocation3 + $0x60] sm:$0xff]
        %v2686 = vld [vmem:[#allocation3 + $0x68] sm:$0xff]
        %v2687 = vld [vmem:[#allocation3 + $0x70] sm:$0xff]
        %v2688 = vld [vmem:[#allocation3 + $0x78] sm:$0xff]
        %v2689 = vld [vmem:[#allocation3 + $0x80] sm:$0xff]
        %v2690 = vld [vmem:[#allocation3 + $0x88] sm:$0xff]
        %v2691 = vld [vmem:[#allocation3 + $0x90] sm:$0xff]
        %v2692 = vld [vmem:[#allocation3 + $0x98] sm:$0xff]
        %v2693 = vld [vmem:[#allocation3 + $0xa0] sm:$0xff]
        %v2694 = vld [vmem:[#allocation3 + $0xa8] sm:$0xff]
        %v2695 = vld [vmem:[#allocation3 + $0xb0] sm:$0xff]
        %v2696 = vld [vmem:[#allocation3 + $0xb8] sm:$0xff]
        %v2697 = vld [vmem:[#allocation3 + $0xc0] sm:$0xff]
        %v2698 = vld [vmem:[#allocation3 + $0xc8] sm:$0xff]
        %v2699 = vld [vmem:[#allocation3 + $0xd0] sm:$0xff]
        %v2700 = vld [vmem:[#allocation3 + $0xd8] sm:$0xff]
        %v2701 = vld [vmem:[#allocation3 + $0xe0] sm:$0xff]
        %v2702 = vld [vmem:[#allocation3 + $0xe8] sm:$0xff]
        %v2703 = vld [vmem:[#allocation3 + $0xf0] sm:$0xff]
        %v2704 = vld [vmem:[#allocation3 + $0xf8] sm:$0xff]
        %v2705 = vld [vmem:[#allocation3 + $0x100] sm:$0xff]
        %v2706 = vld [vmem:[#allocation3 + $0x108] sm:$0xff]
        %v2707 = vld [vmem:[#allocation3 + $0x110] sm:$0xff]
        %v2708 = vld [vmem:[#allocation3 + $0x118] sm:$0xff]
        %v2709 = vld [vmem:[#allocation3 + $0x120] sm:$0xff]
        %v2710 = vld [vmem:[#allocation3 + $0x128] sm:$0xff]
        %v2711 = vld [vmem:[#allocation3 + $0x130] sm:$0xff]
        %v2712 = vld [vmem:[#allocation3 + $0x138] sm:$0xff]
        %v2713 = vld [vmem:[#allocation3 + $0x140] sm:$0xff]
        %v2714 = vld [vmem:[#allocation3 + $0x148] sm:$0xff]
        %v2715 = vld [vmem:[#allocation3 + $0x150] sm:$0xff]
        %v2716 = vld [vmem:[#allocation3 + $0x158] sm:$0xff]
        %v2717 = vld [vmem:[#allocation3 + $0x160] sm:$0xff]
        %v2718 = vld [vmem:[#allocation3 + $0x168] sm:$0xff]
        %v2719 = vld [vmem:[#allocation3 + $0x170] sm:$0xff]
        %v2720 = vld [vmem:[#allocation3 + $0x178] sm:$0xff]
        %v2721 = vld [vmem:[#allocation3 + $0x180] sm:$0xff]
        %v2722 = vld [vmem:[#allocation3 + $0x188] sm:$0xff]
        %v2723 = vld [vmem:[#allocation3 + $0x190] sm:$0xff]
        %v2724 = vld [vmem:[#allocation3 + $0x198] sm:$0xff]
        %v2725 = vld [vmem:[#allocation3 + $0x1a0] sm:$0xff]
        %v2726 = vld [vmem:[#allocation3 + $0x1a8] sm:$0xff]
        %v2727 = vld [vmem:[#allocation3 + $0x1b0] sm:$0xff]
        %v2728 = vld [vmem:[#allocation3 + $0x1b8] sm:$0xff]
        %v2729 = vld [vmem:[#allocation3 + $0x1c0] sm:$0xff]
        %v2730 = vld [vmem:[#allocation3 + $0x1c8] sm:$0xff]
        %v2731 = vld [vmem:[#allocation3 + $0x1d0] sm:$0xff]
        %v2732 = vld [vmem:[#allocation3 + $0x1d8] sm:$0xff]
        %v2733 = vld [vmem:[#allocation3 + $0x1e0] sm:$0xff]
        %v2734 = vld [vmem:[#allocation3 + $0x1e8] sm:$0xff]
        %v2735 = vld [vmem:[#allocation3 + $0x1f0] sm:$0xff]
        %v2736 = vld [vmem:[#allocation3 + $0x1f8] sm:$0xff]
        %v2737 = vld [vmem:[#allocation3 + $0x200] sm:$0xff]
        %v2738 = vld [vmem:[#allocation3 + $0x208] sm:$0xff]
        %v2739 = vld [vmem:[#allocation3 + $0x210] sm:$0xff]
        %v2740 = vld [vmem:[#allocation3 + $0x218] sm:$0xff]
        %v2741 = vld [vmem:[#allocation3 + $0x220] sm:$0xff]
        %v2742 = vld [vmem:[#allocation3 + $0x228] sm:$0xff]
        %v2743 = vld [vmem:[#allocation3 + $0x230] sm:$0xff]
        %v2744 = vld [vmem:[#allocation3 + $0x238] sm:$0xff]
        %v2745 = vld [vmem:[#allocation3 + $0x240] sm:$0xff]
        %v2746 = vld [vmem:[#allocation3 + $0x248] sm:$0xff]
        %v2747 = vld [vmem:[#allocation3 + $0x250] sm:$0xff]
        %v2748 = vld [vmem:[#allocation3 + $0x258] sm:$0xff]
        %v2749 = vld [vmem:[#allocation3 + $0x260] sm:$0xff]
        %v2750 = vld [vmem:[#allocation3 + $0x268] sm:$0xff]
        %v2751 = vld [vmem:[#allocation3 + $0x270] sm:$0xff]
        %v2752 = vld [vmem:[#allocation3 + $0x278] sm:$0xff]
        %v2753 = vld [vmem:[#allocation3 + $0x280] sm:$0xff]
        %v2754 = vld [vmem:[#allocation3 + $0x288] sm:$0xff]
        %v2755 = vld [vmem:[#allocation3 + $0x290] sm:$0xff]
        %v2756 = vld [vmem:[#allocation3 + $0x298] sm:$0xff]
        %v2757 = vld [vmem:[#allocation3 + $0x2a0] sm:$0xff]
        %v2758 = vld [vmem:[#allocation3 + $0x2a8] sm:$0xff]
        %v2759 = vld [vmem:[#allocation3 + $0x2b0] sm:$0xff]
        %v2760 = vld [vmem:[#allocation3 + $0x2b8] sm:$0xff]
        %v2761 = vld [vmem:[#allocation3 + $0x2c0] sm:$0xff]
        %v2762 = vld [vmem:[#allocation3 + $0x2c8] sm:$0xff]
        %v2763 = vld [vmem:[#allocation3 + $0x2d0] sm:$0xff]
        %v2764 = vld [vmem:[#allocation3 + $0x2d8] sm:$0xff]
        %v2765 = vld [vmem:[#allocation3 + $0x2e0] sm:$0xff]
        %v2766 = vld [vmem:[#allocation3 + $0x2e8] sm:$0xff]
        %v2767 = vld [vmem:[#allocation3 + $0x2f0] sm:$0xff]
        %v2768 = vld [vmem:[#allocation3 + $0x2f8] sm:$0xff]
        %v2769 = vld [vmem:[#allocation3 + $0x300] sm:$0xff]
        %v2770 = vld [vmem:[#allocation3 + $0x308] sm:$0xff]
        %v2771 = vld [vmem:[#allocation3 + $0x310] sm:$0xff]
        %v2772 = vld [vmem:[#allocation3 + $0x318] sm:$0xff]
        %v2773 = vld [vmem:[#allocation3 + $0x320] sm:$0xff]
        %v2774 = vld [vmem:[#allocation3 + $0x328] sm:$0xff]
        %v2775 = vld [vmem:[#allocation3 + $0x330] sm:$0xff]
        %v2776 = vld [vmem:[#allocation3 + $0x338] sm:$0xff]
        %v2777 = vld [vmem:[#allocation3 + $0x340] sm:$0xff]
        %v2778 = vld [vmem:[#allocation3 + $0x348] sm:$0xff]
        %v2779 = vld [vmem:[#allocation3 + $0x350] sm:$0xff]
        %v2780 = vld [vmem:[#allocation3 + $0x358] sm:$0xff]
        %v2781 = vld [vmem:[#allocation3 + $0x360] sm:$0xff]
        %v2782 = vld [vmem:[#allocation3 + $0x368] sm:$0xff]
        %v2783 = vld [vmem:[#allocation3 + $0x370] sm:$0xff]
        %v2784 = vld [vmem:[#allocation3 + $0x378] sm:$0xff]
        %v2785 = vld [vmem:[#allocation3 + $0x380] sm:$0xff]
        %v2786 = vld [vmem:[#allocation3 + $0x388] sm:$0xff]
        %v2787 = vld [vmem:[#allocation3 + $0x390] sm:$0xff]
        %v2788 = vld [vmem:[#allocation3 + $0x398] sm:$0xff]
        %v2789 = vld [vmem:[#allocation3 + $0x3a0] sm:$0xff]
        %v2790 = vld [vmem:[#allocation3 + $0x3a8] sm:$0xff]
        %v2791 = vld [vmem:[#allocation3 + $0x3b0] sm:$0xff]
        %v2792 = vld [vmem:[#allocation3 + $0x3b8] sm:$0xff]
        %v2793 = vld [vmem:[#allocation3 + $0x3c0] sm:$0xff]
        %v2794 = vld [vmem:[#allocation3 + $0x3c8] sm:$0xff]
        %v2795 = vld [vmem:[#allocation3 + $0x3d0] sm:$0xff]
        %v2796 = vld [vmem:[#allocation3 + $0x3d8] sm:$0xff]
        %v2797 = vld [vmem:[#allocation3 + $0x3e0] sm:$0xff]
        %v2798 = vld [vmem:[#allocation3 + $0x3e8] sm:$0xff]
        %v2799 = vld [vmem:[#allocation3 + $0x3f0] sm:$0xff]
        %v2800 = vld [vmem:[#allocation3 + $0x3f8] sm:$0xff]
        %v2801 = vld [vmem:[#allocation3 + $0x400] sm:$0xff]
        %v2802 = vld [vmem:[#allocation3 + $0x408] sm:$0xff]
        %v2803 = vld [vmem:[#allocation3 + $0x410] sm:$0xff]
        %v2804 = vld [vmem:[#allocation3 + $0x418] sm:$0xff]
        %v2805 = vld [vmem:[#allocation3 + $0x420] sm:$0xff]
        %v2806 = vld [vmem:[#allocation3 + $0x428] sm:$0xff]
        %v2807 = vld [vmem:[#allocation3 + $0x430] sm:$0xff]
        %v2808 = vld [vmem:[#allocation3 + $0x438] sm:$0xff]
        %v2809 = vld [vmem:[#allocation3 + $0x440] sm:$0xff]
        %v2810 = vld [vmem:[#allocation3 + $0x448] sm:$0xff]
        %v2811 = vld [vmem:[#allocation3 + $0x450] sm:$0xff]
        %v2812 = vld [vmem:[#allocation3 + $0x458] sm:$0xff]
        %v2813 = vld [vmem:[#allocation3 + $0x460] sm:$0xff]
        %v2814 = vld [vmem:[#allocation3 + $0x468] sm:$0xff]
        %v2815 = vld [vmem:[#allocation3 + $0x470] sm:$0xff]
        %v2816 = vld [vmem:[#allocation3 + $0x478] sm:$0xff]
        %2817 = vmatprep.subr.mxu0 0.0
        %2818 = vmatpush1.msra.mxu0 %v2673
        %2819 = vmatprep.subr.mxu0 0.0
        %2820 = vmatpush1.msra.mxu0 %v2674
        %2821 = vmatprep.subr.mxu0 0.0
        %2822 = vmatpush1.msra.mxu0 %v2675
        %2823 = vmatprep.subr.mxu0 0.0
        %2824 = vmatpush1.msra.mxu0 %v2676
        %2825 = vmatprep.subr.mxu0 0.0
        %2826 = vmatpush1.msra.mxu0 %v2677
        %2827 = vmatprep.subr.mxu0 0.0
        %2828 = vmatpush1.msra.mxu0 %v2678
        %2829 = vmatprep.subr.mxu0 0.0
        %2830 = vmatpush1.msra.mxu0 %v2679
        %2831 = vmatprep.subr.mxu0 0.0
        %2832 = vmatpush1.msra.mxu0 %v2680
        %2833 = vmatprep.subr.mxu0 0.0
        %2834 = vmatpush1.msra.mxu0 %v2681
        %2835 = vmatprep.subr.mxu0 0.0
        %2836 = vmatpush1.msra.mxu0 %v2682
        %2837 = vmatprep.subr.mxu0 0.0
        %2838 = vmatpush1.msra.mxu0 %v2683
        %2839 = vmatprep.subr.mxu0 0.0
        %2840 = vmatpush1.msra.mxu0 %v2684
        %2841 = vmatprep.subr.mxu0 0.0
        %2842 = vmatpush1.msra.mxu0 %v2685
        %2843 = vmatprep.subr.mxu0 0.0
        %2844 = vmatpush1.msra.mxu0 %v2686
        %2845 = vmatprep.subr.mxu0 0.0
        %2846 = vmatpush1.msra.mxu0 %v2687
        %2847 = vmatprep.subr.mxu0 0.0
        %2848 = vmatpush1.msra.mxu0 %v2688
        %2849 = vmatprep.subr.mxu0 0.0
        %2850 = vmatpush1.msra.mxu0 %v2689
        %2851 = vmatprep.subr.mxu0 0.0
        %2852 = vmatpush1.msra.mxu0 %v2690
        %2853 = vmatprep.subr.mxu0 0.0
        %2854 = vmatpush1.msra.mxu0 %v2691
        %2855 = vmatprep.subr.mxu0 0.0
        %2856 = vmatpush1.msra.mxu0 %v2692
        %2857 = vmatprep.subr.mxu0 0.0
        %2858 = vmatpush1.msra.mxu0 %v2693
        %2859 = vmatprep.subr.mxu0 0.0
        %2860 = vmatpush1.msra.mxu0 %v2694
        %2861 = vmatprep.subr.mxu0 0.0
        %2862 = vmatpush1.msra.mxu0 %v2695
        %2863 = vmatprep.subr.mxu0 0.0
        %2864 = vmatpush1.msra.mxu0 %v2696
        %2865 = vmatprep.subr.mxu0 0.0
        %2866 = vmatpush1.msra.mxu0 %v2697
        %2867 = vmatprep.subr.mxu0 0.0
        %2868 = vmatpush1.msra.mxu0 %v2698
        %2869 = vmatprep.subr.mxu0 0.0
        %2870 = vmatpush1.msra.mxu0 %v2699
        %2871 = vmatprep.subr.mxu0 0.0
        %2872 = vmatpush1.msra.mxu0 %v2700
        %2873 = vmatprep.subr.mxu0 0.0
        %2874 = vmatpush1.msra.mxu0 %v2701
        %2875 = vmatprep.subr.mxu0 0.0
        %2876 = vmatpush1.msra.mxu0 %v2702
        %2877 = vmatprep.subr.mxu0 0.0
        %2878 = vmatpush1.msra.mxu0 %v2703
        %2879 = vmatprep.subr.mxu0 0.0
        %2880 = vmatpush1.msra.mxu0 %v2704
        %2881 = vmatprep.mubr.f32.mxu0 %v2503
        %2882 = vmatmul.mubr.f32.gmra.mrb[0].mxu0 %v2502
        %v2883 = vpop.f32.mrb[0].mxu0
        %v2884 = vadd.f32 0.0, %v2883
        %v2885 = vpop.f32.mrb[0].mxu0
        %2886 = vmatprep.mubr.f32.mxu0 %v2512
        %2887 = vmatmul.mubr.f32.gmra.mrb[0].mxu0 %v2511
        %v2888 = vpop.f32.mrb[0].mxu0
        %v2889 = vadd.f32 0.0, %v2888
        %v2890 = vpop.f32.mrb[0].mxu0
        %2891 = vmatprep.mubr.f32.mxu0 %v2521
        %2892 = vmatmul.mubr.f32.gmra.mrb[0].mxu0 %v2520
        %v2893 = vpop.f32.mrb[0].mxu0
        %v2894 = vadd.f32 0.0, %v2893
        %v2895 = vpop.f32.mrb[0].mxu0
        %2896 = vmatprep.mubr.f32.mxu0 %v2530
        %2897 = vmatmul.mubr.f32.gmra.mrb[0].mxu0 %v2529
        %v2898 = vpop.f32.mrb[0].mxu0
        %v2899 = vadd.f32 0.0, %v2898
        %v2900 = vpop.f32.mrb[0].mxu0
        %2901 = vmatprep.mubr.f32.mxu0 %v2539
        %2902 = vmatmul.mubr.f32.gmra.mrb[0].mxu0 %v2538
        %v2903 = vpop.f32.mrb[0].mxu0
        %v2904 = vadd.f32 0.0, %v2903
        %v2905 = vpop.f32.mrb[0].mxu0
        %2906 = vmatprep.mubr.f32.mxu0 %v2548
        %2907 = vmatmul.mubr.f32.gmra.mrb[0].mxu0 %v2547
        %v2908 = vpop.f32.mrb[0].mxu0
        %v2909 = vadd.f32 0.0, %v2908
        %v2910 = vpop.f32.mrb[0].mxu0
        %2911 = vmatprep.mubr.f32.mxu0 %v2557
        %2912 = vmatmul.mubr.f32.gmra.mrb[0].mxu0 %v2556
        %v2913 = vpop.f32.mrb[0].mxu0
        %v2914 = vadd.f32 0.0, %v2913
        %v2915 = vpop.f32.mrb[0].mxu0
        %2916 = vmatprep.mubr.f32.mxu0 %v2566
        %2917 = vmatmul.mubr.f32.gmra.mrb[0].mxu0 %v2565
        %v2918 = vpop.f32.mrb[0].mxu0
        %v2919 = vadd.f32 0.0, %v2918
        %v2920 = vpop.f32.mrb[0].mxu0
        %2921 = vmatprep.mubr.f32.mxu0 %v2575
        %2922 = vmatmul.mubr.f32.gmra.mrb[0].mxu0 %v2574
        %v2923 = vpop.f32.mrb[0].mxu0
        %v2924 = vadd.f32 0.0, %v2923
        %v2925 = vpop.f32.mrb[0].mxu0
        %2926 = vmatprep.mubr.f32.mxu0 %v2584
        %2927 = vmatmul.mubr.f32.gmra.mrb[0].mxu0 %v2583
        %v2928 = vpop.f32.mrb[0].mxu0
        %v2929 = vadd.f32 0.0, %v2928
        %v2930 = vpop.f32.mrb[0].mxu0
        %2931 = vmatprep.mubr.f32.mxu0 %v2593
        %2932 = vmatmul.mubr.f32.gmra.mrb[0].mxu0 %v2592
        %v2933 = vpop.f32.mrb[0].mxu0
        %v2934 = vadd.f32 0.0, %v2933
        %v2935 = vpop.f32.mrb[0].mxu0
        %2936 = vmatprep.mubr.f32.mxu0 %v2602
        %2937 = vmatmul.mubr.f32.gmra.mrb[0].mxu0 %v2601
        %v2938 = vpop.f32.mrb[0].mxu0
        %v2939 = vadd.f32 0.0, %v2938
        %v2940 = vpop.f32.mrb[0].mxu0
        %2941 = vmatprep.mubr.f32.mxu0 %v2611
        %2942 = vmatmul.mubr.f32.gmra.mrb[0].mxu0 %v2610
        %v2943 = vpop.f32.mrb[0].mxu0
        %v2944 = vadd.f32 0.0, %v2943
        %v2945 = vpop.f32.mrb[0].mxu0
        %2946 = vmatprep.mubr.f32.mxu0 %v2620
        %2947 = vmatmul.mubr.f32.gmra.mrb[0].mxu0 %v2619
        %v2948 = vpop.f32.mrb[0].mxu0
        %v2949 = vadd.f32 0.0, %v2948
        %v2950 = vpop.f32.mrb[0].mxu0
        %2951 = vmatprep.mubr.f32.mxu0 %v2629
        %2952 = vmatmul.mubr.f32.gmra.mrb[0].mxu0 %v2628
        %v2953 = vpop.f32.mrb[0].mxu0
        %v2954 = vadd.f32 0.0, %v2953
        %v2955 = vpop.f32.mrb[0].mxu0
        %2956 = vmatprep.mubr.f32.mxu0 %v2638
        %2957 = vmatmul.mubr.f32.gmra.mrb[0].mxu0 %v2637
        %v2958 = vpop.f32.mrb[0].mxu0
        %v2959 = vadd.f32 0.0, %v2958
        %v2960 = vpop.f32.mrb[0].mxu0
        %2961 = vmatprep.mubr.f32.mxu0 %v2647
        %2962 = vmatmul.mubr.f32.gmra.mrb[0].mxu0 %v2646
        %v2963 = vpop.f32.mrb[0].mxu0
        %v2964 = vadd.f32 0.0, %v2963
        %v2965 = vpop.f32.mrb[0].mxu0
        %2966 = vmatprep.mubr.f32.mxu0 %v2656
        %2967 = vmatmul.mubr.f32.gmra.mrb[0].mxu0 %v2655
        %v2968 = vpop.f32.mrb[0].mxu0
        %v2969 = vadd.f32 0.0, %v2968
        %v2970 = vpop.f32.mrb[0].mxu0
        %2971 = vmatprep.mubr.f32.mxu0 %v2665
        %2972 = vmatmul.mubr.f32.gmra.mrb[0].mxu0 %v2664
        %v2973 = vpop.f32.mrb[0].mxu0
        %v2974 = vadd.f32 0.0, %v2973
        %v2975 = vpop.f32.mrb[0].mxu0
        %2976 = vdwg.mxu0
        %2977 = vmatprep.subr.mxu0 0.0
        %2978 = vmatpush1.msra.mxu0 %v2705
        %2979 = vmatprep.subr.mxu0 0.0
        %2980 = vmatpush1.msra.mxu0 %v2706
        %2981 = vmatprep.subr.mxu0 0.0
        %2982 = vmatpush1.msra.mxu0 %v2707
        %2983 = vmatprep.subr.mxu0 0.0
        %2984 = vmatpush1.msra.mxu0 %v2708
        %2985 = vmatprep.subr.mxu0 0.0
        %2986 = vmatpush1.msra.mxu0 %v2709
        %2987 = vmatprep.subr.mxu0 0.0
        %2988 = vmatpush1.msra.mxu0 %v2710
        %2989 = vmatprep.subr.mxu0 0.0
        %2990 = vmatpush1.msra.mxu0 %v2711
        %2991 = vmatprep.subr.mxu0 0.0
        %2992 = vmatpush1.msra.mxu0 %v2712
        %2993 = vmatprep.subr.mxu0 0.0
        %2994 = vmatpush1.msra.mxu0 %v2713
        %2995 = vmatprep.subr.mxu0 0.0
        %2996 = vmatpush1.msra.mxu0 %v2714
        %2997 = vmatprep.subr.mxu0 0.0
        %2998 = vmatpush1.msra.mxu0 %v2715
        %2999 = vmatprep.subr.mxu0 0.0
        %3000 = vmatpush1.msra.mxu0 %v2716
        %3001 = vmatprep.subr.mxu0 0.0
        %3002 = vmatpush1.msra.mxu0 %v2717
        %3003 = vmatprep.subr.mxu0 0.0
        %3004 = vmatpush1.msra.mxu0 %v2718
        %3005 = vmatprep.subr.mxu0 0.0
        %3006 = vmatpush1.msra.mxu0 %v2719
        %3007 = vmatprep.subr.mxu0 0.0
        %3008 = vmatpush1.msra.mxu0 %v2720
        %3009 = vmatprep.subr.mxu0 0.0
        %3010 = vmatpush1.msra.mxu0 %v2721
        %3011 = vmatprep.subr.mxu0 0.0
        %3012 = vmatpush1.msra.mxu0 %v2722
        %3013 = vmatprep.subr.mxu0 0.0
        %3014 = vmatpush1.msra.mxu0 %v2723
        %3015 = vmatprep.subr.mxu0 0.0
        %3016 = vmatpush1.msra.mxu0 %v2724
        %3017 = vmatprep.subr.mxu0 0.0
        %3018 = vmatpush1.msra.mxu0 %v2725
        %3019 = vmatprep.subr.mxu0 0.0
        %3020 = vmatpush1.msra.mxu0 %v2726
        %3021 = vmatprep.subr.mxu0 0.0
        %3022 = vmatpush1.msra.mxu0 %v2727
        %3023 = vmatprep.subr.mxu0 0.0
        %3024 = vmatpush1.msra.mxu0 %v2728
        %3025 = vmatprep.subr.mxu0 0.0
        %3026 = vmatpush1.msra.mxu0 %v2729
        %3027 = vmatprep.subr.mxu0 0.0
        %3028 = vmatpush1.msra.mxu0 %v2730
        %3029 = vmatprep.subr.mxu0 0.0
        %3030 = vmatpush1.msra.mxu0 %v2731
        %3031 = vmatprep.subr.mxu0 0.0
        %3032 = vmatpush1.msra.mxu0 %v2732
        %3033 = vmatprep.subr.mxu0 0.0
        %3034 = vmatpush1.msra.mxu0 %v2733
        %3035 = vmatprep.subr.mxu0 0.0
        %3036 = vmatpush1.msra.mxu0 %v2734
        %3037 = vmatprep.subr.mxu0 0.0
        %3038 = vmatpush1.msra.mxu0 %v2735
        %3039 = vmatprep.subr.mxu0 0.0
        %3040 = vmatpush1.msra.mxu0 %v2736
        %3041 = vmatprep.mubr.f32.mxu0 %v2505
        %3042 = vmatmul.mubr.f32.gmra.mrb[0].mxu0 %v2504
        %v3043 = vpop.f32.mrb[0].mxu0
        %v3044 = vadd.f32 %v2884, %v3043
        %v3045 = vpop.f32.mrb[0].mxu0
        %3046 = vmatprep.mubr.f32.mxu0 %v2514
        %3047 = vmatmul.mubr.f32.gmra.mrb[0].mxu0 %v2513
        %v3048 = vpop.f32.mrb[0].mxu0
        %v3049 = vadd.f32 %v2889, %v3048
        %v3050 = vpop.f32.mrb[0].mxu0
        %3051 = vmatprep.mubr.f32.mxu0 %v2523
        %3052 = vmatmul.mubr.f32.gmra.mrb[0].mxu0 %v2522
        %v3053 = vpop.f32.mrb[0].mxu0
        %v3054 = vadd.f32 %v2894, %v3053
        %v3055 = vpop.f32.mrb[0].mxu0
        %3056 = vmatprep.mubr.f32.mxu0 %v2532
        %3057 = vmatmul.mubr.f32.gmra.mrb[0].mxu0 %v2531
        %v3058 = vpop.f32.mrb[0].mxu0
        %v3059 = vadd.f32 %v2899, %v3058
        %v3060 = vpop.f32.mrb[0].mxu0
        %3061 = vmatprep.mubr.f32.mxu0 %v2541
        %3062 = vmatmul.mubr.f32.gmra.mrb[0].mxu0 %v2540
        %v3063 = vpop.f32.mrb[0].mxu0
        %v3064 = vadd.f32 %v2904, %v3063
        %v3065 = vpop.f32.mrb[0].mxu0
        %3066 = vmatprep.mubr.f32.mxu0 %v2550
        %3067 = vmatmul.mubr.f32.gmra.mrb[0].mxu0 %v2549
        %v3068 = vpop.f32.mrb[0].mxu0
        %v3069 = vadd.f32 %v2909, %v3068
        %v3070 = vpop.f32.mrb[0].mxu0
        %3071 = vmatprep.mubr.f32.mxu0 %v2559
        %3072 = vmatmul.mubr.f32.gmra.mrb[0].mxu0 %v2558
        %v3073 = vpop.f32.mrb[0].mxu0
        %v3074 = vadd.f32 %v2914, %v3073
        %v3075 = vpop.f32.mrb[0].mxu0
        %3076 = vmatprep.mubr.f32.mxu0 %v2568
        %3077 = vmatmul.mubr.f32.gmra.mrb[0].mxu0 %v2567
        %v3078 = vpop.f32.mrb[0].mxu0
        %v3079 = vadd.f32 %v2919, %v3078
        %v3080 = vpop.f32.mrb[0].mxu0
        %3081 = vmatprep.mubr.f32.mxu0 %v2577
        %3082 = vmatmul.mubr.f32.gmra.mrb[0].mxu0 %v2576
        %v3083 = vpop.f32.mrb[0].mxu0
        %v3084 = vadd.f32 %v2924, %v3083
        %v3085 = vpop.f32.mrb[0].mxu0
        %3086 = vmatprep.mubr.f32.mxu0 %v2586
        %3087 = vmatmul.mubr.f32.gmra.mrb[0].mxu0 %v2585
        %v3088 = vpop.f32.mrb[0].mxu0
        %v3089 = vadd.f32 %v2929, %v3088
        %v3090 = vpop.f32.mrb[0].mxu0
        %3091 = vmatprep.mubr.f32.mxu0 %v2595
        %3092 = vmatmul.mubr.f32.gmra.mrb[0].mxu0 %v2594
        %v3093 = vpop.f32.mrb[0].mxu0
        %v3094 = vadd.f32 %v2934, %v3093
        %v3095 = vpop.f32.mrb[0].mxu0
        %3096 = vmatprep.mubr.f32.mxu0 %v2604
        %3097 = vmatmul.mubr.f32.gmra.mrb[0].mxu0 %v2603
        %v3098 = vpop.f32.mrb[0].mxu0
        %v3099 = vadd.f32 %v2939, %v3098
        %v3100 = vpop.f32.mrb[0].mxu0
        %3101 = vmatprep.mubr.f32.mxu0 %v2613
        %3102 = vmatmul.mubr.f32.gmra.mrb[0].mxu0 %v2612
        %v3103 = vpop.f32.mrb[0].mxu0
        %v3104 = vadd.f32 %v2944, %v3103
        %v3105 = vpop.f32.mrb[0].mxu0
        %3106 = vmatprep.mubr.f32.mxu0 %v2622
        %3107 = vmatmul.mubr.f32.gmra.mrb[0].mxu0 %v2621
        %v3108 = vpop.f32.mrb[0].mxu0
        %v3109 = vadd.f32 %v2949, %v3108
        %v3110 = vpop.f32.mrb[0].mxu0
        %3111 = vmatprep.mubr.f32.mxu0 %v2631
        %3112 = vmatmul.mubr.f32.gmra.mrb[0].mxu0 %v2630
        %v3113 = vpop.f32.mrb[0].mxu0
        %v3114 = vadd.f32 %v2954, %v3113
        %v3115 = vpop.f32.mrb[0].mxu0
        %3116 = vmatprep.mubr.f32.mxu0 %v2640
        %3117 = vmatmul.mubr.f32.gmra.mrb[0].mxu0 %v2639
        %v3118 = vpop.f32.mrb[0].mxu0
        %v3119 = vadd.f32 %v2959, %v3118
        %v3120 = vpop.f32.mrb[0].mxu0
        %3121 = vmatprep.mubr.f32.mxu0 %v2649
        %3122 = vmatmul.mubr.f32.gmra.mrb[0].mxu0 %v2648
        %v3123 = vpop.f32.mrb[0].mxu0
        %v3124 = vadd.f32 %v2964, %v3123
        %v3125 = vpop.f32.mrb[0].mxu0
        %3126 = vmatprep.mubr.f32.mxu0 %v2658
        %3127 = vmatmul.mubr.f32.gmra.mrb[0].mxu0 %v2657
        %v3128 = vpop.f32.mrb[0].mxu0
        %v3129 = vadd.f32 %v2969, %v3128
        %v3130 = vpop.f32.mrb[0].mxu0
        %3131 = vmatprep.mubr.f32.mxu0 %v2667
        %3132 = vmatmul.mubr.f32.gmra.mrb[0].mxu0 %v2666
        %v3133 = vpop.f32.mrb[0].mxu0
        %v3134 = vadd.f32 %v2974, %v3133
        %v3135 = vpop.f32.mrb[0].mxu0
        %3136 = vdwg.mxu0
        %3137 = vmatprep.subr.mxu0 0.0
        %3138 = vmatpush1.msra.mxu0 %v2737
        %3139 = vmatprep.subr.mxu0 0.0
        %3140 = vmatpush1.msra.mxu0 %v2738
        %3141 = vmatprep.subr.mxu0 0.0
        %3142 = vmatpush1.msra.mxu0 %v2739
        %3143 = vmatprep.subr.mxu0 0.0
        %3144 = vmatpush1.msra.mxu0 %v2740
        %3145 = vmatprep.subr.mxu0 0.0
        %3146 = vmatpush1.msra.mxu0 %v2741
        %3147 = vmatprep.subr.mxu0 0.0
        %3148 = vmatpush1.msra.mxu0 %v2742
        %3149 = vmatprep.subr.mxu0 0.0
        %3150 = vmatpush1.msra.mxu0 %v2743
        %3151 = vmatprep.subr.mxu0 0.0
        %3152 = vmatpush1.msra.mxu0 %v2744
        %3153 = vmatprep.subr.mxu0 0.0
        %3154 = vmatpush1.msra.mxu0 %v2745
        %3155 = vmatprep.subr.mxu0 0.0
        %3156 = vmatpush1.msra.mxu0 %v2746
        %3157 = vmatprep.subr.mxu0 0.0
        %3158 = vmatpush1.msra.mxu0 %v2747
        %3159 = vmatprep.subr.mxu0 0.0
        %3160 = vmatpush1.msra.mxu0 %v2748
        %3161 = vmatprep.subr.mxu0 0.0
        %3162 = vmatpush1.msra.mxu0 %v2749
        %3163 = vmatprep.subr.mxu0 0.0
        %3164 = vmatpush1.msra.mxu0 %v2750
        %3165 = vmatprep.subr.mxu0 0.0
        %3166 = vmatpush1.msra.mxu0 %v2751
        %3167 = vmatprep.subr.mxu0 0.0
        %3168 = vmatpush1.msra.mxu0 %v2752
        %3169 = vmatprep.subr.mxu0 0.0
        %3170 = vmatpush1.msra.mxu0 %v2753
        %3171 = vmatprep.subr.mxu0 0.0
        %3172 = vmatpush1.msra.mxu0 %v2754
        %3173 = vmatprep.subr.mxu0 0.0
        %3174 = vmatpush1.msra.mxu0 %v2755
        %3175 = vmatprep.subr.mxu0 0.0
        %3176 = vmatpush1.msra.mxu0 %v2756
        %3177 = vmatprep.subr.mxu0 0.0
        %3178 = vmatpush1.msra.mxu0 %v2757
        %3179 = vmatprep.subr.mxu0 0.0
        %3180 = vmatpush1.msra.mxu0 %v2758
        %3181 = vmatprep.subr.mxu0 0.0
        %3182 = vmatpush1.msra.mxu0 %v2759
        %3183 = vmatprep.subr.mxu0 0.0
        %3184 = vmatpush1.msra.mxu0 %v2760
        %3185 = vmatprep.subr.mxu0 0.0
        %3186 = vmatpush1.msra.mxu0 %v2761
        %3187 = vmatprep.subr.mxu0 0.0
        %3188 = vmatpush1.msra.mxu0 %v2762
        %3189 = vmatprep.subr.mxu0 0.0
        %3190 = vmatpush1.msra.mxu0 %v2763
        %3191 = vmatprep.subr.mxu0 0.0
        %3192 = vmatpush1.msra.mxu0 %v2764
        %3193 = vmatprep.subr.mxu0 0.0
        %3194 = vmatpush1.msra.mxu0 %v2765
        %3195 = vmatprep.subr.mxu0 0.0
        %3196 = vmatpush1.msra.mxu0 %v2766
        %3197 = vmatprep.subr.mxu0 0.0
        %3198 = vmatpush1.msra.mxu0 %v2767
        %3199 = vmatprep.subr.mxu0 0.0
        %3200 = vmatpush1.msra.mxu0 %v2768
        %3201 = vmatprep.mubr.f32.mxu0 %v2507
        %3202 = vmatmul.mubr.f32.gmra.mrb[0].mxu0 %v2506
        %v3203 = vpop.f32.mrb[0].mxu0
        %v3204 = vadd.f32 %v3044, %v3203
        %v3205 = vpop.f32.mrb[0].mxu0
        %3206 = vmatprep.mubr.f32.mxu0 %v2516
        %3207 = vmatmul.mubr.f32.gmra.mrb[0].mxu0 %v2515
        %v3208 = vpop.f32.mrb[0].mxu0
        %v3209 = vadd.f32 %v3049, %v3208
        %v3210 = vpop.f32.mrb[0].mxu0
        %3211 = vmatprep.mubr.f32.mxu0 %v2525
        %3212 = vmatmul.mubr.f32.gmra.mrb[0].mxu0 %v2524
        %v3213 = vpop.f32.mrb[0].mxu0
        %v3214 = vadd.f32 %v3054, %v3213
        %v3215 = vpop.f32.mrb[0].mxu0
        %3216 = vmatprep.mubr.f32.mxu0 %v2534
        %3217 = vmatmul.mubr.f32.gmra.mrb[0].mxu0 %v2533
        %v3218 = vpop.f32.mrb[0].mxu0
        %v3219 = vadd.f32 %v3059, %v3218
        %v3220 = vpop.f32.mrb[0].mxu0
        %3221 = vmatprep.mubr.f32.mxu0 %v2543
        %3222 = vmatmul.mubr.f32.gmra.mrb[0].mxu0 %v2542
        %v3223 = vpop.f32.mrb[0].mxu0
        %v3224 = vadd.f32 %v3064, %v3223
        %v3225 = vpop.f32.mrb[0].mxu0
        %3226 = vmatprep.mubr.f32.mxu0 %v2552
        %3227 = vmatmul.mubr.f32.gmra.mrb[0].mxu0 %v2551
        %v3228 = vpop.f32.mrb[0].mxu0
        %v3229 = vadd.f32 %v3069, %v3228
        %v3230 = vpop.f32.mrb[0].mxu0
        %3231 = vmatprep.mubr.f32.mxu0 %v2561
        %3232 = vmatmul.mubr.f32.gmra.mrb[0].mxu0 %v2560
        %v3233 = vpop.f32.mrb[0].mxu0
        %v3234 = vadd.f32 %v3074, %v3233
        %v3235 = vpop.f32.mrb[0].mxu0
        %3236 = vmatprep.mubr.f32.mxu0 %v2570
        %3237 = vmatmul.mubr.f32.gmra.mrb[0].mxu0 %v2569
        %v3238 = vpop.f32.mrb[0].mxu0
        %v3239 = vadd.f32 %v3079, %v3238
        %v3240 = vpop.f32.mrb[0].mxu0
        %3241 = vmatprep.mubr.f32.mxu0 %v2579
        %3242 = vmatmul.mubr.f32.gmra.mrb[0].mxu0 %v2578
        %v3243 = vpop.f32.mrb[0].mxu0
        %v3244 = vadd.f32 %v3084, %v3243
        %v3245 = vpop.f32.mrb[0].mxu0
        %3246 = vmatprep.mubr.f32.mxu0 %v2588
        %3247 = vmatmul.mubr.f32.gmra.mrb[0].mxu0 %v2587
        %v3248 = vpop.f32.mrb[0].mxu0
        %v3249 = vadd.f32 %v3089, %v3248
        %v3250 = vpop.f32.mrb[0].mxu0
        %3251 = vmatprep.mubr.f32.mxu0 %v2597
        %3252 = vmatmul.mubr.f32.gmra.mrb[0].mxu0 %v2596
        %v3253 = vpop.f32.mrb[0].mxu0
        %v3254 = vadd.f32 %v3094, %v3253
        %v3255 = vpop.f32.mrb[0].mxu0
        %3256 = vmatprep.mubr.f32.mxu0 %v2606
        %3257 = vmatmul.mubr.f32.gmra.mrb[0].mxu0 %v2605
        %v3258 = vpop.f32.mrb[0].mxu0
        %v3259 = vadd.f32 %v3099, %v3258
        %v3260 = vpop.f32.mrb[0].mxu0
        %3261 = vmatprep.mubr.f32.mxu0 %v2615
        %3262 = vmatmul.mubr.f32.gmra.mrb[0].mxu0 %v2614
        %v3263 = vpop.f32.mrb[0].mxu0
        %v3264 = vadd.f32 %v3104, %v3263
        %v3265 = vpop.f32.mrb[0].mxu0
        %3266 = vmatprep.mubr.f32.mxu0 %v2624
        %3267 = vmatmul.mubr.f32.gmra.mrb[0].mxu0 %v2623
        %v3268 = vpop.f32.mrb[0].mxu0
        %v3269 = vadd.f32 %v3109, %v3268
        %v3270 = vpop.f32.mrb[0].mxu0
        %3271 = vmatprep.mubr.f32.mxu0 %v2633
        %3272 = vmatmul.mubr.f32.gmra.mrb[0].mxu0 %v2632
        %v3273 = vpop.f32.mrb[0].mxu0
        %v3274 = vadd.f32 %v3114, %v3273
        %v3275 = vpop.f32.mrb[0].mxu0
        %3276 = vmatprep.mubr.f32.mxu0 %v2642
        %3277 = vmatmul.mubr.f32.gmra.mrb[0].mxu0 %v2641
        %v3278 = vpop.f32.mrb[0].mxu0
        %v3279 = vadd.f32 %v3119, %v3278
        %v3280 = vpop.f32.mrb[0].mxu0
        %3281 = vmatprep.mubr.f32.mxu0 %v2651
        %3282 = vmatmul.mubr.f32.gmra.mrb[0].mxu0 %v2650
        %v3283 = vpop.f32.mrb[0].mxu0
        %v3284 = vadd.f32 %v3124, %v3283
        %v3285 = vpop.f32.mrb[0].mxu0
        %3286 = vmatprep.mubr.f32.mxu0 %v2660
        %3287 = vmatmul.mubr.f32.gmra.mrb[0].mxu0 %v2659
        %v3288 = vpop.f32.mrb[0].mxu0
        %v3289 = vadd.f32 %v3129, %v3288
        %v3290 = vpop.f32.mrb[0].mxu0
        %3291 = vmatprep.mubr.f32.mxu0 %v2669
        %3292 = vmatmul.mubr.f32.gmra.mrb[0].mxu0 %v2668
        %v3293 = vpop.f32.mrb[0].mxu0
        %v3294 = vadd.f32 %v3134, %v3293
        %v3295 = vpop.f32.mrb[0].mxu0
        %3296 = vdwg.mxu0
        %3297 = vmatprep.subr.mxu0 0.0
        %3298 = vmatpush1.msra.mxu0 %v2769
        %3299 = vmatprep.subr.mxu0 0.0
        %3300 = vmatpush1.msra.mxu0 %v2770
        %3301 = vmatprep.subr.mxu0 0.0
        %3302 = vmatpush1.msra.mxu0 %v2771
        %3303 = vmatprep.subr.mxu0 0.0
        %3304 = vmatpush1.msra.mxu0 %v2772
        %3305 = vmatprep.subr.mxu0 0.0
        %3306 = vmatpush1.msra.mxu0 %v2773
        %3307 = vmatprep.subr.mxu0 0.0
        %3308 = vmatpush1.msra.mxu0 %v2774
        %3309 = vmatprep.subr.mxu0 0.0
        %3310 = vmatpush1.msra.mxu0 %v2775
        %3311 = vmatprep.subr.mxu0 0.0
        %3312 = vmatpush1.msra.mxu0 %v2776
        %3313 = vmatprep.subr.mxu0 0.0
        %3314 = vmatpush1.msra.mxu0 %v2777
        %3315 = vmatprep.subr.mxu0 0.0
        %3316 = vmatpush1.msra.mxu0 %v2778
        %3317 = vmatprep.subr.mxu0 0.0
        %3318 = vmatpush1.msra.mxu0 %v2779
        %3319 = vmatprep.subr.mxu0 0.0
        %3320 = vmatpush1.msra.mxu0 %v2780
        %3321 = vmatprep.subr.mxu0 0.0
        %3322 = vmatpush1.msra.mxu0 %v2781
        %3323 = vmatprep.subr.mxu0 0.0
        %3324 = vmatpush1.msra.mxu0 %v2782
        %3325 = vmatprep.subr.mxu0 0.0
        %3326 = vmatpush1.msra.mxu0 %v2783
        %3327 = vmatprep.subr.mxu0 0.0
        %3328 = vmatpush1.msra.mxu0 %v2784
        %3329 = vmatprep.subr.mxu0 0.0
        %3330 = vmatpush1.msra.mxu0 %v2785
        %3331 = vmatprep.subr.mxu0 0.0
        %3332 = vmatpush1.msra.mxu0 %v2786
        %3333 = vmatprep.subr.mxu0 0.0
        %3334 = vmatpush1.msra.mxu0 %v2787
        %3335 = vmatprep.subr.mxu0 0.0
        %3336 = vmatpush1.msra.mxu0 %v2788
        %3337 = vmatprep.subr.mxu0 0.0
        %3338 = vmatpush1.msra.mxu0 %v2789
        %3339 = vmatprep.subr.mxu0 0.0
        %3340 = vmatpush1.msra.mxu0 %v2790
        %3341 = vmatprep.subr.mxu0 0.0
        %3342 = vmatpush1.msra.mxu0 %v2791
        %3343 = vmatprep.subr.mxu0 0.0
        %3344 = vmatpush1.msra.mxu0 %v2792
        %3345 = vmatprep.subr.mxu0 0.0
        %3346 = vmatpush1.msra.mxu0 %v2793
        %3347 = vmatprep.subr.mxu0 0.0
        %3348 = vmatpush1.msra.mxu0 %v2794
        %3349 = vmatprep.subr.mxu0 0.0
        %3350 = vmatpush1.msra.mxu0 %v2795
        %3351 = vmatprep.subr.mxu0 0.0
        %3352 = vmatpush1.msra.mxu0 %v2796
        %3353 = vmatprep.subr.mxu0 0.0
        %3354 = vmatpush1.msra.mxu0 %v2797
        %3355 = vmatprep.subr.mxu0 0.0
        %3356 = vmatpush1.msra.mxu0 %v2798
        %3357 = vmatprep.subr.mxu0 0.0
        %3358 = vmatpush1.msra.mxu0 %v2799
        %3359 = vmatprep.subr.mxu0 0.0
        %3360 = vmatpush1.msra.mxu0 %v2800
        %3361 = vmatprep.mubr.f32.mxu0 %v2509
        %3362 = vmatmul.mubr.f32.gmra.mrb[0].mxu0 %v2508
        %v3363 = vpop.f32.mrb[0].mxu0
        %v3364 = vadd.f32 %v3204, %v3363
        %v3365 = vpop.f32.mrb[0].mxu0
        %3366 = vmatprep.mubr.f32.mxu0 %v2518
        %3367 = vmatmul.mubr.f32.gmra.mrb[0].mxu0 %v2517
        %v3368 = vpop.f32.mrb[0].mxu0
        %v3369 = vadd.f32 %v3209, %v3368
        %v3370 = vpop.f32.mrb[0].mxu0
        %3371 = vmatprep.mubr.f32.mxu0 %v2527
        %3372 = vmatmul.mubr.f32.gmra.mrb[0].mxu0 %v2526
        %v3373 = vpop.f32.mrb[0].mxu0
        %v3374 = vadd.f32 %v3214, %v3373
        %v3375 = vpop.f32.mrb[0].mxu0
        %3376 = vmatprep.mubr.f32.mxu0 %v2536
        %3377 = vmatmul.mubr.f32.gmra.mrb[0].mxu0 %v2535
        %v3378 = vpop.f32.mrb[0].mxu0
        %v3379 = vadd.f32 %v3219, %v3378
        %v3380 = vpop.f32.mrb[0].mxu0
        %3381 = vmatprep.mubr.f32.mxu0 %v2545
        %3382 = vmatmul.mubr.f32.gmra.mrb[0].mxu0 %v2544
        %v3383 = vpop.f32.mrb[0].mxu0
        %v3384 = vadd.f32 %v3224, %v3383
        %v3385 = vpop.f32.mrb[0].mxu0
        %3386 = vmatprep.mubr.f32.mxu0 %v2554
        %3387 = vmatmul.mubr.f32.gmra.mrb[0].mxu0 %v2553
        %v3388 = vpop.f32.mrb[0].mxu0
        %v3389 = vadd.f32 %v3229, %v3388
        %v3390 = vpop.f32.mrb[0].mxu0
        %3391 = vmatprep.mubr.f32.mxu0 %v2563
        %3392 = vmatmul.mubr.f32.gmra.mrb[0].mxu0 %v2562
        %v3393 = vpop.f32.mrb[0].mxu0
        %v3394 = vadd.f32 %v3234, %v3393
        %v3395 = vpop.f32.mrb[0].mxu0
        %3396 = vmatprep.mubr.f32.mxu0 %v2572
        %3397 = vmatmul.mubr.f32.gmra.mrb[0].mxu0 %v2571
        %v3398 = vpop.f32.mrb[0].mxu0
        %v3399 = vadd.f32 %v3239, %v3398
        %v3400 = vpop.f32.mrb[0].mxu0
        %3401 = vmatprep.mubr.f32.mxu0 %v2581
        %3402 = vmatmul.mubr.f32.gmra.mrb[0].mxu0 %v2580
        %v3403 = vpop.f32.mrb[0].mxu0
        %v3404 = vadd.f32 %v3244, %v3403
        %v3405 = vpop.f32.mrb[0].mxu0
        %3406 = vmatprep.mubr.f32.mxu0 %v2590
        %3407 = vmatmul.mubr.f32.gmra.mrb[0].mxu0 %v2589
        %v3408 = vpop.f32.mrb[0].mxu0
        %v3409 = vadd.f32 %v3249, %v3408
        %v3410 = vpop.f32.mrb[0].mxu0
        %3411 = vmatprep.mubr.f32.mxu0 %v2599
        %3412 = vmatmul.mubr.f32.gmra.mrb[0].mxu0 %v2598
        %v3413 = vpop.f32.mrb[0].mxu0
        %v3414 = vadd.f32 %v3254, %v3413
        %v3415 = vpop.f32.mrb[0].mxu0
        %3416 = vmatprep.mubr.f32.mxu0 %v2608
        %3417 = vmatmul.mubr.f32.gmra.mrb[0].mxu0 %v2607
        %v3418 = vpop.f32.mrb[0].mxu0
        %v3419 = vadd.f32 %v3259, %v3418
        %v3420 = vpop.f32.mrb[0].mxu0
        %3421 = vmatprep.mubr.f32.mxu0 %v2617
        %3422 = vmatmul.mubr.f32.gmra.mrb[0].mxu0 %v2616
        %v3423 = vpop.f32.mrb[0].mxu0
        %v3424 = vadd.f32 %v3264, %v3423
        %v3425 = vpop.f32.mrb[0].mxu0
        %3426 = vmatprep.mubr.f32.mxu0 %v2626
        %3427 = vmatmul.mubr.f32.gmra.mrb[0].mxu0 %v2625
        %v3428 = vpop.f32.mrb[0].mxu0
        %v3429 = vadd.f32 %v3269, %v3428
        %v3430 = vpop.f32.mrb[0].mxu0
        %3431 = vmatprep.mubr.f32.mxu0 %v2635
        %3432 = vmatmul.mubr.f32.gmra.mrb[0].mxu0 %v2634
        %v3433 = vpop.f32.mrb[0].mxu0
        %v3434 = vadd.f32 %v3274, %v3433
        %v3435 = vpop.f32.mrb[0].mxu0
        %3436 = vmatprep.mubr.f32.mxu0 %v2644
        %3437 = vmatmul.mubr.f32.gmra.mrb[0].mxu0 %v2643
        %v3438 = vpop.f32.mrb[0].mxu0
        %v3439 = vadd.f32 %v3279, %v3438
        %v3440 = vpop.f32.mrb[0].mxu0
        %3441 = vmatprep.mubr.f32.mxu0 %v2653
        %3442 = vmatmul.mubr.f32.gmra.mrb[0].mxu0 %v2652
        %v3443 = vpop.f32.mrb[0].mxu0
        %v3444 = vadd.f32 %v3284, %v3443
        %v3445 = vpop.f32.mrb[0].mxu0
        %3446 = vmatprep.mubr.f32.mxu0 %v2662
        %3447 = vmatmul.mubr.f32.gmra.mrb[0].mxu0 %v2661
        %v3448 = vpop.f32.mrb[0].mxu0
        %v3449 = vadd.f32 %v3289, %v3448
        %v3450 = vpop.f32.mrb[0].mxu0
        %3451 = vmatprep.mubr.f32.mxu0 %v2671
        %3452 = vmatmul.mubr.f32.gmra.mrb[0].mxu0 %v2670
        %v3453 = vpop.f32.mrb[0].mxu0
        %v3454 = vadd.f32 %v3294, %v3453
        %v3455 = vpop.f32.mrb[0].mxu0
        %3456 = vdwg.mxu0
        %3457 = vmatprep.subr.mxu0 0.0
        %3458 = vmatpush1.msra.mxu0 %v2801
        %3459 = vmatprep.subr.mxu0 0.0
        %3460 = vmatpush1.msra.mxu0 %v2802
        %3461 = vmatprep.subr.mxu0 0.0
        %3462 = vmatpush1.msra.mxu0 %v2803
        %3463 = vmatprep.subr.mxu0 0.0
        %3464 = vmatpush1.msra.mxu0 %v2804
        %3465 = vmatprep.subr.mxu0 0.0
        %3466 = vmatpush1.msra.mxu0 %v2805
        %3467 = vmatprep.subr.mxu0 0.0
        %3468 = vmatpush1.msra.mxu0 %v2806
        %3469 = vmatprep.subr.mxu0 0.0
        %3470 = vmatpush1.msra.mxu0 %v2807
        %3471 = vmatprep.subr.mxu0 0.0
        %3472 = vmatpush1.msra.mxu0 %v2808
        %3473 = vmatprep.subr.mxu0 0.0
        %3474 = vmatpush1.msra.mxu0 %v2809
        %3475 = vmatprep.subr.mxu0 0.0
        %3476 = vmatpush1.msra.mxu0 %v2810
        %3477 = vmatprep.subr.mxu0 0.0
        %3478 = vmatpush1.msra.mxu0 %v2811
        %3479 = vmatprep.subr.mxu0 0.0
        %3480 = vmatpush1.msra.mxu0 %v2812
        %3481 = vmatprep.subr.mxu0 0.0
        %3482 = vmatpush1.msra.mxu0 %v2813
        %3483 = vmatprep.subr.mxu0 0.0
        %3484 = vmatpush1.msra.mxu0 %v2814
        %3485 = vmatprep.subr.mxu0 0.0
        %3486 = vmatpush1.msra.mxu0 %v2815
        %3487 = vmatprep.subr.mxu0 0.0
        %3488 = vmatpush1.msra.mxu0 %v2816
        %3489 = vmatprep.subr.mxu0 0.0
        %3490 = vmatpush1.msra.mxu0 0.0
        %3491 = vmatprep.subr.mxu0 0.0
        %3492 = vmatpush1.msra.mxu0 0.0
        %3493 = vmatprep.subr.mxu0 0.0
        %3494 = vmatpush1.msra.mxu0 0.0
        %3495 = vmatprep.subr.mxu0 0.0
        %3496 = vmatpush1.msra.mxu0 0.0
        %3497 = vmatprep.subr.mxu0 0.0
        %3498 = vmatpush1.msra.mxu0 0.0
        %3499 = vmatprep.subr.mxu0 0.0
        %3500 = vmatpush1.msra.mxu0 0.0
        %3501 = vmatprep.subr.mxu0 0.0
        %3502 = vmatpush1.msra.mxu0 0.0
        %3503 = vmatprep.subr.mxu0 0.0
        %3504 = vmatpush1.msra.mxu0 0.0
        %3505 = vmatprep.subr.mxu0 0.0
        %3506 = vmatpush1.msra.mxu0 0.0
        %3507 = vmatprep.subr.mxu0 0.0
        %3508 = vmatpush1.msra.mxu0 0.0
        %3509 = vmatprep.subr.mxu0 0.0
        %3510 = vmatpush1.msra.mxu0 0.0
        %3511 = vmatprep.subr.mxu0 0.0
        %3512 = vmatpush1.msra.mxu0 0.0
        %3513 = vmatprep.subr.mxu0 0.0
        %3514 = vmatpush1.msra.mxu0 0.0
        %3515 = vmatprep.subr.mxu0 0.0
        %3516 = vmatpush1.msra.mxu0 0.0
        %3517 = vmatprep.subr.mxu0 0.0
        %3518 = vmatpush1.msra.mxu0 0.0
        %3519 = vmatprep.subr.mxu0 0.0
        %3520 = vmatpush1.msra.mxu0 0.0
        %3521 = vmatprep.mubr.f32.mxu0 0.0
        %3522 = vmatmul.mubr.f32.gmra.mrb[0].mxu0 %v2510
        %v3523 = vpop.f32.mrb[0].mxu0
        %v3524 = vadd.f32 %v3364, %v3523
        %v3525 = vpop.f32.mrb[0].mxu0
        %3526 = vmatprep.mubr.f32.mxu0 0.0
        %3527 = vmatmul.mubr.f32.gmra.mrb[0].mxu0 %v2519
        %v3528 = vpop.f32.mrb[0].mxu0
        %v3529 = vadd.f32 %v3369, %v3528
        %v3530 = vpop.f32.mrb[0].mxu0
        %3531 = vmatprep.mubr.f32.mxu0 0.0
        %3532 = vmatmul.mubr.f32.gmra.mrb[0].mxu0 %v2528
        %v3533 = vpop.f32.mrb[0].mxu0
        %v3534 = vadd.f32 %v3374, %v3533
        %v3535 = vpop.f32.mrb[0].mxu0
        %3536 = vmatprep.mubr.f32.mxu0 0.0
        %3537 = vmatmul.mubr.f32.gmra.mrb[0].mxu0 %v2537
        %v3538 = vpop.f32.mrb[0].mxu0
        %v3539 = vadd.f32 %v3379, %v3538
        %v3540 = vpop.f32.mrb[0].mxu0
        %3541 = vmatprep.mubr.f32.mxu0 0.0
        %3542 = vmatmul.mubr.f32.gmra.mrb[0].mxu0 %v2546
        %v3543 = vpop.f32.mrb[0].mxu0
        %v3544 = vadd.f32 %v3384, %v3543
        %v3545 = vpop.f32.mrb[0].mxu0
        %3546 = vmatprep.mubr.f32.mxu0 0.0
        %3547 = vmatmul.mubr.f32.gmra.mrb[0].mxu0 %v2555
        %v3548 = vpop.f32.mrb[0].mxu0
        %v3549 = vadd.f32 %v3389, %v3548
        %v3550 = vpop.f32.mrb[0].mxu0
        %3551 = vmatprep.mubr.f32.mxu0 0.0
        %3552 = vmatmul.mubr.f32.gmra.mrb[0].mxu0 %v2564
        %v3553 = vpop.f32.mrb[0].mxu0
        %v3554 = vadd.f32 %v3394, %v3553
        %v3555 = vpop.f32.mrb[0].mxu0
        %3556 = vmatprep.mubr.f32.mxu0 0.0
        %3557 = vmatmul.mubr.f32.gmra.mrb[0].mxu0 %v2573
        %v3558 = vpop.f32.mrb[0].mxu0
        %v3559 = vadd.f32 %v3399, %v3558
        %v3560 = vpop.f32.mrb[0].mxu0
        %3561 = vmatprep.mubr.f32.mxu0 0.0
        %3562 = vmatmul.mubr.f32.gmra.mrb[0].mxu0 %v2582
        %v3563 = vpop.f32.mrb[0].mxu0
        %v3564 = vadd.f32 %v3404, %v3563
        %v3565 = vpop.f32.mrb[0].mxu0
        %3566 = vmatprep.mubr.f32.mxu0 0.0
        %3567 = vmatmul.mubr.f32.gmra.mrb[0].mxu0 %v2591
        %v3568 = vpop.f32.mrb[0].mxu0
        %v3569 = vadd.f32 %v3409, %v3568
        %v3570 = vpop.f32.mrb[0].mxu0
        %3571 = vmatprep.mubr.f32.mxu0 0.0
        %3572 = vmatmul.mubr.f32.gmra.mrb[0].mxu0 %v2600
        %v3573 = vpop.f32.mrb[0].mxu0
        %v3574 = vadd.f32 %v3414, %v3573
        %v3575 = vpop.f32.mrb[0].mxu0
        %3576 = vmatprep.mubr.f32.mxu0 0.0
        %3577 = vmatmul.mubr.f32.gmra.mrb[0].mxu0 %v2609
        %v3578 = vpop.f32.mrb[0].mxu0
        %v3579 = vadd.f32 %v3419, %v3578
        %v3580 = vpop.f32.mrb[0].mxu0
        %3581 = vmatprep.mubr.f32.mxu0 0.0
        %3582 = vmatmul.mubr.f32.gmra.mrb[0].mxu0 %v2618
        %v3583 = vpop.f32.mrb[0].mxu0
        %v3584 = vadd.f32 %v3424, %v3583
        %v3585 = vpop.f32.mrb[0].mxu0
        %3586 = vmatprep.mubr.f32.mxu0 0.0
        %3587 = vmatmul.mubr.f32.gmra.mrb[0].mxu0 %v2627
        %v3588 = vpop.f32.mrb[0].mxu0
        %v3589 = vadd.f32 %v3429, %v3588
        %v3590 = vpop.f32.mrb[0].mxu0
        %3591 = vmatprep.mubr.f32.mxu0 0.0
        %3592 = vmatmul.mubr.f32.gmra.mrb[0].mxu0 %v2636
        %v3593 = vpop.f32.mrb[0].mxu0
        %v3594 = vadd.f32 %v3434, %v3593
        %v3595 = vpop.f32.mrb[0].mxu0
        %3596 = vmatprep.mubr.f32.mxu0 0.0
        %3597 = vmatmul.mubr.f32.gmra.mrb[0].mxu0 %v2645
        %v3598 = vpop.f32.mrb[0].mxu0
        %v3599 = vadd.f32 %v3439, %v3598
        %v3600 = vpop.f32.mrb[0].mxu0
        %3601 = vmatprep.mubr.f32.mxu0 0.0
        %3602 = vmatmul.mubr.f32.gmra.mrb[0].mxu0 %v2654
        %v3603 = vpop.f32.mrb[0].mxu0
        %v3604 = vadd.f32 %v3444, %v3603
        %v3605 = vpop.f32.mrb[0].mxu0
        %3606 = vmatprep.mubr.f32.mxu0 0.0
        %3607 = vmatmul.mubr.f32.gmra.mrb[0].mxu0 %v2663
        %v3608 = vpop.f32.mrb[0].mxu0
        %v3609 = vadd.f32 %v3449, %v3608
        %v3610 = vpop.f32.mrb[0].mxu0
        %3611 = vmatprep.mubr.f32.mxu0 0.0
        %3612 = vmatmul.mubr.f32.gmra.mrb[0].mxu0 %v2672
        %v3613 = vpop.f32.mrb[0].mxu0
        %v3614 = vadd.f32 %v3454, %v3613
        %v3615 = vpop.f32.mrb[0].mxu0
        %3616 = vdwg.mxu0
        %3617 = vst [vmem:[%s179] sm:$0xff] %v3524
        %3618 = vst [vmem:[%s179 + $0x8] sm:$0xff] %v3529
        %3619 = vst [vmem:[%s179 + $0x10] sm:$0xff] %v3534
        %3620 = vst [vmem:[%s179 + $0x18] sm:$0xff] %v3539
        %3621 = vst [vmem:[%s179 + $0x20] sm:$0xff] %v3544
        %3622 = vst [vmem:[%s179 + $0x28] sm:$0xff] %v3549
        %3623 = vst [vmem:[%s179 + $0x30] sm:$0xff] %v3554
        %3624 = vst [vmem:[%s179 + $0x38] sm:$0xff] %v3559
        %3625 = vst [vmem:[%s179 + $0x40] sm:$0xff] %v3564
        %3626 = vst [vmem:[%s179 + $0x48] sm:$0xff] %v3569
        %3627 = vst [vmem:[%s179 + $0x50] sm:$0xff] %v3574
        %3628 = vst [vmem:[%s179 + $0x58] sm:$0xff] %v3579
        %3629 = vst [vmem:[%s179 + $0x60] sm:$0xff] %v3584
        %3630 = vst [vmem:[%s179 + $0x68] sm:$0xff] %v3589
        %3631 = vst [vmem:[%s179 + $0x70] sm:$0xff] %v3594
        %3632 = vst [vmem:[%s179 + $0x78] sm:$0xff] %v3599
        %3633 = vst [vmem:[%s179 + $0x80] sm:$0xff] %v3604
        %3634 = vst [vmem:[%s179 + $0x88] sm:$0xff] %v3609
        %3635 = vst [vmem:[%s179 + $0x90] sm:$0xff] %v3614
        %s3636 = sand.u32 %s94, 1
        %s3637 = scalar_lea.sflag [#allocation5], %s3636
        %s3638 = sand.u32 %s94, 1
        %s3639 = smul.addr %s3638, 152
        %s3640 = scalar_lea.vmem [#allocation6], %s3639
        // Predicated region
        $region37: #{tpu_custom_call.1} parent=31 // pred_check
          %p3641 = pneg %p104
        $region38: #{tpu_custom_call.1} parent=31 // pred_check_branch
          %3643 = sbr.rel (%p3641) target = $region40
        $region39: #{tpu_custom_call.1} parent=31 // pred_region
          %s3644 = smul.u32 19, %s18
          %s3646 = ssub.s32 2432, 2432
          %3647 = vsyncadd %s3637, %s3646
          %s3648 = smul.addr %s3644, 128
          %s3649 = scalar_lea.hbm %s3, %s3648
          %s3650 = sshll.u32 %s3640, 4
          %s3651 = int_to_ptr.vmem [resolvable:$true] %s3650
          %3656 = dma.vmem_to_hbm [thread:$0]  %s3651, 2432, %s3649, %s3637, 128, 128, 8
        $region40: #{tpu_custom_call.1} parent=31 // pred_fallthru
          _
      $region32: #{tpu_custom_call.1} parent=5 // pred_fallthru
        _
      %p3657 = scmp.le.s32.totalorder 2, %s13
      // Predicated region
      $region41: #{tpu_custom_call.1} parent=5 // pred_check
        %p3658 = pneg %p3657
      $region42: #{tpu_custom_call.1} parent=5 // pred_check_branch
        %3660 = sbr.rel (%p3658) target = $region44
      $region43: #{tpu_custom_call.1} parent=5 // pred_region
        %s3661 = ssub.s32 %s13, 2
        // Predicated region
        $region45: #{tpu_custom_call.1} parent=43 // pred_check
          %p3662 = pneg %p110
        $region46: #{tpu_custom_call.1} parent=43 // pred_check_branch
          %3664 = sbr.rel (%p3662) target = $region48
        $region47: #{tpu_custom_call.1} parent=43 // pred_region
          %s3665 = sand.u32 %s95, 1
          %s3666 = scalar_lea.sflag [#allocation5], %s3665
          %s3667 = sand.u32 %s95, 1
          %s3668 = smul.addr %s3667, 152
          %s3669 = scalar_lea.vmem [#allocation6], %s3668
          %3670 = dma.done %s3666, 2432
        $region48: #{tpu_custom_call.1} parent=43 // pred_fallthru
          _
      $region44: #{tpu_custom_call.1} parent=5 // pred_fallthru
        _
    $region6: #{tpu_custom_call.1} parent=1 // loop_footer
      %s17 = sadd.s32 1, %s13
    $region7: #{tpu_custom_call.1} parent=1 // loop_footer_branch
      %12 = sbr.rel target = $region3
    $region8: #{tpu_custom_call.1} parent=1 // loop_exit
      _
    %3671 = vsyncpa [#allocation4], 1
    %s3672 = scalar_lea.sflag [#allocation4], 1
    %3673 = vsyncpa %s3672, 1
    %3674 = vsyncpa [#allocation5], 1
    %s3675 = scalar_lea.sflag [#allocation5], 1
    %3676 = vsyncpa %s3675, 1

</llo_original>
